<compile_context>
chip_gen: v7x
topology: tpu7x:2x2x1
jax: 0.10.0
libtpu: 0.0.40
codegen_flags: <defaults>
</compile_context>

<pallas_src>
import functools
import math

import numpy as np

import jax
import jax.numpy as jnp
from jax.experimental import pallas as pl
from jax.experimental.pallas import tpu as pltpu


# ----------------------------------------------------------------------------
# Fused MHA kernel (one block of `rows = block_b * S` rows per grid step)
# ----------------------------------------------------------------------------
def _fused_mha_kernel(x_ref, w_qkv_ref, b_qkv_ref, w_out_ref, b_out_ref,
                      mask_ref, o_ref, *, num_heads, head_dim):
    """x_ref:    (rows, input_dim)        bf16
       w_qkv:    (input_dim, 3*d_model)   bf16, head-major [Wq|Wk|Wv], scale folded into Wq
       b_qkv:    (1, 3*d_model)           f32
       w_out:    (d_model, d_model)       bf16
       b_out:    (1, d_model)             f32
       mask:     (rows, rows)             f32 block-diagonal additive bias
       o_ref:    (rows, d_model)
    """
    rows = x_ref.shape[0]
    d_model = num_heads * head_dim

    # --- Fused QKV projection: single wide bf16 MXU pass, f32 accumulate ----
    qkv = jnp.dot(x_ref[...], w_qkv_ref[...],
                  preferred_element_type=jnp.float32) + b_qkv_ref[...]

    # Lane-aligned static slices (d_model = 512 is a multiple of 128).
    q = qkv[:, 0 * d_model:1 * d_model]
    k = qkv[:, 1 * d_model:2 * d_model]
    v = qkv[:, 2 * d_model:3 * d_model]

    # Head-major relayout (rows, H*hd) -> (H, rows, hd); feature axis is
    # already [head0|head1|...] so this is a pure reshape + leading-axis swap.
    # TODO(synk): for large `rows` these swapaxes materialize VMEM copies;
    #   fold the head axis into the einsum batch dims once non-leading
    #   dot_general batch dims lower cleanly in Mosaic.
    qh = jnp.swapaxes(q.reshape(rows, num_heads, head_dim), 0, 1).astype(jnp.bfloat16)
    kh = jnp.swapaxes(k.reshape(rows, num_heads, head_dim), 0, 1).astype(jnp.bfloat16)
    vh = jnp.swapaxes(v.reshape(rows, num_heads, head_dim), 0, 1).astype(jnp.bfloat16)

    # --- Scaled dot-product attention, batched over all heads ---------------
    # (1/sqrt(head_dim) already folded into Wq/bq; mask keeps attention within
    #  each packed sequence.)
    scores = jnp.einsum("hqd,hkd->hqk", qh, kh,
                        preferred_element_type=jnp.float32)   # (H, rows, rows)
    scores = scores + mask_ref[...][None, :, :]

    m = jnp.max(scores, axis=-1, keepdims=True)
    p = jnp.exp(scores - m)
    # approx=True lowers to the (otherwise idle) EUP reciprocal slot.
    attn = p * pl.reciprocal(jnp.sum(p, axis=-1, keepdims=True), approx=True)

    vals = jnp.einsum("hqk,hkd->hqd", attn.astype(jnp.bfloat16), vh,
                      preferred_element_type=jnp.float32)     # (H, rows, hd)
    vals2d = jnp.swapaxes(vals, 0, 1).reshape(rows, d_model)  # (rows, d_model)

    # --- Output projection (bf16 MXU, lane-dense f32 store) -----------------
    out = jnp.dot(vals2d.astype(jnp.bfloat16), w_out_ref[...],
                  preferred_element_type=jnp.float32) + b_out_ref[...]
    o_ref[...] = out.astype(o_ref.dtype)


# ----------------------------------------------------------------------------
# One-time weight prep (hoisted out of the per-call path)
# ----------------------------------------------------------------------------
def prepare_params(params, num_heads):
    w_qkv, b_qkv = params["w_qkv"], params["b_qkv"]
    w_out, b_out = params["w_out"], params["b_out"]
    input_dim = w_qkv.shape[0]
    d_model = w_out.shape[1]
    head_dim = d_model // num_heads
    scale = 1.0 / math.sqrt(head_dim)

    # The module computes qkv = Linear(x), reshapes to (B, S, H, 3*hd) and
    # chunks the last axis into q/k/v.  De-interleave the fused weight into
    # contiguous head-major Q/K/V slabs, fold the softmax scale into Q, and
    # re-concatenate into a single (input_dim, 3*d_model) slab so the kernel
    # does one wide MXU pass with lane-aligned q/k/v slices.
    w_r = w_qkv.reshape(input_dim, num_heads, 3, head_dim)
    b_r = b_qkv.reshape(num_heads, 3, head_dim)
    w_q = (w_r[:, :, 0, :] * scale).reshape(input_dim, d_model)
    w_k = w_r[:, :, 1, :].reshape(input_dim, d_model)
    w_v = w_r[:, :, 2, :].reshape(input_dim, d_model)
    b_q = (b_r[:, 0, :] * scale).reshape(1, d_model)
    b_k = b_r[:, 1, :].reshape(1, d_model)
    b_v = b_r[:, 2, :].reshape(1, d_model)

    return {
        "w_qkv_hm": jnp.concatenate([w_q, w_k, w_v], axis=1).astype(jnp.bfloat16),
        "b_qkv_hm": jnp.concatenate([b_q, b_k, b_v], axis=1).astype(jnp.float32),
        "w_out": w_out.astype(jnp.bfloat16),
        "b_out": b_out.reshape(1, d_model).astype(jnp.float32),
        "num_heads": num_heads,
        "head_dim": head_dim,
        "d_model": d_model,
    }


def _pick_block_b(batch, seq, row_target=256):
    """Largest divisor of `batch` whose row count (block_b*seq) fills the MXU
    M dimension up to ~row_target and keeps the row block sublane-friendly."""
    best = None
    for cand in range(1, batch + 1):
        if batch % cand:
            continue
        rows = cand * seq
        if rows > row_target and best is not None:
            break
        if rows % 8 == 0 or cand == batch:
            best = cand
    return best if best is not None else batch


# ----------------------------------------------------------------------------
# Wrapper: flatten rows + pallas_call
# ----------------------------------------------------------------------------
def multihead_attention(x, prep):
    b, s, input_dim = x.shape
    d_model = prep["d_model"]
    num_heads = prep["num_heads"]
    head_dim = prep["head_dim"]

    block_b = _pick_block_b(b, s)
    rows_per_block = block_b * s
    total_rows = b * s

    # Flatten (B, S, D) -> (B*S, D): the kernel sees clean lane-dense 2-D row
    # tiles, and the MXU M dimension gets block_b*S rows per grid step.
    x2 = x.reshape(total_rows, input_dim).astype(jnp.bfloat16)

    # Block-diagonal additive bias: rows only attend within their own
    # sequence when several batch elements are packed into one grid step.
    seq_ids = np.arange(rows_per_block) // s
    neg_mask = jnp.asarray(
        np.where(seq_ids[:, None] == seq_ids[None, :], 0.0, -1e30),
        dtype=jnp.float32)

    kernel = functools.partial(_fused_mha_kernel,
                               num_heads=num_heads, head_dim=head_dim)

    def const(i):  # weights / biases / mask: same block for every grid step
        return (0, 0)

    out2 = pl.pallas_call(
        kernel,
        out_shape=jax.ShapeDtypeStruct((total_rows, d_model), x.dtype),
        grid=(b // block_b,),
        in_specs=[
            pl.BlockSpec((rows_per_block, input_dim), lambda i: (i, 0)),
            pl.BlockSpec((input_dim, 3 * d_model), const),
            pl.BlockSpec((1, 3 * d_model), const),
            pl.BlockSpec((d_model, d_model), const),
            pl.BlockSpec((1, d_model), const),
            pl.BlockSpec((rows_per_block, rows_per_block), const),
        ],
        out_specs=pl.BlockSpec((rows_per_block, d_model), lambda i: (i, 0)),
        compiler_params=pltpu.CompilerParams(
            dimension_semantics=("parallel",)),
    )(x2, prep["w_qkv_hm"], prep["b_qkv_hm"], prep["w_out"], prep["b_out"],
      neg_mask)

    return out2.reshape(b, s, d_model)


# ----------------------------------------------------------------------------
# Pure-JAX f32 reference (matches the PyTorch module semantics)
# ----------------------------------------------------------------------------
def reference_mha(x, params, num_heads):
    b, s, input_dim = x.shape
    d_model = params["w_out"].shape[1]
    head_dim = d_model // num_heads
    qkv = x.reshape(b * s, input_dim) @ params["w_qkv"] + params["b_qkv"]
    qkv = qkv.reshape(b, s, num_heads, 3 * head_dim).transpose(0, 2, 1, 3)
    q, k, v = jnp.split(qkv, 3, axis=-1)
    scores = jnp.einsum("bhqd,bhkd->bhqk", q, k) / math.sqrt(head_dim)
    attn = jax.nn.softmax(scores, axis=-1)
    vals = jnp.einsum("bhqk,bhkd->bhqd", attn, v)
    vals = vals.transpose(0, 2, 1, 3).reshape(b * s, d_model)
    out = vals @ params["w_out"] + params["b_out"]
    return out.reshape(b, s, d_model)


# ----------------------------------------------------------------------------
# Parameter init (PyTorch nn.Linear style: U(-1/sqrt(fan_in), 1/sqrt(fan_in)))
# ----------------------------------------------------------------------------
def init_params(key, input_dim, d_model):
    k1, k2, k3, k4 = jax.random.split(key, 4)
    bound_qkv = 1.0 / math.sqrt(input_dim)
    bound_out = 1.0 / math.sqrt(d_model)
    return {
        "w_qkv": jax.random.uniform(k1, (input_dim, 3 * d_model), jnp.float32,
                                    -bound_qkv, bound_qkv),
        "b_qkv": jax.random.uniform(k2, (1, 3 * d_model), jnp.float32,
                                    -bound_qkv, bound_qkv),
        "w_out": jax.random.uniform(k3, (d_model, d_model), jnp.float32,
                                    -bound_out, bound_out),
        "b_out": jax.random.uniform(k4, (1, d_model), jnp.float32,
                                    -bound_out, bound_out),
    }


if __name__ == "__main__":
    # Shapes consistent with the PyTorch snippet (batch bumped to 2 to
    # exercise the row-batching / block-diagonal-mask path).
    batch_size, sequence_length = 2, 4
    input_dim, d_model, num_heads = 512, 512, 8

    key = jax.random.PRNGKey(0)
    kx, kp = jax.random.split(key)
    x = jax.random.normal(kx, (batch_size, sequence_length, input_dim),
                          jnp.float32)
    params = init_params(kp, input_dim, d_model)

    # One-time kernel-layout weight prep (outside the per-call path).
    prep = prepare_params(params, num_heads)

    out = jax.block_until_ready(multihead_attention(x, prep))
    ref = jax.block_until_ready(reference_mha(x, params, num_heads))

    assert out.shape == (batch_size, sequence_length, d_model)
    # Tolerance accounts for bf16 MXU operands + approximate EUP reciprocal.
    max_err = float(jnp.max(jnp.abs(out - ref)))
    assert jnp.allclose(out, ref, atol=4e-2, rtol=4e-2), max_err
    print("KERNEL_OK")
</pallas_src>

<mosaic_0001>
module attributes {stable_mosaic.version = 11 : i64} {
  func.func @_fused_mha_kernel(%arg0: i32, %arg1: memref<8x512xbf16, #tpu.memory_space<vmem>>, %arg2: memref<512x1536xbf16, #tpu.memory_space<vmem>>, %arg3: memref<1x1536xf32, #tpu.memory_space<vmem>>, %arg4: memref<512x512xbf16, #tpu.memory_space<vmem>>, %arg5: memref<1x512xf32, #tpu.memory_space<vmem>>, %arg6: memref<8x8xf32, #tpu.memory_space<vmem>>, %arg7: memref<8x512xf32, #tpu.memory_space<vmem>>) attributes {dimension_semantics = [#tpu.dimension_semantics<parallel>], iteration_bounds = array<i64: 1>, scalar_prefetch = 0 : i64, scratch_operands = 0 : i64, tpu.core_type = #tpu.core_type<tc>, window_params = [{transform_indices = @transform_0, window_bounds = array<i64: 8, 512>}, {pipeline_mode = #tpu.pipeline_mode<synchronous>, transform_indices = @transform_1, window_bounds = array<i64: 512, 1536>}, {pipeline_mode = #tpu.pipeline_mode<synchronous>, transform_indices = @transform_2, window_bounds = array<i64: 1, 1536>}, {pipeline_mode = #tpu.pipeline_mode<synchronous>, transform_indices = @transform_3, window_bounds = array<i64: 512, 512>}, {pipeline_mode = #tpu.pipeline_mode<synchronous>, transform_indices = @transform_4, window_bounds = array<i64: 1, 512>}, {pipeline_mode = #tpu.pipeline_mode<synchronous>, transform_indices = @transform_5, window_bounds = array<i64: 8, 8>}, {transform_indices = @transform_6, window_bounds = array<i64: 8, 512>}]} {
    %c0 = arith.constant 0 : index
    %c0_0 = arith.constant 0 : index
    %0 = vector.load %arg1[%c0, %c0_0] : memref<8x512xbf16, #tpu.memory_space<vmem>>, vector<8x512xbf16>
    %c0_1 = arith.constant 0 : index
    %c0_2 = arith.constant 0 : index
    %1 = vector.load %arg2[%c0_1, %c0_2] : memref<512x1536xbf16, #tpu.memory_space<vmem>>, vector<512x1536xbf16>
    %cst = arith.constant dense<0.000000e+00> : vector<8x1536xf32>
    %2 = tpu.matmul %0, %1, %cst {dimension_numbers = #tpu.dot_dimension_numbers<[1], [0], [0], [1], [0, 0, 1, 1], [], []>} : vector<8x512xbf16>, vector<512x1536xbf16>, vector<8x1536xf32> -> vector<8x1536xf32>
    %c0_3 = arith.constant 0 : index
    %c0_4 = arith.constant 0 : index
    %3 = vector.load %arg3[%c0_3, %c0_4] : memref<1x1536xf32, #tpu.memory_space<vmem>>, vector<1x1536xf32>
    %4 = vector.broadcast %3 : vector<1x1536xf32> to vector<8x1536xf32>
    %5 = arith.addf %2, %4 : vector<8x1536xf32>
    %6 = vector.extract_strided_slice %5 {offsets = [0, 0], sizes = [8, 512], strides = [1, 1]} : vector<8x1536xf32> to vector<8x512xf32>
    %7 = vector.extract_strided_slice %5 {offsets = [0, 512], sizes = [8, 512], strides = [1, 1]} : vector<8x1536xf32> to vector<8x512xf32>
    %8 = vector.extract_strided_slice %5 {offsets = [0, 1024], sizes = [8, 512], strides = [1, 1]} : vector<8x1536xf32> to vector<8x512xf32>
    %9 = vector.shape_cast %6 : vector<8x512xf32> to vector<8x8x64xf32>
    %10 = tpu.transpose %9, [1, 0, 2] : vector<8x8x64xf32> -> vector<8x8x64xf32>
    %11 = arith.truncf %10 : vector<8x8x64xf32> to vector<8x8x64xbf16>
    %12 = vector.shape_cast %7 : vector<8x512xf32> to vector<8x8x64xf32>
    %13 = tpu.transpose %12, [1, 0, 2] : vector<8x8x64xf32> -> vector<8x8x64xf32>
    %14 = arith.truncf %13 : vector<8x8x64xf32> to vector<8x8x64xbf16>
    %15 = vector.shape_cast %8 : vector<8x512xf32> to vector<8x8x64xf32>
    %16 = tpu.transpose %15, [1, 0, 2] : vector<8x8x64xf32> -> vector<8x8x64xf32>
    %17 = arith.truncf %16 : vector<8x8x64xf32> to vector<8x8x64xbf16>
    "tpu.trace_start"() <{level = 10 : i32, message = "hqd,hkd->hqk"}> : () -> ()
    %cst_5 = arith.constant dense<0.000000e+00> : vector<8x8x8xf32>
    %18 = tpu.matmul %11, %14, %cst_5 {dimension_numbers = #tpu.dot_dimension_numbers<[2], [2], [1], [1], [0, 0, 0, 1, 1, 1], [0], [0]>} : vector<8x8x64xbf16>, vector<8x8x64xbf16>, vector<8x8x8xf32> -> vector<8x8x8xf32>
    "tpu.trace_stop"() : () -> ()
    %c0_6 = arith.constant 0 : index
    %c0_7 = arith.constant 0 : index
    %19 = vector.load %arg6[%c0_6, %c0_7] : memref<8x8xf32, #tpu.memory_space<vmem>>, vector<8x8xf32>
    %20 = vector.shape_cast %19 : vector<8x8xf32> to vector<1x8x8xf32>
    %21 = vector.broadcast %20 : vector<1x8x8xf32> to vector<8x8x8xf32>
    %22 = arith.addf %18, %21 : vector<8x8x8xf32>
    %cst_8 = arith.constant dense<0xFF800000> : vector<8x8xf32>
    %23 = vector.multi_reduction <maximumf>, %22, %cst_8 [2] : vector<8x8x8xf32> to vector<8x8xf32>
    %24 = vector.shape_cast %23 : vector<8x8xf32> to vector<8x8x1xf32>
    %25 = vector.broadcast %24 : vector<8x8x1xf32> to vector<8x8x8xf32>
    %26 = arith.subf %22, %25 : vector<8x8x8xf32>
    %27 = math.exp %26 : vector<8x8x8xf32>
    %cst_9 = arith.constant dense<0.000000e+00> : vector<8x8xf32>
    %28 = vector.multi_reduction <add>, %27, %cst_9 [2] : vector<8x8x8xf32> to vector<8x8xf32>
    %29 = vector.shape_cast %28 : vector<8x8xf32> to vector<8x8x1xf32>
    %30 = tpu.reciprocal %29 {approx = true} : vector<8x8x1xf32> -> vector<8x8x1xf32>
    %31 = vector.broadcast %30 : vector<8x8x1xf32> to vector<8x8x8xf32>
    %32 = arith.mulf %27, %31 : vector<8x8x8xf32>
    %33 = arith.truncf %32 : vector<8x8x8xf32> to vector<8x8x8xbf16>
    "tpu.trace_start"() <{level = 10 : i32, message = "hqk,hkd->hqd"}> : () -> ()
    %cst_10 = arith.constant dense<0.000000e+00> : vector<8x8x64xf32>
    %34 = tpu.matmul %33, %17, %cst_10 {dimension_numbers = #tpu.dot_dimension_numbers<[2], [1], [1], [2], [0, 0, 0, 1, 1, 2], [0], [0]>} : vector<8x8x8xbf16>, vector<8x8x64xbf16>, vector<8x8x64xf32> -> vector<8x8x64xf32>
    "tpu.trace_stop"() : () -> ()
    %35 = tpu.transpose %34, [1, 0, 2] : vector<8x8x64xf32> -> vector<8x8x64xf32>
    %36 = vector.shape_cast %35 : vector<8x8x64xf32> to vector<8x512xf32>
    %37 = arith.truncf %36 : vector<8x512xf32> to vector<8x512xbf16>
    %c0_11 = arith.constant 0 : index
    %c0_12 = arith.constant 0 : index
    %38 = vector.load %arg4[%c0_11, %c0_12] : memref<512x512xbf16, #tpu.memory_space<vmem>>, vector<512x512xbf16>
    %cst_13 = arith.constant dense<0.000000e+00> : vector<8x512xf32>
    %39 = tpu.matmul %37, %38, %cst_13 {dimension_numbers = #tpu.dot_dimension_numbers<[1], [0], [0], [1], [0, 0, 1, 1], [], []>} : vector<8x512xbf16>, vector<512x512xbf16>, vector<8x512xf32> -> vector<8x512xf32>
    %c0_14 = arith.constant 0 : index
    %c0_15 = arith.constant 0 : index
    %40 = vector.load %arg5[%c0_14, %c0_15] : memref<1x512xf32, #tpu.memory_space<vmem>>, vector<1x512xf32>
    %41 = vector.broadcast %40 : vector<1x512xf32> to vector<8x512xf32>
    %42 = arith.addf %39, %41 : vector<8x512xf32>
    %c0_16 = arith.constant 0 : index
    %c0_17 = arith.constant 0 : index
    %43 = vector.load %arg7[%c0_16, %c0_17] : memref<8x512xf32, #tpu.memory_space<vmem>>, vector<8x512xf32>
    tpu.vector_store %arg7[%c0_16, %c0_17], %42 {strides = array<i32>} : memref<8x512xf32, #tpu.memory_space<vmem>>, vector<8x512xf32>,
    return
  }
  func.func @transform_0(%arg0: i32) -> (i32, i32) {
    %c0_i32 = arith.constant 0 : i32
    %c0_i32_0 = arith.constant 0 : i32
    return %arg0, %c0_i32 : i32, i32
  }
  func.func @transform_1(%arg0: i32) -> (i32, i32) {
    %c0_i32 = arith.constant 0 : i32
    %c0_i32_0 = arith.constant 0 : i32
    %c0_i32_1 = arith.constant 0 : i32
    return %c0_i32, %c0_i32_0 : i32, i32
  }
  func.func @transform_2(%arg0: i32) -> (i32, i32) {
    %c0_i32 = arith.constant 0 : i32
    %c0_i32_0 = arith.constant 0 : i32
    %c0_i32_1 = arith.constant 0 : i32
    return %c0_i32, %c0_i32_0 : i32, i32
  }
  func.func @transform_3(%arg0: i32) -> (i32, i32) {
    %c0_i32 = arith.constant 0 : i32
    %c0_i32_0 = arith.constant 0 : i32
    %c0_i32_1 = arith.constant 0 : i32
    return %c0_i32, %c0_i32_0 : i32, i32
  }
  func.func @transform_4(%arg0: i32) -> (i32, i32) {
    %c0_i32 = arith.constant 0 : i32
    %c0_i32_0 = arith.constant 0 : i32
    %c0_i32_1 = arith.constant 0 : i32
    return %c0_i32, %c0_i32_0 : i32, i32
  }
  func.func @transform_5(%arg0: i32) -> (i32, i32) {
    %c0_i32 = arith.constant 0 : i32
    %c0_i32_0 = arith.constant 0 : i32
    %c0_i32_1 = arith.constant 0 : i32
    return %c0_i32, %c0_i32_0 : i32, i32
  }
  func.func @transform_6(%arg0: i32) -> (i32, i32) {
    %c0_i32 = arith.constant 0 : i32
    %c0_i32_0 = arith.constant 0 : i32
    return %arg0, %c0_i32 : i32, i32
  }
}

</mosaic_0001>

<llo_original>
// kernel: tpu_custom_call.1
$region0: #{tpu_custom_call.1}
  #allocation0 [shape = 'u32[]', space=smem, size = 0x4, offset = 0x4, fixed_abs, tag = 'smem constant byte address 0x4 - core index']
  #allocation1 [shape = 'u32[144,128]{1,0:T(1,128)}', space=vmem, size = 0x12000, scoped, tag = 'internal scratch']
  %s0 = inlined_call_operand.hbm [shape: bf16[8,512], index: 0, kind: input, shape index: {}]
  %s1 = inlined_call_operand.hbm [shape: bf16[512,1536], index: 1, kind: input, shape index: {}]
  %s2 = inlined_call_operand.hbm [shape: f32[1,1536], index: 2, kind: input, shape index: {}]
  %s3 = inlined_call_operand.hbm [shape: bf16[512,512], index: 3, kind: input, shape index: {}]
  %s4 = inlined_call_operand.hbm [shape: f32[1,512], index: 4, kind: input, shape index: {}]
  %s5 = inlined_call_operand.hbm [shape: f32[8,8], index: 5, kind: input, shape index: {}]
  %s6 = inlined_call_operand.hbm [shape: f32[8,512], index: 6, kind: output, shape index: {}]
  %s7 = sld [smem:[#allocation0]]
  $region58: #{tpu_custom_call.1} parent=0
    _
  %s9 = ssub.s32 1, %s7
  %s10 = scalar_select 0, %s9, %s7
  $region1: #{tpu_custom_call.1} parent=0
    #allocation2 [shape = 'u8[8192]{0}', space=vmem, size = 0x2000, scoped, tag = 'input window, operand 0, single buffered']
    #allocation3 [shape = 's32[1]{0}', space=sflag, size = 0x4, scoped, tag = 'scoped memory for tpu_custom_call.1']
    #allocation4 [shape = 's32[1]{0}', space=sflag, size = 0x4, scoped, tag = 'scoped memory for tpu_custom_call.1']
    #allocation5 [shape = 'u8[1572864]{0}', space=vmem, size = 0x180000, scoped, tag = 'input window, operand 1, single buffered']
    #allocation6 [shape = 's32[1]{0}', space=sflag, size = 0x4, scoped, tag = 'scoped memory for tpu_custom_call.1']
    #allocation7 [shape = 'u8[6144]{0}', space=vmem, size = 0x1800, scoped, tag = 'input window, operand 2, single buffered']
    #allocation8 [shape = 'u8[524288]{0}', space=vmem, size = 0x80000, scoped, tag = 'input window, operand 3, single buffered']
    #allocation9 [shape = 's32[1]{0}', space=sflag, size = 0x4, scoped, tag = 'scoped memory for tpu_custom_call.1']
    #allocation10 [shape = 'u8[2048]{0}', space=vmem, size = 0x800, scoped, tag = 'input window, operand 4, single buffered']
    #allocation11 [shape = 'u8[4096]{0}', space=vmem, size = 0x1000, scoped, tag = 'input window, operand 5, single buffered']
    #allocation12 [shape = 's32[1]{0}', space=sflag, size = 0x4, scoped, tag = 'scoped memory for tpu_custom_call.1']
    #allocation13 [shape = 'u8[16384]{0}', space=vmem, size = 0x4000, scoped, tag = 'output window, operand 0, single buffered']
    %11 = vsyncpa [#allocation3], 0
    %12 = vsyncpa [#allocation6], 0
    %13 = vsyncpa [#allocation9], 0
    %14 = vsyncpa [#allocation12], 0
    %15 = vsyncpa [#allocation4], 0
    // Predicated region
    $region2: #{tpu_custom_call.1} parent=1 // pred_check
      _
    $region3: #{tpu_custom_call.1} parent=1 // pred_check_branch
      %17 = sbr.rel (0) target = $region5
    $region4: #{tpu_custom_call.1} parent=1 // pred_region
      %s19 = ssub.s32 256, 256
      %20 = vsyncadd [#allocation3], %s19
      %s22 = sshll.u32 [#allocation2], 4
      %s23 = int_to_ptr.vmem [resolvable:$true] %s22
      %25 = dma.hbm_to_vmem [thread:$0]  %s0, 256, %s23, [#allocation3]
    $region5: #{tpu_custom_call.1} parent=1 // pred_fallthru
      _
    // Predicated region
    $region6: #{tpu_custom_call.1} parent=1 // pred_check
      _
    $region7: #{tpu_custom_call.1} parent=1 // pred_check_branch
      %27 = sbr.rel (0) target = $region9
    $region8: #{tpu_custom_call.1} parent=1 // pred_region
      %s29 = ssub.s32 49152, 49152
      %30 = vsyncadd [#allocation6], %s29
      %s31 = sshll.u32 [#allocation5], 4
      %s32 = int_to_ptr.vmem [resolvable:$true] %s31
      %37 = dma.hbm_to_vmem [thread:$0]  %s1, 49152, %s32, [#allocation6], 768, 768, 48
    $region9: #{tpu_custom_call.1} parent=1 // pred_fallthru
      _
    // Predicated region
    $region10: #{tpu_custom_call.1} parent=1 // pred_check
      _
    $region11: #{tpu_custom_call.1} parent=1 // pred_check_branch
      %39 = sbr.rel (0) target = $region13
    $region12: #{tpu_custom_call.1} parent=1 // pred_region
      %s41 = ssub.s32 192, 192
      %42 = vsyncadd [#allocation6], %s41
      %s44 = sshll.u32 [#allocation7], 4
      %s45 = int_to_ptr.vmem [resolvable:$true] %s44
      %47 = dma.hbm_to_vmem [thread:$0]  %s2, 192, %s45, [#allocation6]
    $region13: #{tpu_custom_call.1} parent=1 // pred_fallthru
      _
    // Predicated region
    $region14: #{tpu_custom_call.1} parent=1 // pred_check
      _
    $region15: #{tpu_custom_call.1} parent=1 // pred_check_branch
      %49 = sbr.rel (0) target = $region17
    $region16: #{tpu_custom_call.1} parent=1 // pred_region
      %s51 = ssub.s32 16384, 16384
      %52 = vsyncadd [#allocation9], %s51
      %s53 = sshll.u32 [#allocation8], 4
      %s54 = int_to_ptr.vmem [resolvable:$true] %s53
      %59 = dma.hbm_to_vmem [thread:$0]  %s3, 16384, %s54, [#allocation9], 256, 256, 16
    $region17: #{tpu_custom_call.1} parent=1 // pred_fallthru
      _
    // Predicated region
    $region18: #{tpu_custom_call.1} parent=1 // pred_check
      _
    $region19: #{tpu_custom_call.1} parent=1 // pred_check_branch
      %61 = sbr.rel (0) target = $region21
    $region20: #{tpu_custom_call.1} parent=1 // pred_region
      %s63 = ssub.s32 64, 64
      %64 = vsyncadd [#allocation9], %s63
      %s66 = sshll.u32 [#allocation10], 4
      %s67 = int_to_ptr.vmem [resolvable:$true] %s66
      %69 = dma.hbm_to_vmem [thread:$0]  %s4, 64, %s67, [#allocation9]
    $region21: #{tpu_custom_call.1} parent=1 // pred_fallthru
      _
    // Predicated region
    $region22: #{tpu_custom_call.1} parent=1 // pred_check
      _
    $region23: #{tpu_custom_call.1} parent=1 // pred_check_branch
      %71 = sbr.rel (0) target = $region25
    $region24: #{tpu_custom_call.1} parent=1 // pred_region
      %s73 = ssub.s32 128, 128
      %74 = vsyncadd [#allocation12], %s73
      %s76 = sshll.u32 [#allocation11], 4
      %s77 = int_to_ptr.vmem [resolvable:$true] %s76
      %79 = dma.hbm_to_vmem [thread:$0]  %s5, 128, %s77, [#allocation12]
    $region25: #{tpu_custom_call.1} parent=1 // pred_fallthru
      _
    // Predicated region
    $region26: #{tpu_custom_call.1} parent=1 // pred_check
      _
    $region27: #{tpu_custom_call.1} parent=1 // pred_check_branch
      %81 = sbr.rel (0) target = $region29
    $region28: #{tpu_custom_call.1} parent=1 // pred_region
      %82 = dma.done [#allocation3], 256
    $region29: #{tpu_custom_call.1} parent=1 // pred_fallthru
      _
    // Predicated region
    $region30: #{tpu_custom_call.1} parent=1 // pred_check
      _
    $region31: #{tpu_custom_call.1} parent=1 // pred_check_branch
      %84 = sbr.rel (0) target = $region33
    $region32: #{tpu_custom_call.1} parent=1 // pred_region
      %85 = dma.done [#allocation6], 49152
    $region33: #{tpu_custom_call.1} parent=1 // pred_fallthru
      _
    // Predicated region
    $region34: #{tpu_custom_call.1} parent=1 // pred_check
      _
    $region35: #{tpu_custom_call.1} parent=1 // pred_check_branch
      %87 = sbr.rel (0) target = $region37
    $region36: #{tpu_custom_call.1} parent=1 // pred_region
      %88 = dma.done [#allocation6], 192
    $region37: #{tpu_custom_call.1} parent=1 // pred_fallthru
      _
    // Predicated region
    $region38: #{tpu_custom_call.1} parent=1 // pred_check
      _
    $region39: #{tpu_custom_call.1} parent=1 // pred_check_branch
      %90 = sbr.rel (0) target = $region41
    $region40: #{tpu_custom_call.1} parent=1 // pred_region
      %91 = dma.done [#allocation9], 16384
    $region41: #{tpu_custom_call.1} parent=1 // pred_fallthru
      _
    // Predicated region
    $region42: #{tpu_custom_call.1} parent=1 // pred_check
      _
    $region43: #{tpu_custom_call.1} parent=1 // pred_check_branch
      %93 = sbr.rel (0) target = $region45
    $region44: #{tpu_custom_call.1} parent=1 // pred_region
      %94 = dma.done [#allocation9], 64
    $region45: #{tpu_custom_call.1} parent=1 // pred_fallthru
      _
    // Predicated region
    $region46: #{tpu_custom_call.1} parent=1 // pred_check
      _
    $region47: #{tpu_custom_call.1} parent=1 // pred_check_branch
      %96 = sbr.rel (0) target = $region49
    $region48: #{tpu_custom_call.1} parent=1 // pred_region
      %97 = dma.done [#allocation12], 128
    $region49: #{tpu_custom_call.1} parent=1 // pred_fallthru
      _
    %v99 = vld [vmem:[#allocation2] sm:$0xff]
    %v100 = vld [vmem:[#allocation2 + $0x8] sm:$0xff]
    %v101 = vld [vmem:[#allocation5] sm:$0xff]
    %v102 = vld [vmem:[#allocation5 + $0x8] sm:$0xff]
    %v103 = vld [vmem:[#allocation5 + $0x10] sm:$0xff]
    %v104 = vld [vmem:[#allocation5 + $0x18] sm:$0xff]
    %v105 = vld [vmem:[#allocation5 + $0x20] sm:$0xff]
    %v106 = vld [vmem:[#allocation5 + $0x28] sm:$0xff]
    %v107 = vld [vmem:[#allocation5 + $0x30] sm:$0xff]
    %v108 = vld [vmem:[#allocation5 + $0x38] sm:$0xff]
    %v109 = vld [vmem:[#allocation5 + $0x40] sm:$0xff]
    %v110 = vld [vmem:[#allocation5 + $0x48] sm:$0xff]
    %v111 = vld [vmem:[#allocation5 + $0x50] sm:$0xff]
    %v112 = vld [vmem:[#allocation5 + $0x58] sm:$0xff]
    %v113 = vld [vmem:[#allocation5 + $0x60] sm:$0xff]
    %v114 = vld [vmem:[#allocation5 + $0x68] sm:$0xff]
    %v115 = vld [vmem:[#allocation5 + $0x70] sm:$0xff]
    %v116 = vld [vmem:[#allocation5 + $0x78] sm:$0xff]
    %v117 = vld [vmem:[#allocation5 + $0x80] sm:$0xff]
    %v118 = vld [vmem:[#allocation5 + $0x88] sm:$0xff]
    %v119 = vld [vmem:[#allocation5 + $0x90] sm:$0xff]
    %v120 = vld [vmem:[#allocation5 + $0x98] sm:$0xff]
    %v121 = vld [vmem:[#allocation5 + $0xa0] sm:$0xff]
    %v122 = vld [vmem:[#allocation5 + $0xa8] sm:$0xff]
    %v123 = vld [vmem:[#allocation5 + $0xb0] sm:$0xff]
    %v124 = vld [vmem:[#allocation5 + $0xb8] sm:$0xff]
    %v125 = vld [vmem:[#allocation5 + $0xc0] sm:$0xff]
    %v126 = vld [vmem:[#allocation5 + $0xc8] sm:$0xff]
    %v127 = vld [vmem:[#allocation5 + $0xd0] sm:$0xff]
    %v128 = vld [vmem:[#allocation5 + $0xd8] sm:$0xff]
    %v129 = vld [vmem:[#allocation5 + $0xe0] sm:$0xff]
    %v130 = vld [vmem:[#allocation5 + $0xe8] sm:$0xff]
    %v131 = vld [vmem:[#allocation5 + $0xf0] sm:$0xff]
    %v132 = vld [vmem:[#allocation5 + $0xf8] sm:$0xff]
    %v133 = vld [vmem:[#allocation5 + $0x100] sm:$0xff]
    %v134 = vld [vmem:[#allocation5 + $0x108] sm:$0xff]
    %v135 = vld [vmem:[#allocation5 + $0x110] sm:$0xff]
    %v136 = vld [vmem:[#allocation5 + $0x118] sm:$0xff]
    %v137 = vld [vmem:[#allocation5 + $0x120] sm:$0xff]
    %v138 = vld [vmem:[#allocation5 + $0x128] sm:$0xff]
    %v139 = vld [vmem:[#allocation5 + $0x130] sm:$0xff]
    %v140 = vld [vmem:[#allocation5 + $0x138] sm:$0xff]
    %v141 = vld [vmem:[#allocation5 + $0x140] sm:$0xff]
    %v142 = vld [vmem:[#allocation5 + $0x148] sm:$0xff]
    %v143 = vld [vmem:[#allocation5 + $0x150] sm:$0xff]
    %v144 = vld [vmem:[#allocation5 + $0x158] sm:$0xff]
    %v145 = vld [vmem:[#allocation5 + $0x160] sm:$0xff]
    %v146 = vld [vmem:[#allocation5 + $0x168] sm:$0xff]
    %v147 = vld [vmem:[#allocation5 + $0x170] sm:$0xff]
    %v148 = vld [vmem:[#allocation5 + $0x178] sm:$0xff]
    %v149 = vld [vmem:[#allocation5 + $0x180] sm:$0xff]
    %v150 = vld [vmem:[#allocation5 + $0x188] sm:$0xff]
    %v151 = vld [vmem:[#allocation5 + $0x190] sm:$0xff]
    %v152 = vld [vmem:[#allocation5 + $0x198] sm:$0xff]
    %v153 = vld [vmem:[#allocation5 + $0x1a0] sm:$0xff]
    %v154 = vld [vmem:[#allocation5 + $0x1a8] sm:$0xff]
    %v155 = vld [vmem:[#allocation5 + $0x1b0] sm:$0xff]
    %v156 = vld [vmem:[#allocation5 + $0x1b8] sm:$0xff]
    %v157 = vld [vmem:[#allocation5 + $0x1c0] sm:$0xff]
    %v158 = vld [vmem:[#allocation5 + $0x1c8] sm:$0xff]
    %v159 = vld [vmem:[#allocation5 + $0x1d0] sm:$0xff]
    %v160 = vld [vmem:[#allocation5 + $0x1d8] sm:$0xff]
    %v161 = vld [vmem:[#allocation5 + $0x1e0] sm:$0xff]
    %v162 = vld [vmem:[#allocation5 + $0x1e8] sm:$0xff]
    %v163 = vld [vmem:[#allocation5 + $0x1f0] sm:$0xff]
    %v164 = vld [vmem:[#allocation5 + $0x1f8] sm:$0xff]
    %v165 = vld [vmem:[#allocation5 + $0x200] sm:$0xff]
    %v166 = vld [vmem:[#allocation5 + $0x208] sm:$0xff]
    %v167 = vld [vmem:[#allocation5 + $0x210] sm:$0xff]
    %v168 = vld [vmem:[#allocation5 + $0x218] sm:$0xff]
    %v169 = vld [vmem:[#allocation5 + $0x220] sm:$0xff]
    %v170 = vld [vmem:[#allocation5 + $0x228] sm:$0xff]
    %v171 = vld [vmem:[#allocation5 + $0x230] sm:$0xff]
    %v172 = vld [vmem:[#allocation5 + $0x238] sm:$0xff]
    %v173 = vld [vmem:[#allocation5 + $0x240] sm:$0xff]
    %v174 = vld [vmem:[#allocation5 + $0x248] sm:$0xff]
    %v175 = vld [vmem:[#allocation5 + $0x250] sm:$0xff]
    %v176 = vld [vmem:[#allocation5 + $0x258] sm:$0xff]
    %v177 = vld [vmem:[#allocation5 + $0x260] sm:$0xff]
    %v178 = vld [vmem:[#allocation5 + $0x268] sm:$0xff]
    %v179 = vld [vmem:[#allocation5 + $0x270] sm:$0xff]
    %v180 = vld [vmem:[#allocation5 + $0x278] sm:$0xff]
    %v181 = vld [vmem:[#allocation5 + $0x280] sm:$0xff]
    %v182 = vld [vmem:[#allocation5 + $0x288] sm:$0xff]
    %v183 = vld [vmem:[#allocation5 + $0x290] sm:$0xff]
    %v184 = vld [vmem:[#allocation5 + $0x298] sm:$0xff]
    %v185 = vld [vmem:[#allocation5 + $0x2a0] sm:$0xff]
    %v186 = vld [vmem:[#allocation5 + $0x2a8] sm:$0xff]
    %v187 = vld [vmem:[#allocation5 + $0x2b0] sm:$0xff]
    %v188 = vld [vmem:[#allocation5 + $0x2b8] sm:$0xff]
    %v189 = vld [vmem:[#allocation5 + $0x2c0] sm:$0xff]
    %v190 = vld [vmem:[#allocation5 + $0x2c8] sm:$0xff]
    %v191 = vld [vmem:[#allocation5 + $0x2d0] sm:$0xff]
    %v192 = vld [vmem:[#allocation5 + $0x2d8] sm:$0xff]
    %v193 = vld [vmem:[#allocation5 + $0x2e0] sm:$0xff]
    %v194 = vld [vmem:[#allocation5 + $0x2e8] sm:$0xff]
    %v195 = vld [vmem:[#allocation5 + $0x2f0] sm:$0xff]
    %v196 = vld [vmem:[#allocation5 + $0x2f8] sm:$0xff]
    %v197 = vld [vmem:[#allocation5 + $0x300] sm:$0xff]
    %v198 = vld [vmem:[#allocation5 + $0x308] sm:$0xff]
    %v199 = vld [vmem:[#allocation5 + $0x310] sm:$0xff]
    %v200 = vld [vmem:[#allocation5 + $0x318] sm:$0xff]
    %v201 = vld [vmem:[#allocation5 + $0x320] sm:$0xff]
    %v202 = vld [vmem:[#allocation5 + $0x328] sm:$0xff]
    %v203 = vld [vmem:[#allocation5 + $0x330] sm:$0xff]
    %v204 = vld [vmem:[#allocation5 + $0x338] sm:$0xff]
    %v205 = vld [vmem:[#allocation5 + $0x340] sm:$0xff]
    %v206 = vld [vmem:[#allocation5 + $0x348] sm:$0xff]
    %v207 = vld [vmem:[#allocation5 + $0x350] sm:$0xff]
    %v208 = vld [vmem:[#allocation5 + $0x358] sm:$0xff]
    %v209 = vld [vmem:[#allocation5 + $0x360] sm:$0xff]
    %v210 = vld [vmem:[#allocation5 + $0x368] sm:$0xff]
    %v211 = vld [vmem:[#allocation5 + $0x370] sm:$0xff]
    %v212 = vld [vmem:[#allocation5 + $0x378] sm:$0xff]
    %v213 = vld [vmem:[#allocation5 + $0x380] sm:$0xff]
    %v214 = vld [vmem:[#allocation5 + $0x388] sm:$0xff]
    %v215 = vld [vmem:[#allocation5 + $0x390] sm:$0xff]
    %v216 = vld [vmem:[#allocation5 + $0x398] sm:$0xff]
    %v217 = vld [vmem:[#allocation5 + $0x3a0] sm:$0xff]
    %v218 = vld [vmem:[#allocation5 + $0x3a8] sm:$0xff]
    %v219 = vld [vmem:[#allocation5 + $0x3b0] sm:$0xff]
    %v220 = vld [vmem:[#allocation5 + $0x3b8] sm:$0xff]
    %v221 = vld [vmem:[#allocation5 + $0x3c0] sm:$0xff]
    %v222 = vld [vmem:[#allocation5 + $0x3c8] sm:$0xff]
    %v223 = vld [vmem:[#allocation5 + $0x3d0] sm:$0xff]
    %v224 = vld [vmem:[#allocation5 + $0x3d8] sm:$0xff]
    %v225 = vld [vmem:[#allocation5 + $0x3e0] sm:$0xff]
    %v226 = vld [vmem:[#allocation5 + $0x3e8] sm:$0xff]
    %v227 = vld [vmem:[#allocation5 + $0x3f0] sm:$0xff]
    %v228 = vld [vmem:[#allocation5 + $0x3f8] sm:$0xff]
    %v229 = vld [vmem:[#allocation5 + $0x400] sm:$0xff]
    %v230 = vld [vmem:[#allocation5 + $0x408] sm:$0xff]
    %v231 = vld [vmem:[#allocation5 + $0x410] sm:$0xff]
    %v232 = vld [vmem:[#allocation5 + $0x418] sm:$0xff]
    %v233 = vld [vmem:[#allocation5 + $0x420] sm:$0xff]
    %v234 = vld [vmem:[#allocation5 + $0x428] sm:$0xff]
    %v235 = vld [vmem:[#allocation5 + $0x430] sm:$0xff]
    %v236 = vld [vmem:[#allocation5 + $0x438] sm:$0xff]
    %v237 = vld [vmem:[#allocation5 + $0x440] sm:$0xff]
    %v238 = vld [vmem:[#allocation5 + $0x448] sm:$0xff]
    %v239 = vld [vmem:[#allocation5 + $0x450] sm:$0xff]
    %v240 = vld [vmem:[#allocation5 + $0x458] sm:$0xff]
    %v241 = vld [vmem:[#allocation5 + $0x460] sm:$0xff]
    %v242 = vld [vmem:[#allocation5 + $0x468] sm:$0xff]
    %v243 = vld [vmem:[#allocation5 + $0x470] sm:$0xff]
    %v244 = vld [vmem:[#allocation5 + $0x478] sm:$0xff]
    %v245 = vld [vmem:[#allocation5 + $0x480] sm:$0xff]
    %v246 = vld [vmem:[#allocation5 + $0x488] sm:$0xff]
    %v247 = vld [vmem:[#allocation5 + $0x490] sm:$0xff]
    %v248 = vld [vmem:[#allocation5 + $0x498] sm:$0xff]
    %v249 = vld [vmem:[#allocation5 + $0x4a0] sm:$0xff]
    %v250 = vld [vmem:[#allocation5 + $0x4a8] sm:$0xff]
    %v251 = vld [vmem:[#allocation5 + $0x4b0] sm:$0xff]
    %v252 = vld [vmem:[#allocation5 + $0x4b8] sm:$0xff]
    %v253 = vld [vmem:[#allocation5 + $0x4c0] sm:$0xff]
    %v254 = vld [vmem:[#allocation5 + $0x4c8] sm:$0xff]
    %v255 = vld [vmem:[#allocation5 + $0x4d0] sm:$0xff]
    %v256 = vld [vmem:[#allocation5 + $0x4d8] sm:$0xff]
    %v257 = vld [vmem:[#allocation5 + $0x4e0] sm:$0xff]
    %v258 = vld [vmem:[#allocation5 + $0x4e8] sm:$0xff]
    %v259 = vld [vmem:[#allocation5 + $0x4f0] sm:$0xff]
    %v260 = vld [vmem:[#allocation5 + $0x4f8] sm:$0xff]
    %v261 = vld [vmem:[#allocation5 + $0x500] sm:$0xff]
    %v262 = vld [vmem:[#allocation5 + $0x508] sm:$0xff]
    %v263 = vld [vmem:[#allocation5 + $0x510] sm:$0xff]
    %v264 = vld [vmem:[#allocation5 + $0x518] sm:$0xff]
    %v265 = vld [vmem:[#allocation5 + $0x520] sm:$0xff]
    %v266 = vld [vmem:[#allocation5 + $0x528] sm:$0xff]
    %v267 = vld [vmem:[#allocation5 + $0x530] sm:$0xff]
    %v268 = vld [vmem:[#allocation5 + $0x538] sm:$0xff]
    %v269 = vld [vmem:[#allocation5 + $0x540] sm:$0xff]
    %v270 = vld [vmem:[#allocation5 + $0x548] sm:$0xff]
    %v271 = vld [vmem:[#allocation5 + $0x550] sm:$0xff]
    %v272 = vld [vmem:[#allocation5 + $0x558] sm:$0xff]
    %v273 = vld [vmem:[#allocation5 + $0x560] sm:$0xff]
    %v274 = vld [vmem:[#allocation5 + $0x568] sm:$0xff]
    %v275 = vld [vmem:[#allocation5 + $0x570] sm:$0xff]
    %v276 = vld [vmem:[#allocation5 + $0x578] sm:$0xff]
    %v277 = vld [vmem:[#allocation5 + $0x580] sm:$0xff]
    %v278 = vld [vmem:[#allocation5 + $0x588] sm:$0xff]
    %v279 = vld [vmem:[#allocation5 + $0x590] sm:$0xff]
    %v280 = vld [vmem:[#allocation5 + $0x598] sm:$0xff]
    %v281 = vld [vmem:[#allocation5 + $0x5a0] sm:$0xff]
    %v282 = vld [vmem:[#allocation5 + $0x5a8] sm:$0xff]
    %v283 = vld [vmem:[#allocation5 + $0x5b0] sm:$0xff]
    %v284 = vld [vmem:[#allocation5 + $0x5b8] sm:$0xff]
    %v285 = vld [vmem:[#allocation5 + $0x5c0] sm:$0xff]
    %v286 = vld [vmem:[#allocation5 + $0x5c8] sm:$0xff]
    %v287 = vld [vmem:[#allocation5 + $0x5d0] sm:$0xff]
    %v288 = vld [vmem:[#allocation5 + $0x5d8] sm:$0xff]
    %v289 = vld [vmem:[#allocation5 + $0x5e0] sm:$0xff]
    %v290 = vld [vmem:[#allocation5 + $0x5e8] sm:$0xff]
    %v291 = vld [vmem:[#allocation5 + $0x5f0] sm:$0xff]
    %v292 = vld [vmem:[#allocation5 + $0x5f8] sm:$0xff]
    %v293 = vld [vmem:[#allocation5 + $0x600] sm:$0xff]
    %v294 = vld [vmem:[#allocation5 + $0x608] sm:$0xff]
    %v295 = vld [vmem:[#allocation5 + $0x610] sm:$0xff]
    %v296 = vld [vmem:[#allocation5 + $0x618] sm:$0xff]
    %v297 = vld [vmem:[#allocation5 + $0x620] sm:$0xff]
    %v298 = vld [vmem:[#allocation5 + $0x628] sm:$0xff]
    %v299 = vld [vmem:[#allocation5 + $0x630] sm:$0xff]
    %v300 = vld [vmem:[#allocation5 + $0x638] sm:$0xff]
    %v301 = vld [vmem:[#allocation5 + $0x640] sm:$0xff]
    %v302 = vld [vmem:[#allocation5 + $0x648] sm:$0xff]
    %v303 = vld [vmem:[#allocation5 + $0x650] sm:$0xff]
    %v304 = vld [vmem:[#allocation5 + $0x658] sm:$0xff]
    %v305 = vld [vmem:[#allocation5 + $0x660] sm:$0xff]
    %v306 = vld [vmem:[#allocation5 + $0x668] sm:$0xff]
    %v307 = vld [vmem:[#allocation5 + $0x670] sm:$0xff]
    %v308 = vld [vmem:[#allocation5 + $0x678] sm:$0xff]
    %v309 = vld [vmem:[#allocation5 + $0x680] sm:$0xff]
    %v310 = vld [vmem:[#allocation5 + $0x688] sm:$0xff]
    %v311 = vld [vmem:[#allocation5 + $0x690] sm:$0xff]
    %v312 = vld [vmem:[#allocation5 + $0x698] sm:$0xff]
    %v313 = vld [vmem:[#allocation5 + $0x6a0] sm:$0xff]
    %v314 = vld [vmem:[#allocation5 + $0x6a8] sm:$0xff]
    %v315 = vld [vmem:[#allocation5 + $0x6b0] sm:$0xff]
    %v316 = vld [vmem:[#allocation5 + $0x6b8] sm:$0xff]
    %v317 = vld [vmem:[#allocation5 + $0x6c0] sm:$0xff]
    %v318 = vld [vmem:[#allocation5 + $0x6c8] sm:$0xff]
    %v319 = vld [vmem:[#allocation5 + $0x6d0] sm:$0xff]
    %v320 = vld [vmem:[#allocation5 + $0x6d8] sm:$0xff]
    %v321 = vld [vmem:[#allocation5 + $0x6e0] sm:$0xff]
    %v322 = vld [vmem:[#allocation5 + $0x6e8] sm:$0xff]
    %v323 = vld [vmem:[#allocation5 + $0x6f0] sm:$0xff]
    %v324 = vld [vmem:[#allocation5 + $0x6f8] sm:$0xff]
    %v325 = vld [vmem:[#allocation5 + $0x700] sm:$0xff]
    %v326 = vld [vmem:[#allocation5 + $0x708] sm:$0xff]
    %v327 = vld [vmem:[#allocation5 + $0x710] sm:$0xff]
    %v328 = vld [vmem:[#allocation5 + $0x718] sm:$0xff]
    %v329 = vld [vmem:[#allocation5 + $0x720] sm:$0xff]
    %v330 = vld [vmem:[#allocation5 + $0x728] sm:$0xff]
    %v331 = vld [vmem:[#allocation5 + $0x730] sm:$0xff]
    %v332 = vld [vmem:[#allocation5 + $0x738] sm:$0xff]
    %v333 = vld [vmem:[#allocation5 + $0x740] sm:$0xff]
    %v334 = vld [vmem:[#allocation5 + $0x748] sm:$0xff]
    %v335 = vld [vmem:[#allocation5 + $0x750] sm:$0xff]
    %v336 = vld [vmem:[#allocation5 + $0x758] sm:$0xff]
    %v337 = vld [vmem:[#allocation5 + $0x760] sm:$0xff]
    %v338 = vld [vmem:[#allocation5 + $0x768] sm:$0xff]
    %v339 = vld [vmem:[#allocation5 + $0x770] sm:$0xff]
    %v340 = vld [vmem:[#allocation5 + $0x778] sm:$0xff]
    %v341 = vld [vmem:[#allocation5 + $0x780] sm:$0xff]
    %v342 = vld [vmem:[#allocation5 + $0x788] sm:$0xff]
    %v343 = vld [vmem:[#allocation5 + $0x790] sm:$0xff]
    %v344 = vld [vmem:[#allocation5 + $0x798] sm:$0xff]
    %v345 = vld [vmem:[#allocation5 + $0x7a0] sm:$0xff]
    %v346 = vld [vmem:[#allocation5 + $0x7a8] sm:$0xff]
    %v347 = vld [vmem:[#allocation5 + $0x7b0] sm:$0xff]
    %v348 = vld [vmem:[#allocation5 + $0x7b8] sm:$0xff]
    %v349 = vld [vmem:[#allocation5 + $0x7c0] sm:$0xff]
    %v350 = vld [vmem:[#allocation5 + $0x7c8] sm:$0xff]
    %v351 = vld [vmem:[#allocation5 + $0x7d0] sm:$0xff]
    %v352 = vld [vmem:[#allocation5 + $0x7d8] sm:$0xff]
    %v353 = vld [vmem:[#allocation5 + $0x7e0] sm:$0xff]
    %v354 = vld [vmem:[#allocation5 + $0x7e8] sm:$0xff]
    %v355 = vld [vmem:[#allocation5 + $0x7f0] sm:$0xff]
    %v356 = vld [vmem:[#allocation5 + $0x7f8] sm:$0xff]
    %v357 = vld [vmem:[#allocation5 + $0x800] sm:$0xff]
    %v358 = vld [vmem:[#allocation5 + $0x808] sm:$0xff]
    %v359 = vld [vmem:[#allocation5 + $0x810] sm:$0xff]
    %v360 = vld [vmem:[#allocation5 + $0x818] sm:$0xff]
    %v361 = vld [vmem:[#allocation5 + $0x820] sm:$0xff]
    %v362 = vld [vmem:[#allocation5 + $0x828] sm:$0xff]
    %v363 = vld [vmem:[#allocation5 + $0x830] sm:$0xff]
    %v364 = vld [vmem:[#allocation5 + $0x838] sm:$0xff]
    %v365 = vld [vmem:[#allocation5 + $0x840] sm:$0xff]
    %v366 = vld [vmem:[#allocation5 + $0x848] sm:$0xff]
    %v367 = vld [vmem:[#allocation5 + $0x850] sm:$0xff]
    %v368 = vld [vmem:[#allocation5 + $0x858] sm:$0xff]
    %v369 = vld [vmem:[#allocation5 + $0x860] sm:$0xff]
    %v370 = vld [vmem:[#allocation5 + $0x868] sm:$0xff]
    %v371 = vld [vmem:[#allocation5 + $0x870] sm:$0xff]
    %v372 = vld [vmem:[#allocation5 + $0x878] sm:$0xff]
    %v373 = vld [vmem:[#allocation5 + $0x880] sm:$0xff]
    %v374 = vld [vmem:[#allocation5 + $0x888] sm:$0xff]
    %v375 = vld [vmem:[#allocation5 + $0x890] sm:$0xff]
    %v376 = vld [vmem:[#allocation5 + $0x898] sm:$0xff]
    %v377 = vld [vmem:[#allocation5 + $0x8a0] sm:$0xff]
    %v378 = vld [vmem:[#allocation5 + $0x8a8] sm:$0xff]
    %v379 = vld [vmem:[#allocation5 + $0x8b0] sm:$0xff]
    %v380 = vld [vmem:[#allocation5 + $0x8b8] sm:$0xff]
    %v381 = vld [vmem:[#allocation5 + $0x8c0] sm:$0xff]
    %v382 = vld [vmem:[#allocation5 + $0x8c8] sm:$0xff]
    %v383 = vld [vmem:[#allocation5 + $0x8d0] sm:$0xff]
    %v384 = vld [vmem:[#allocation5 + $0x8d8] sm:$0xff]
    %v385 = vld [vmem:[#allocation5 + $0x8e0] sm:$0xff]
    %v386 = vld [vmem:[#allocation5 + $0x8e8] sm:$0xff]
    %v387 = vld [vmem:[#allocation5 + $0x8f0] sm:$0xff]
    %v388 = vld [vmem:[#allocation5 + $0x8f8] sm:$0xff]
    %v389 = vld [vmem:[#allocation5 + $0x900] sm:$0xff]
    %v390 = vld [vmem:[#allocation5 + $0x908] sm:$0xff]
    %v391 = vld [vmem:[#allocation5 + $0x910] sm:$0xff]
    %v392 = vld [vmem:[#allocation5 + $0x918] sm:$0xff]
    %v393 = vld [vmem:[#allocation5 + $0x920] sm:$0xff]
    %v394 = vld [vmem:[#allocation5 + $0x928] sm:$0xff]
    %v395 = vld [vmem:[#allocation5 + $0x930] sm:$0xff]
    %v396 = vld [vmem:[#allocation5 + $0x938] sm:$0xff]
    %v397 = vld [vmem:[#allocation5 + $0x940] sm:$0xff]
    %v398 = vld [vmem:[#allocation5 + $0x948] sm:$0xff]
    %v399 = vld [vmem:[#allocation5 + $0x950] sm:$0xff]
    %v400 = vld [vmem:[#allocation5 + $0x958] sm:$0xff]
    %v401 = vld [vmem:[#allocation5 + $0x960] sm:$0xff]
    %v402 = vld [vmem:[#allocation5 + $0x968] sm:$0xff]
    %v403 = vld [vmem:[#allocation5 + $0x970] sm:$0xff]
    %v404 = vld [vmem:[#allocation5 + $0x978] sm:$0xff]
    %v405 = vld [vmem:[#allocation5 + $0x980] sm:$0xff]
    %v406 = vld [vmem:[#allocation5 + $0x988] sm:$0xff]
    %v407 = vld [vmem:[#allocation5 + $0x990] sm:$0xff]
    %v408 = vld [vmem:[#allocation5 + $0x998] sm:$0xff]
    %v409 = vld [vmem:[#allocation5 + $0x9a0] sm:$0xff]
    %v410 = vld [vmem:[#allocation5 + $0x9a8] sm:$0xff]
    %v411 = vld [vmem:[#allocation5 + $0x9b0] sm:$0xff]
    %v412 = vld [vmem:[#allocation5 + $0x9b8] sm:$0xff]
    %v413 = vld [vmem:[#allocation5 + $0x9c0] sm:$0xff]
    %v414 = vld [vmem:[#allocation5 + $0x9c8] sm:$0xff]
    %v415 = vld [vmem:[#allocation5 + $0x9d0] sm:$0xff]
    %v416 = vld [vmem:[#allocation5 + $0x9d8] sm:$0xff]
    %v417 = vld [vmem:[#allocation5 + $0x9e0] sm:$0xff]
    %v418 = vld [vmem:[#allocation5 + $0x9e8] sm:$0xff]
    %v419 = vld [vmem:[#allocation5 + $0x9f0] sm:$0xff]
    %v420 = vld [vmem:[#allocation5 + $0x9f8] sm:$0xff]
    %v421 = vld [vmem:[#allocation5 + $0xa00] sm:$0xff]
    %v422 = vld [vmem:[#allocation5 + $0xa08] sm:$0xff]
    %v423 = vld [vmem:[#allocation5 + $0xa10] sm:$0xff]
    %v424 = vld [vmem:[#allocation5 + $0xa18] sm:$0xff]
    %v425 = vld [vmem:[#allocation5 + $0xa20] sm:$0xff]
    %v426 = vld [vmem:[#allocation5 + $0xa28] sm:$0xff]
    %v427 = vld [vmem:[#allocation5 + $0xa30] sm:$0xff]
    %v428 = vld [vmem:[#allocation5 + $0xa38] sm:$0xff]
    %v429 = vld [vmem:[#allocation5 + $0xa40] sm:$0xff]
    %v430 = vld [vmem:[#allocation5 + $0xa48] sm:$0xff]
    %v431 = vld [vmem:[#allocation5 + $0xa50] sm:$0xff]
    %v432 = vld [vmem:[#allocation5 + $0xa58] sm:$0xff]
    %v433 = vld [vmem:[#allocation5 + $0xa60] sm:$0xff]
    %v434 = vld [vmem:[#allocation5 + $0xa68] sm:$0xff]
    %v435 = vld [vmem:[#allocation5 + $0xa70] sm:$0xff]
    %v436 = vld [vmem:[#allocation5 + $0xa78] sm:$0xff]
    %v437 = vld [vmem:[#allocation5 + $0xa80] sm:$0xff]
    %v438 = vld [vmem:[#allocation5 + $0xa88] sm:$0xff]
    %v439 = vld [vmem:[#allocation5 + $0xa90] sm:$0xff]
    %v440 = vld [vmem:[#allocation5 + $0xa98] sm:$0xff]
    %v441 = vld [vmem:[#allocation5 + $0xaa0] sm:$0xff]
    %v442 = vld [vmem:[#allocation5 + $0xaa8] sm:$0xff]
    %v443 = vld [vmem:[#allocation5 + $0xab0] sm:$0xff]
    %v444 = vld [vmem:[#allocation5 + $0xab8] sm:$0xff]
    %v445 = vld [vmem:[#allocation5 + $0xac0] sm:$0xff]
    %v446 = vld [vmem:[#allocation5 + $0xac8] sm:$0xff]
    %v447 = vld [vmem:[#allocation5 + $0xad0] sm:$0xff]
    %v448 = vld [vmem:[#allocation5 + $0xad8] sm:$0xff]
    %v449 = vld [vmem:[#allocation5 + $0xae0] sm:$0xff]
    %v450 = vld [vmem:[#allocation5 + $0xae8] sm:$0xff]
    %v451 = vld [vmem:[#allocation5 + $0xaf0] sm:$0xff]
    %v452 = vld [vmem:[#allocation5 + $0xaf8] sm:$0xff]
    %v453 = vld [vmem:[#allocation5 + $0xb00] sm:$0xff]
    %v454 = vld [vmem:[#allocation5 + $0xb08] sm:$0xff]
    %v455 = vld [vmem:[#allocation5 + $0xb10] sm:$0xff]
    %v456 = vld [vmem:[#allocation5 + $0xb18] sm:$0xff]
    %v457 = vld [vmem:[#allocation5 + $0xb20] sm:$0xff]
    %v458 = vld [vmem:[#allocation5 + $0xb28] sm:$0xff]
    %v459 = vld [vmem:[#allocation5 + $0xb30] sm:$0xff]
    %v460 = vld [vmem:[#allocation5 + $0xb38] sm:$0xff]
    %v461 = vld [vmem:[#allocation5 + $0xb40] sm:$0xff]
    %v462 = vld [vmem:[#allocation5 + $0xb48] sm:$0xff]
    %v463 = vld [vmem:[#allocation5 + $0xb50] sm:$0xff]
    %v464 = vld [vmem:[#allocation5 + $0xb58] sm:$0xff]
    %v465 = vld [vmem:[#allocation5 + $0xb60] sm:$0xff]
    %v466 = vld [vmem:[#allocation5 + $0xb68] sm:$0xff]
    %v467 = vld [vmem:[#allocation5 + $0xb70] sm:$0xff]
    %v468 = vld [vmem:[#allocation5 + $0xb78] sm:$0xff]
    %v469 = vld [vmem:[#allocation5 + $0xb80] sm:$0xff]
    %v470 = vld [vmem:[#allocation5 + $0xb88] sm:$0xff]
    %v471 = vld [vmem:[#allocation5 + $0xb90] sm:$0xff]
    %v472 = vld [vmem:[#allocation5 + $0xb98] sm:$0xff]
    %v473 = vld [vmem:[#allocation5 + $0xba0] sm:$0xff]
    %v474 = vld [vmem:[#allocation5 + $0xba8] sm:$0xff]
    %v475 = vld [vmem:[#allocation5 + $0xbb0] sm:$0xff]
    %v476 = vld [vmem:[#allocation5 + $0xbb8] sm:$0xff]
    %v477 = vld [vmem:[#allocation5 + $0xbc0] sm:$0xff]
    %v478 = vld [vmem:[#allocation5 + $0xbc8] sm:$0xff]
    %v479 = vld [vmem:[#allocation5 + $0xbd0] sm:$0xff]
    %v480 = vld [vmem:[#allocation5 + $0xbd8] sm:$0xff]
    %v481 = vld [vmem:[#allocation5 + $0xbe0] sm:$0xff]
    %v482 = vld [vmem:[#allocation5 + $0xbe8] sm:$0xff]
    %v483 = vld [vmem:[#allocation5 + $0xbf0] sm:$0xff]
    %v484 = vld [vmem:[#allocation5 + $0xbf8] sm:$0xff]
    %v485 = vld [vmem:[#allocation7] sm:$0xff]
    %v486 = vld [vmem:[#allocation7 + $0x8] sm:$0xf]
    %v489 = vlaneseq
    %v490 = vshrl.u32 %v489, 7
    %v491 = vsub.s32 0, %v490
    %v492 = vrot.slane %v485, %v491
    %v493 = vlaneseq
    %v494 = vshrl.u32 %v493, 7
    %v495 = vsub.s32 1, %v494
    %v496 = vrot.slane %v485, %v495
    %v497 = vlaneseq
    %v498 = vshrl.u32 %v497, 7
    %v499 = vsub.s32 2, %v498
    %v500 = vrot.slane %v485, %v499
    %v501 = vlaneseq
    %v502 = vshrl.u32 %v501, 7
    %v503 = vsub.s32 3, %v502
    %v504 = vrot.slane %v485, %v503
    %v505 = vlaneseq
    %v506 = vshrl.u32 %v505, 7
    %v507 = vsub.s32 4, %v506
    %v508 = vrot.slane %v485, %v507
    %v509 = vlaneseq
    %v510 = vshrl.u32 %v509, 7
    %v511 = vsub.s32 5, %v510
    %v512 = vrot.slane %v485, %v511
    %v513 = vlaneseq
    %v514 = vshrl.u32 %v513, 7
    %v515 = vsub.s32 6, %v514
    %v516 = vrot.slane %v485, %v515
    %v517 = vlaneseq
    %v518 = vshrl.u32 %v517, 7
    %v519 = vsub.s32 7, %v518
    %v520 = vrot.slane %v485, %v519
    %v521 = vlaneseq
    %v522 = vshrl.u32 %v521, 7
    %v523 = vsub.s32 0, %v522
    %v524 = vrot.slane %v486, %v523
    %v525 = vlaneseq
    %v526 = vshrl.u32 %v525, 7
    %v527 = vsub.s32 1, %v526
    %v528 = vrot.slane %v486, %v527
    %v529 = vlaneseq
    %v530 = vshrl.u32 %v529, 7
    %v531 = vsub.s32 2, %v530
    %v532 = vrot.slane %v486, %v531
    %v533 = vlaneseq
    %v534 = vshrl.u32 %v533, 7
    %v535 = vsub.s32 3, %v534
    %v536 = vrot.slane %v486, %v535
    %v551 = vunpack.c.l.b16 %v99
    %v552 = vunpack.c.h.b16 %v99
    %v553 = vunpack.c.l.b16 %v100
    %v554 = vunpack.c.h.b16 %v100
    %v555 = vpack.c.b16 %v551, %v551
    %v556 = vpack.c.b16 %v552, %v552
    %v557 = vpack.c.b16 %v553, %v553
    %v558 = vpack.c.b16 %v554, %v554
    %v947 = vunpack.c.l.b16 %v101
    %v948 = vunpack.c.h.b16 %v101
    %v949 = vunpack.c.l.b16 %v102
    %v950 = vunpack.c.h.b16 %v102
    %v951 = vunpack.c.l.b16 %v103
    %v952 = vunpack.c.h.b16 %v103
    %v953 = vunpack.c.l.b16 %v104
    %v954 = vunpack.c.h.b16 %v104
    %v955 = vunpack.c.l.b16 %v105
    %v956 = vunpack.c.h.b16 %v105
    %v957 = vunpack.c.l.b16 %v106
    %v958 = vunpack.c.h.b16 %v106
    %v959 = vunpack.c.l.b16 %v107
    %v960 = vunpack.c.h.b16 %v107
    %v961 = vunpack.c.l.b16 %v108
    %v962 = vunpack.c.h.b16 %v108
    %v963 = vunpack.c.l.b16 %v109
    %v964 = vunpack.c.h.b16 %v109
    %v965 = vunpack.c.l.b16 %v110
    %v966 = vunpack.c.h.b16 %v110
    %v967 = vunpack.c.l.b16 %v111
    %v968 = vunpack.c.h.b16 %v111
    %v969 = vunpack.c.l.b16 %v112
    %v970 = vunpack.c.h.b16 %v112
    %v971 = vunpack.c.l.b16 %v113
    %v972 = vunpack.c.h.b16 %v113
    %v973 = vunpack.c.l.b16 %v114
    %v974 = vunpack.c.h.b16 %v114
    %v975 = vunpack.c.l.b16 %v115
    %v976 = vunpack.c.h.b16 %v115
    %v977 = vunpack.c.l.b16 %v116
    %v978 = vunpack.c.h.b16 %v116
    %v979 = vunpack.c.l.b16 %v117
    %v980 = vunpack.c.h.b16 %v117
    %v981 = vunpack.c.l.b16 %v118
    %v982 = vunpack.c.h.b16 %v118
    %v983 = vunpack.c.l.b16 %v119
    %v984 = vunpack.c.h.b16 %v119
    %v985 = vunpack.c.l.b16 %v120
    %v986 = vunpack.c.h.b16 %v120
    %v987 = vunpack.c.l.b16 %v121
    %v988 = vunpack.c.h.b16 %v121
    %v989 = vunpack.c.l.b16 %v122
    %v990 = vunpack.c.h.b16 %v122
    %v991 = vunpack.c.l.b16 %v123
    %v992 = vunpack.c.h.b16 %v123
    %v993 = vunpack.c.l.b16 %v124
    %v994 = vunpack.c.h.b16 %v124
    %v995 = vunpack.c.l.b16 %v125
    %v996 = vunpack.c.h.b16 %v125
    %v997 = vunpack.c.l.b16 %v126
    %v998 = vunpack.c.h.b16 %v126
    %v999 = vunpack.c.l.b16 %v127
    %v1000 = vunpack.c.h.b16 %v127
    %v1001 = vunpack.c.l.b16 %v128
    %v1002 = vunpack.c.h.b16 %v128
    %v1003 = vunpack.c.l.b16 %v129
    %v1004 = vunpack.c.h.b16 %v129
    %v1005 = vunpack.c.l.b16 %v130
    %v1006 = vunpack.c.h.b16 %v130
    %v1007 = vunpack.c.l.b16 %v131
    %v1008 = vunpack.c.h.b16 %v131
    %v1009 = vunpack.c.l.b16 %v132
    %v1010 = vunpack.c.h.b16 %v132
    %v1011 = vunpack.c.l.b16 %v133
    %v1012 = vunpack.c.h.b16 %v133
    %v1013 = vunpack.c.l.b16 %v134
    %v1014 = vunpack.c.h.b16 %v134
    %v1015 = vunpack.c.l.b16 %v135
    %v1016 = vunpack.c.h.b16 %v135
    %v1017 = vunpack.c.l.b16 %v136
    %v1018 = vunpack.c.h.b16 %v136
    %v1019 = vunpack.c.l.b16 %v137
    %v1020 = vunpack.c.h.b16 %v137
    %v1021 = vunpack.c.l.b16 %v138
    %v1022 = vunpack.c.h.b16 %v138
    %v1023 = vunpack.c.l.b16 %v139
    %v1024 = vunpack.c.h.b16 %v139
    %v1025 = vunpack.c.l.b16 %v140
    %v1026 = vunpack.c.h.b16 %v140
    %v1027 = vunpack.c.l.b16 %v141
    %v1028 = vunpack.c.h.b16 %v141
    %v1029 = vunpack.c.l.b16 %v142
    %v1030 = vunpack.c.h.b16 %v142
    %v1031 = vunpack.c.l.b16 %v143
    %v1032 = vunpack.c.h.b16 %v143
    %v1033 = vunpack.c.l.b16 %v144
    %v1034 = vunpack.c.h.b16 %v144
    %v1035 = vunpack.c.l.b16 %v145
    %v1036 = vunpack.c.h.b16 %v145
    %v1037 = vunpack.c.l.b16 %v146
    %v1038 = vunpack.c.h.b16 %v146
    %v1039 = vunpack.c.l.b16 %v147
    %v1040 = vunpack.c.h.b16 %v147
    %v1041 = vunpack.c.l.b16 %v148
    %v1042 = vunpack.c.h.b16 %v148
    %v1043 = vunpack.c.l.b16 %v149
    %v1044 = vunpack.c.h.b16 %v149
    %v1045 = vunpack.c.l.b16 %v150
    %v1046 = vunpack.c.h.b16 %v150
    %v1047 = vunpack.c.l.b16 %v151
    %v1048 = vunpack.c.h.b16 %v151
    %v1049 = vunpack.c.l.b16 %v152
    %v1050 = vunpack.c.h.b16 %v152
    %v1051 = vunpack.c.l.b16 %v153
    %v1052 = vunpack.c.h.b16 %v153
    %v1053 = vunpack.c.l.b16 %v154
    %v1054 = vunpack.c.h.b16 %v154
    %v1055 = vunpack.c.l.b16 %v155
    %v1056 = vunpack.c.h.b16 %v155
    %v1057 = vunpack.c.l.b16 %v156
    %v1058 = vunpack.c.h.b16 %v156
    %v1059 = vunpack.c.l.b16 %v157
    %v1060 = vunpack.c.h.b16 %v157
    %v1061 = vunpack.c.l.b16 %v158
    %v1062 = vunpack.c.h.b16 %v158
    %v1063 = vunpack.c.l.b16 %v159
    %v1064 = vunpack.c.h.b16 %v159
    %v1065 = vunpack.c.l.b16 %v160
    %v1066 = vunpack.c.h.b16 %v160
    %v1067 = vunpack.c.l.b16 %v161
    %v1068 = vunpack.c.h.b16 %v161
    %v1069 = vunpack.c.l.b16 %v162
    %v1070 = vunpack.c.h.b16 %v162
    %v1071 = vunpack.c.l.b16 %v163
    %v1072 = vunpack.c.h.b16 %v163
    %v1073 = vunpack.c.l.b16 %v164
    %v1074 = vunpack.c.h.b16 %v164
    %v1075 = vunpack.c.l.b16 %v165
    %v1076 = vunpack.c.h.b16 %v165
    %v1077 = vunpack.c.l.b16 %v166
    %v1078 = vunpack.c.h.b16 %v166
    %v1079 = vunpack.c.l.b16 %v167
    %v1080 = vunpack.c.h.b16 %v167
    %v1081 = vunpack.c.l.b16 %v168
    %v1082 = vunpack.c.h.b16 %v168
    %v1083 = vunpack.c.l.b16 %v169
    %v1084 = vunpack.c.h.b16 %v169
    %v1085 = vunpack.c.l.b16 %v170
    %v1086 = vunpack.c.h.b16 %v170
    %v1087 = vunpack.c.l.b16 %v171
    %v1088 = vunpack.c.h.b16 %v171
    %v1089 = vunpack.c.l.b16 %v172
    %v1090 = vunpack.c.h.b16 %v172
    %v1091 = vunpack.c.l.b16 %v173
    %v1092 = vunpack.c.h.b16 %v173
    %v1093 = vunpack.c.l.b16 %v174
    %v1094 = vunpack.c.h.b16 %v174
    %v1095 = vunpack.c.l.b16 %v175
    %v1096 = vunpack.c.h.b16 %v175
    %v1097 = vunpack.c.l.b16 %v176
    %v1098 = vunpack.c.h.b16 %v176
    %v1099 = vunpack.c.l.b16 %v177
    %v1100 = vunpack.c.h.b16 %v177
    %v1101 = vunpack.c.l.b16 %v178
    %v1102 = vunpack.c.h.b16 %v178
    %v1103 = vunpack.c.l.b16 %v179
    %v1104 = vunpack.c.h.b16 %v179
    %v1105 = vunpack.c.l.b16 %v180
    %v1106 = vunpack.c.h.b16 %v180
    %v1107 = vunpack.c.l.b16 %v181
    %v1108 = vunpack.c.h.b16 %v181
    %v1109 = vunpack.c.l.b16 %v182
    %v1110 = vunpack.c.h.b16 %v182
    %v1111 = vunpack.c.l.b16 %v183
    %v1112 = vunpack.c.h.b16 %v183
    %v1113 = vunpack.c.l.b16 %v184
    %v1114 = vunpack.c.h.b16 %v184
    %v1115 = vunpack.c.l.b16 %v185
    %v1116 = vunpack.c.h.b16 %v185
    %v1117 = vunpack.c.l.b16 %v186
    %v1118 = vunpack.c.h.b16 %v186
    %v1119 = vunpack.c.l.b16 %v187
    %v1120 = vunpack.c.h.b16 %v187
    %v1121 = vunpack.c.l.b16 %v188
    %v1122 = vunpack.c.h.b16 %v188
    %v1123 = vunpack.c.l.b16 %v189
    %v1124 = vunpack.c.h.b16 %v189
    %v1125 = vunpack.c.l.b16 %v190
    %v1126 = vunpack.c.h.b16 %v190
    %v1127 = vunpack.c.l.b16 %v191
    %v1128 = vunpack.c.h.b16 %v191
    %v1129 = vunpack.c.l.b16 %v192
    %v1130 = vunpack.c.h.b16 %v192
    %v1131 = vunpack.c.l.b16 %v193
    %v1132 = vunpack.c.h.b16 %v193
    %v1133 = vunpack.c.l.b16 %v194
    %v1134 = vunpack.c.h.b16 %v194
    %v1135 = vunpack.c.l.b16 %v195
    %v1136 = vunpack.c.h.b16 %v195
    %v1137 = vunpack.c.l.b16 %v196
    %v1138 = vunpack.c.h.b16 %v196
    %v1139 = vunpack.c.l.b16 %v197
    %v1140 = vunpack.c.h.b16 %v197
    %v1141 = vunpack.c.l.b16 %v198
    %v1142 = vunpack.c.h.b16 %v198
    %v1143 = vunpack.c.l.b16 %v199
    %v1144 = vunpack.c.h.b16 %v199
    %v1145 = vunpack.c.l.b16 %v200
    %v1146 = vunpack.c.h.b16 %v200
    %v1147 = vunpack.c.l.b16 %v201
    %v1148 = vunpack.c.h.b16 %v201
    %v1149 = vunpack.c.l.b16 %v202
    %v1150 = vunpack.c.h.b16 %v202
    %v1151 = vunpack.c.l.b16 %v203
    %v1152 = vunpack.c.h.b16 %v203
    %v1153 = vunpack.c.l.b16 %v204
    %v1154 = vunpack.c.h.b16 %v204
    %v1155 = vunpack.c.l.b16 %v205
    %v1156 = vunpack.c.h.b16 %v205
    %v1157 = vunpack.c.l.b16 %v206
    %v1158 = vunpack.c.h.b16 %v206
    %v1159 = vunpack.c.l.b16 %v207
    %v1160 = vunpack.c.h.b16 %v207
    %v1161 = vunpack.c.l.b16 %v208
    %v1162 = vunpack.c.h.b16 %v208
    %v1163 = vunpack.c.l.b16 %v209
    %v1164 = vunpack.c.h.b16 %v209
    %v1165 = vunpack.c.l.b16 %v210
    %v1166 = vunpack.c.h.b16 %v210
    %v1167 = vunpack.c.l.b16 %v211
    %v1168 = vunpack.c.h.b16 %v211
    %v1169 = vunpack.c.l.b16 %v212
    %v1170 = vunpack.c.h.b16 %v212
    %v1171 = vunpack.c.l.b16 %v213
    %v1172 = vunpack.c.h.b16 %v213
    %v1173 = vunpack.c.l.b16 %v214
    %v1174 = vunpack.c.h.b16 %v214
    %v1175 = vunpack.c.l.b16 %v215
    %v1176 = vunpack.c.h.b16 %v215
    %v1177 = vunpack.c.l.b16 %v216
    %v1178 = vunpack.c.h.b16 %v216
    %v1179 = vunpack.c.l.b16 %v217
    %v1180 = vunpack.c.h.b16 %v217
    %v1181 = vunpack.c.l.b16 %v218
    %v1182 = vunpack.c.h.b16 %v218
    %v1183 = vunpack.c.l.b16 %v219
    %v1184 = vunpack.c.h.b16 %v219
    %v1185 = vunpack.c.l.b16 %v220
    %v1186 = vunpack.c.h.b16 %v220
    %v1187 = vunpack.c.l.b16 %v221
    %v1188 = vunpack.c.h.b16 %v221
    %v1189 = vunpack.c.l.b16 %v222
    %v1190 = vunpack.c.h.b16 %v222
    %v1191 = vunpack.c.l.b16 %v223
    %v1192 = vunpack.c.h.b16 %v223
    %v1193 = vunpack.c.l.b16 %v224
    %v1194 = vunpack.c.h.b16 %v224
    %v1195 = vunpack.c.l.b16 %v225
    %v1196 = vunpack.c.h.b16 %v225
    %v1197 = vunpack.c.l.b16 %v226
    %v1198 = vunpack.c.h.b16 %v226
    %v1199 = vunpack.c.l.b16 %v227
    %v1200 = vunpack.c.h.b16 %v227
    %v1201 = vunpack.c.l.b16 %v228
    %v1202 = vunpack.c.h.b16 %v228
    %v1203 = vunpack.c.l.b16 %v229
    %v1204 = vunpack.c.h.b16 %v229
    %v1205 = vunpack.c.l.b16 %v230
    %v1206 = vunpack.c.h.b16 %v230
    %v1207 = vunpack.c.l.b16 %v231
    %v1208 = vunpack.c.h.b16 %v231
    %v1209 = vunpack.c.l.b16 %v232
    %v1210 = vunpack.c.h.b16 %v232
    %v1211 = vunpack.c.l.b16 %v233
    %v1212 = vunpack.c.h.b16 %v233
    %v1213 = vunpack.c.l.b16 %v234
    %v1214 = vunpack.c.h.b16 %v234
    %v1215 = vunpack.c.l.b16 %v235
    %v1216 = vunpack.c.h.b16 %v235
    %v1217 = vunpack.c.l.b16 %v236
    %v1218 = vunpack.c.h.b16 %v236
    %v1219 = vunpack.c.l.b16 %v237
    %v1220 = vunpack.c.h.b16 %v237
    %v1221 = vunpack.c.l.b16 %v238
    %v1222 = vunpack.c.h.b16 %v238
    %v1223 = vunpack.c.l.b16 %v239
    %v1224 = vunpack.c.h.b16 %v239
    %v1225 = vunpack.c.l.b16 %v240
    %v1226 = vunpack.c.h.b16 %v240
    %v1227 = vunpack.c.l.b16 %v241
    %v1228 = vunpack.c.h.b16 %v241
    %v1229 = vunpack.c.l.b16 %v242
    %v1230 = vunpack.c.h.b16 %v242
    %v1231 = vunpack.c.l.b16 %v243
    %v1232 = vunpack.c.h.b16 %v243
    %v1233 = vunpack.c.l.b16 %v244
    %v1234 = vunpack.c.h.b16 %v244
    %v1235 = vunpack.c.l.b16 %v245
    %v1236 = vunpack.c.h.b16 %v245
    %v1237 = vunpack.c.l.b16 %v246
    %v1238 = vunpack.c.h.b16 %v246
    %v1239 = vunpack.c.l.b16 %v247
    %v1240 = vunpack.c.h.b16 %v247
    %v1241 = vunpack.c.l.b16 %v248
    %v1242 = vunpack.c.h.b16 %v248
    %v1243 = vunpack.c.l.b16 %v249
    %v1244 = vunpack.c.h.b16 %v249
    %v1245 = vunpack.c.l.b16 %v250
    %v1246 = vunpack.c.h.b16 %v250
    %v1247 = vunpack.c.l.b16 %v251
    %v1248 = vunpack.c.h.b16 %v251
    %v1249 = vunpack.c.l.b16 %v252
    %v1250 = vunpack.c.h.b16 %v252
    %v1251 = vunpack.c.l.b16 %v253
    %v1252 = vunpack.c.h.b16 %v253
    %v1253 = vunpack.c.l.b16 %v254
    %v1254 = vunpack.c.h.b16 %v254
    %v1255 = vunpack.c.l.b16 %v255
    %v1256 = vunpack.c.h.b16 %v255
    %v1257 = vunpack.c.l.b16 %v256
    %v1258 = vunpack.c.h.b16 %v256
    %v1259 = vunpack.c.l.b16 %v257
    %v1260 = vunpack.c.h.b16 %v257
    %v1261 = vunpack.c.l.b16 %v258
    %v1262 = vunpack.c.h.b16 %v258
    %v1263 = vunpack.c.l.b16 %v259
    %v1264 = vunpack.c.h.b16 %v259
    %v1265 = vunpack.c.l.b16 %v260
    %v1266 = vunpack.c.h.b16 %v260
    %v1267 = vunpack.c.l.b16 %v261
    %v1268 = vunpack.c.h.b16 %v261
    %v1269 = vunpack.c.l.b16 %v262
    %v1270 = vunpack.c.h.b16 %v262
    %v1271 = vunpack.c.l.b16 %v263
    %v1272 = vunpack.c.h.b16 %v263
    %v1273 = vunpack.c.l.b16 %v264
    %v1274 = vunpack.c.h.b16 %v264
    %v1275 = vunpack.c.l.b16 %v265
    %v1276 = vunpack.c.h.b16 %v265
    %v1277 = vunpack.c.l.b16 %v266
    %v1278 = vunpack.c.h.b16 %v266
    %v1279 = vunpack.c.l.b16 %v267
    %v1280 = vunpack.c.h.b16 %v267
    %v1281 = vunpack.c.l.b16 %v268
    %v1282 = vunpack.c.h.b16 %v268
    %v1283 = vunpack.c.l.b16 %v269
    %v1284 = vunpack.c.h.b16 %v269
    %v1285 = vunpack.c.l.b16 %v270
    %v1286 = vunpack.c.h.b16 %v270
    %v1287 = vunpack.c.l.b16 %v271
    %v1288 = vunpack.c.h.b16 %v271
    %v1289 = vunpack.c.l.b16 %v272
    %v1290 = vunpack.c.h.b16 %v272
    %v1291 = vunpack.c.l.b16 %v273
    %v1292 = vunpack.c.h.b16 %v273
    %v1293 = vunpack.c.l.b16 %v274
    %v1294 = vunpack.c.h.b16 %v274
    %v1295 = vunpack.c.l.b16 %v275
    %v1296 = vunpack.c.h.b16 %v275
    %v1297 = vunpack.c.l.b16 %v276
    %v1298 = vunpack.c.h.b16 %v276
    %v1299 = vunpack.c.l.b16 %v277
    %v1300 = vunpack.c.h.b16 %v277
    %v1301 = vunpack.c.l.b16 %v278
    %v1302 = vunpack.c.h.b16 %v278
    %v1303 = vunpack.c.l.b16 %v279
    %v1304 = vunpack.c.h.b16 %v279
    %v1305 = vunpack.c.l.b16 %v280
    %v1306 = vunpack.c.h.b16 %v280
    %v1307 = vunpack.c.l.b16 %v281
    %v1308 = vunpack.c.h.b16 %v281
    %v1309 = vunpack.c.l.b16 %v282
    %v1310 = vunpack.c.h.b16 %v282
    %v1311 = vunpack.c.l.b16 %v283
    %v1312 = vunpack.c.h.b16 %v283
    %v1313 = vunpack.c.l.b16 %v284
    %v1314 = vunpack.c.h.b16 %v284
    %v1315 = vunpack.c.l.b16 %v285
    %v1316 = vunpack.c.h.b16 %v285
    %v1317 = vunpack.c.l.b16 %v286
    %v1318 = vunpack.c.h.b16 %v286
    %v1319 = vunpack.c.l.b16 %v287
    %v1320 = vunpack.c.h.b16 %v287
    %v1321 = vunpack.c.l.b16 %v288
    %v1322 = vunpack.c.h.b16 %v288
    %v1323 = vunpack.c.l.b16 %v289
    %v1324 = vunpack.c.h.b16 %v289
    %v1325 = vunpack.c.l.b16 %v290
    %v1326 = vunpack.c.h.b16 %v290
    %v1327 = vunpack.c.l.b16 %v291
    %v1328 = vunpack.c.h.b16 %v291
    %v1329 = vunpack.c.l.b16 %v292
    %v1330 = vunpack.c.h.b16 %v292
    %v1331 = vunpack.c.l.b16 %v293
    %v1332 = vunpack.c.h.b16 %v293
    %v1333 = vunpack.c.l.b16 %v294
    %v1334 = vunpack.c.h.b16 %v294
    %v1335 = vunpack.c.l.b16 %v295
    %v1336 = vunpack.c.h.b16 %v295
    %v1337 = vunpack.c.l.b16 %v296
    %v1338 = vunpack.c.h.b16 %v296
    %v1339 = vunpack.c.l.b16 %v297
    %v1340 = vunpack.c.h.b16 %v297
    %v1341 = vunpack.c.l.b16 %v298
    %v1342 = vunpack.c.h.b16 %v298
    %v1343 = vunpack.c.l.b16 %v299
    %v1344 = vunpack.c.h.b16 %v299
    %v1345 = vunpack.c.l.b16 %v300
    %v1346 = vunpack.c.h.b16 %v300
    %v1347 = vunpack.c.l.b16 %v301
    %v1348 = vunpack.c.h.b16 %v301
    %v1349 = vunpack.c.l.b16 %v302
    %v1350 = vunpack.c.h.b16 %v302
    %v1351 = vunpack.c.l.b16 %v303
    %v1352 = vunpack.c.h.b16 %v303
    %v1353 = vunpack.c.l.b16 %v304
    %v1354 = vunpack.c.h.b16 %v304
    %v1355 = vunpack.c.l.b16 %v305
    %v1356 = vunpack.c.h.b16 %v305
    %v1357 = vunpack.c.l.b16 %v306
    %v1358 = vunpack.c.h.b16 %v306
    %v1359 = vunpack.c.l.b16 %v307
    %v1360 = vunpack.c.h.b16 %v307
    %v1361 = vunpack.c.l.b16 %v308
    %v1362 = vunpack.c.h.b16 %v308
    %v1363 = vunpack.c.l.b16 %v309
    %v1364 = vunpack.c.h.b16 %v309
    %v1365 = vunpack.c.l.b16 %v310
    %v1366 = vunpack.c.h.b16 %v310
    %v1367 = vunpack.c.l.b16 %v311
    %v1368 = vunpack.c.h.b16 %v311
    %v1369 = vunpack.c.l.b16 %v312
    %v1370 = vunpack.c.h.b16 %v312
    %v1371 = vunpack.c.l.b16 %v313
    %v1372 = vunpack.c.h.b16 %v313
    %v1373 = vunpack.c.l.b16 %v314
    %v1374 = vunpack.c.h.b16 %v314
    %v1375 = vunpack.c.l.b16 %v315
    %v1376 = vunpack.c.h.b16 %v315
    %v1377 = vunpack.c.l.b16 %v316
    %v1378 = vunpack.c.h.b16 %v316
    %v1379 = vunpack.c.l.b16 %v317
    %v1380 = vunpack.c.h.b16 %v317
    %v1381 = vunpack.c.l.b16 %v318
    %v1382 = vunpack.c.h.b16 %v318
    %v1383 = vunpack.c.l.b16 %v319
    %v1384 = vunpack.c.h.b16 %v319
    %v1385 = vunpack.c.l.b16 %v320
    %v1386 = vunpack.c.h.b16 %v320
    %v1387 = vunpack.c.l.b16 %v321
    %v1388 = vunpack.c.h.b16 %v321
    %v1389 = vunpack.c.l.b16 %v322
    %v1390 = vunpack.c.h.b16 %v322
    %v1391 = vunpack.c.l.b16 %v323
    %v1392 = vunpack.c.h.b16 %v323
    %v1393 = vunpack.c.l.b16 %v324
    %v1394 = vunpack.c.h.b16 %v324
    %v1395 = vunpack.c.l.b16 %v325
    %v1396 = vunpack.c.h.b16 %v325
    %v1397 = vunpack.c.l.b16 %v326
    %v1398 = vunpack.c.h.b16 %v326
    %v1399 = vunpack.c.l.b16 %v327
    %v1400 = vunpack.c.h.b16 %v327
    %v1401 = vunpack.c.l.b16 %v328
    %v1402 = vunpack.c.h.b16 %v328
    %v1403 = vunpack.c.l.b16 %v329
    %v1404 = vunpack.c.h.b16 %v329
    %v1405 = vunpack.c.l.b16 %v330
    %v1406 = vunpack.c.h.b16 %v330
    %v1407 = vunpack.c.l.b16 %v331
    %v1408 = vunpack.c.h.b16 %v331
    %v1409 = vunpack.c.l.b16 %v332
    %v1410 = vunpack.c.h.b16 %v332
    %v1411 = vunpack.c.l.b16 %v333
    %v1412 = vunpack.c.h.b16 %v333
    %v1413 = vunpack.c.l.b16 %v334
    %v1414 = vunpack.c.h.b16 %v334
    %v1415 = vunpack.c.l.b16 %v335
    %v1416 = vunpack.c.h.b16 %v335
    %v1417 = vunpack.c.l.b16 %v336
    %v1418 = vunpack.c.h.b16 %v336
    %v1419 = vunpack.c.l.b16 %v337
    %v1420 = vunpack.c.h.b16 %v337
    %v1421 = vunpack.c.l.b16 %v338
    %v1422 = vunpack.c.h.b16 %v338
    %v1423 = vunpack.c.l.b16 %v339
    %v1424 = vunpack.c.h.b16 %v339
    %v1425 = vunpack.c.l.b16 %v340
    %v1426 = vunpack.c.h.b16 %v340
    %v1427 = vunpack.c.l.b16 %v341
    %v1428 = vunpack.c.h.b16 %v341
    %v1429 = vunpack.c.l.b16 %v342
    %v1430 = vunpack.c.h.b16 %v342
    %v1431 = vunpack.c.l.b16 %v343
    %v1432 = vunpack.c.h.b16 %v343
    %v1433 = vunpack.c.l.b16 %v344
    %v1434 = vunpack.c.h.b16 %v344
    %v1435 = vunpack.c.l.b16 %v345
    %v1436 = vunpack.c.h.b16 %v345
    %v1437 = vunpack.c.l.b16 %v346
    %v1438 = vunpack.c.h.b16 %v346
    %v1439 = vunpack.c.l.b16 %v347
    %v1440 = vunpack.c.h.b16 %v347
    %v1441 = vunpack.c.l.b16 %v348
    %v1442 = vunpack.c.h.b16 %v348
    %v1443 = vunpack.c.l.b16 %v349
    %v1444 = vunpack.c.h.b16 %v349
    %v1445 = vunpack.c.l.b16 %v350
    %v1446 = vunpack.c.h.b16 %v350
    %v1447 = vunpack.c.l.b16 %v351
    %v1448 = vunpack.c.h.b16 %v351
    %v1449 = vunpack.c.l.b16 %v352
    %v1450 = vunpack.c.h.b16 %v352
    %v1451 = vunpack.c.l.b16 %v353
    %v1452 = vunpack.c.h.b16 %v353
    %v1453 = vunpack.c.l.b16 %v354
    %v1454 = vunpack.c.h.b16 %v354
    %v1455 = vunpack.c.l.b16 %v355
    %v1456 = vunpack.c.h.b16 %v355
    %v1457 = vunpack.c.l.b16 %v356
    %v1458 = vunpack.c.h.b16 %v356
    %v1459 = vunpack.c.l.b16 %v357
    %v1460 = vunpack.c.h.b16 %v357
    %v1461 = vunpack.c.l.b16 %v358
    %v1462 = vunpack.c.h.b16 %v358
    %v1463 = vunpack.c.l.b16 %v359
    %v1464 = vunpack.c.h.b16 %v359
    %v1465 = vunpack.c.l.b16 %v360
    %v1466 = vunpack.c.h.b16 %v360
    %v1467 = vunpack.c.l.b16 %v361
    %v1468 = vunpack.c.h.b16 %v361
    %v1469 = vunpack.c.l.b16 %v362
    %v1470 = vunpack.c.h.b16 %v362
    %v1471 = vunpack.c.l.b16 %v363
    %v1472 = vunpack.c.h.b16 %v363
    %v1473 = vunpack.c.l.b16 %v364
    %v1474 = vunpack.c.h.b16 %v364
    %v1475 = vunpack.c.l.b16 %v365
    %v1476 = vunpack.c.h.b16 %v365
    %v1477 = vunpack.c.l.b16 %v366
    %v1478 = vunpack.c.h.b16 %v366
    %v1479 = vunpack.c.l.b16 %v367
    %v1480 = vunpack.c.h.b16 %v367
    %v1481 = vunpack.c.l.b16 %v368
    %v1482 = vunpack.c.h.b16 %v368
    %v1483 = vunpack.c.l.b16 %v369
    %v1484 = vunpack.c.h.b16 %v369
    %v1485 = vunpack.c.l.b16 %v370
    %v1486 = vunpack.c.h.b16 %v370
    %v1487 = vunpack.c.l.b16 %v371
    %v1488 = vunpack.c.h.b16 %v371
    %v1489 = vunpack.c.l.b16 %v372
    %v1490 = vunpack.c.h.b16 %v372
    %v1491 = vunpack.c.l.b16 %v373
    %v1492 = vunpack.c.h.b16 %v373
    %v1493 = vunpack.c.l.b16 %v374
    %v1494 = vunpack.c.h.b16 %v374
    %v1495 = vunpack.c.l.b16 %v375
    %v1496 = vunpack.c.h.b16 %v375
    %v1497 = vunpack.c.l.b16 %v376
    %v1498 = vunpack.c.h.b16 %v376
    %v1499 = vunpack.c.l.b16 %v377
    %v1500 = vunpack.c.h.b16 %v377
    %v1501 = vunpack.c.l.b16 %v378
    %v1502 = vunpack.c.h.b16 %v378
    %v1503 = vunpack.c.l.b16 %v379
    %v1504 = vunpack.c.h.b16 %v379
    %v1505 = vunpack.c.l.b16 %v380
    %v1506 = vunpack.c.h.b16 %v380
    %v1507 = vunpack.c.l.b16 %v381
    %v1508 = vunpack.c.h.b16 %v381
    %v1509 = vunpack.c.l.b16 %v382
    %v1510 = vunpack.c.h.b16 %v382
    %v1511 = vunpack.c.l.b16 %v383
    %v1512 = vunpack.c.h.b16 %v383
    %v1513 = vunpack.c.l.b16 %v384
    %v1514 = vunpack.c.h.b16 %v384
    %v1515 = vunpack.c.l.b16 %v385
    %v1516 = vunpack.c.h.b16 %v385
    %v1517 = vunpack.c.l.b16 %v386
    %v1518 = vunpack.c.h.b16 %v386
    %v1519 = vunpack.c.l.b16 %v387
    %v1520 = vunpack.c.h.b16 %v387
    %v1521 = vunpack.c.l.b16 %v388
    %v1522 = vunpack.c.h.b16 %v388
    %v1523 = vunpack.c.l.b16 %v389
    %v1524 = vunpack.c.h.b16 %v389
    %v1525 = vunpack.c.l.b16 %v390
    %v1526 = vunpack.c.h.b16 %v390
    %v1527 = vunpack.c.l.b16 %v391
    %v1528 = vunpack.c.h.b16 %v391
    %v1529 = vunpack.c.l.b16 %v392
    %v1530 = vunpack.c.h.b16 %v392
    %v1531 = vunpack.c.l.b16 %v393
    %v1532 = vunpack.c.h.b16 %v393
    %v1533 = vunpack.c.l.b16 %v394
    %v1534 = vunpack.c.h.b16 %v394
    %v1535 = vunpack.c.l.b16 %v395
    %v1536 = vunpack.c.h.b16 %v395
    %v1537 = vunpack.c.l.b16 %v396
    %v1538 = vunpack.c.h.b16 %v396
    %v1539 = vunpack.c.l.b16 %v397
    %v1540 = vunpack.c.h.b16 %v397
    %v1541 = vunpack.c.l.b16 %v398
    %v1542 = vunpack.c.h.b16 %v398
    %v1543 = vunpack.c.l.b16 %v399
    %v1544 = vunpack.c.h.b16 %v399
    %v1545 = vunpack.c.l.b16 %v400
    %v1546 = vunpack.c.h.b16 %v400
    %v1547 = vunpack.c.l.b16 %v401
    %v1548 = vunpack.c.h.b16 %v401
    %v1549 = vunpack.c.l.b16 %v402
    %v1550 = vunpack.c.h.b16 %v402
    %v1551 = vunpack.c.l.b16 %v403
    %v1552 = vunpack.c.h.b16 %v403
    %v1553 = vunpack.c.l.b16 %v404
    %v1554 = vunpack.c.h.b16 %v404
    %v1555 = vunpack.c.l.b16 %v405
    %v1556 = vunpack.c.h.b16 %v405
    %v1557 = vunpack.c.l.b16 %v406
    %v1558 = vunpack.c.h.b16 %v406
    %v1559 = vunpack.c.l.b16 %v407
    %v1560 = vunpack.c.h.b16 %v407
    %v1561 = vunpack.c.l.b16 %v408
    %v1562 = vunpack.c.h.b16 %v408
    %v1563 = vunpack.c.l.b16 %v409
    %v1564 = vunpack.c.h.b16 %v409
    %v1565 = vunpack.c.l.b16 %v410
    %v1566 = vunpack.c.h.b16 %v410
    %v1567 = vunpack.c.l.b16 %v411
    %v1568 = vunpack.c.h.b16 %v411
    %v1569 = vunpack.c.l.b16 %v412
    %v1570 = vunpack.c.h.b16 %v412
    %v1571 = vunpack.c.l.b16 %v413
    %v1572 = vunpack.c.h.b16 %v413
    %v1573 = vunpack.c.l.b16 %v414
    %v1574 = vunpack.c.h.b16 %v414
    %v1575 = vunpack.c.l.b16 %v415
    %v1576 = vunpack.c.h.b16 %v415
    %v1577 = vunpack.c.l.b16 %v416
    %v1578 = vunpack.c.h.b16 %v416
    %v1579 = vunpack.c.l.b16 %v417
    %v1580 = vunpack.c.h.b16 %v417
    %v1581 = vunpack.c.l.b16 %v418
    %v1582 = vunpack.c.h.b16 %v418
    %v1583 = vunpack.c.l.b16 %v419
    %v1584 = vunpack.c.h.b16 %v419
    %v1585 = vunpack.c.l.b16 %v420
    %v1586 = vunpack.c.h.b16 %v420
    %v1587 = vunpack.c.l.b16 %v421
    %v1588 = vunpack.c.h.b16 %v421
    %v1589 = vunpack.c.l.b16 %v422
    %v1590 = vunpack.c.h.b16 %v422
    %v1591 = vunpack.c.l.b16 %v423
    %v1592 = vunpack.c.h.b16 %v423
    %v1593 = vunpack.c.l.b16 %v424
    %v1594 = vunpack.c.h.b16 %v424
    %v1595 = vunpack.c.l.b16 %v425
    %v1596 = vunpack.c.h.b16 %v425
    %v1597 = vunpack.c.l.b16 %v426
    %v1598 = vunpack.c.h.b16 %v426
    %v1599 = vunpack.c.l.b16 %v427
    %v1600 = vunpack.c.h.b16 %v427
    %v1601 = vunpack.c.l.b16 %v428
    %v1602 = vunpack.c.h.b16 %v428
    %v1603 = vunpack.c.l.b16 %v429
    %v1604 = vunpack.c.h.b16 %v429
    %v1605 = vunpack.c.l.b16 %v430
    %v1606 = vunpack.c.h.b16 %v430
    %v1607 = vunpack.c.l.b16 %v431
    %v1608 = vunpack.c.h.b16 %v431
    %v1609 = vunpack.c.l.b16 %v432
    %v1610 = vunpack.c.h.b16 %v432
    %v1611 = vunpack.c.l.b16 %v433
    %v1612 = vunpack.c.h.b16 %v433
    %v1613 = vunpack.c.l.b16 %v434
    %v1614 = vunpack.c.h.b16 %v434
    %v1615 = vunpack.c.l.b16 %v435
    %v1616 = vunpack.c.h.b16 %v435
    %v1617 = vunpack.c.l.b16 %v436
    %v1618 = vunpack.c.h.b16 %v436
    %v1619 = vunpack.c.l.b16 %v437
    %v1620 = vunpack.c.h.b16 %v437
    %v1621 = vunpack.c.l.b16 %v438
    %v1622 = vunpack.c.h.b16 %v438
    %v1623 = vunpack.c.l.b16 %v439
    %v1624 = vunpack.c.h.b16 %v439
    %v1625 = vunpack.c.l.b16 %v440
    %v1626 = vunpack.c.h.b16 %v440
    %v1627 = vunpack.c.l.b16 %v441
    %v1628 = vunpack.c.h.b16 %v441
    %v1629 = vunpack.c.l.b16 %v442
    %v1630 = vunpack.c.h.b16 %v442
    %v1631 = vunpack.c.l.b16 %v443
    %v1632 = vunpack.c.h.b16 %v443
    %v1633 = vunpack.c.l.b16 %v444
    %v1634 = vunpack.c.h.b16 %v444
    %v1635 = vunpack.c.l.b16 %v445
    %v1636 = vunpack.c.h.b16 %v445
    %v1637 = vunpack.c.l.b16 %v446
    %v1638 = vunpack.c.h.b16 %v446
    %v1639 = vunpack.c.l.b16 %v447
    %v1640 = vunpack.c.h.b16 %v447
    %v1641 = vunpack.c.l.b16 %v448
    %v1642 = vunpack.c.h.b16 %v448
    %v1643 = vunpack.c.l.b16 %v449
    %v1644 = vunpack.c.h.b16 %v449
    %v1645 = vunpack.c.l.b16 %v450
    %v1646 = vunpack.c.h.b16 %v450
    %v1647 = vunpack.c.l.b16 %v451
    %v1648 = vunpack.c.h.b16 %v451
    %v1649 = vunpack.c.l.b16 %v452
    %v1650 = vunpack.c.h.b16 %v452
    %v1651 = vunpack.c.l.b16 %v453
    %v1652 = vunpack.c.h.b16 %v453
    %v1653 = vunpack.c.l.b16 %v454
    %v1654 = vunpack.c.h.b16 %v454
    %v1655 = vunpack.c.l.b16 %v455
    %v1656 = vunpack.c.h.b16 %v455
    %v1657 = vunpack.c.l.b16 %v456
    %v1658 = vunpack.c.h.b16 %v456
    %v1659 = vunpack.c.l.b16 %v457
    %v1660 = vunpack.c.h.b16 %v457
    %v1661 = vunpack.c.l.b16 %v458
    %v1662 = vunpack.c.h.b16 %v458
    %v1663 = vunpack.c.l.b16 %v459
    %v1664 = vunpack.c.h.b16 %v459
    %v1665 = vunpack.c.l.b16 %v460
    %v1666 = vunpack.c.h.b16 %v460
    %v1667 = vunpack.c.l.b16 %v461
    %v1668 = vunpack.c.h.b16 %v461
    %v1669 = vunpack.c.l.b16 %v462
    %v1670 = vunpack.c.h.b16 %v462
    %v1671 = vunpack.c.l.b16 %v463
    %v1672 = vunpack.c.h.b16 %v463
    %v1673 = vunpack.c.l.b16 %v464
    %v1674 = vunpack.c.h.b16 %v464
    %v1675 = vunpack.c.l.b16 %v465
    %v1676 = vunpack.c.h.b16 %v465
    %v1677 = vunpack.c.l.b16 %v466
    %v1678 = vunpack.c.h.b16 %v466
    %v1679 = vunpack.c.l.b16 %v467
    %v1680 = vunpack.c.h.b16 %v467
    %v1681 = vunpack.c.l.b16 %v468
    %v1682 = vunpack.c.h.b16 %v468
    %v1683 = vunpack.c.l.b16 %v469
    %v1684 = vunpack.c.h.b16 %v469
    %v1685 = vunpack.c.l.b16 %v470
    %v1686 = vunpack.c.h.b16 %v470
    %v1687 = vunpack.c.l.b16 %v471
    %v1688 = vunpack.c.h.b16 %v471
    %v1689 = vunpack.c.l.b16 %v472
    %v1690 = vunpack.c.h.b16 %v472
    %v1691 = vunpack.c.l.b16 %v473
    %v1692 = vunpack.c.h.b16 %v473
    %v1693 = vunpack.c.l.b16 %v474
    %v1694 = vunpack.c.h.b16 %v474
    %v1695 = vunpack.c.l.b16 %v475
    %v1696 = vunpack.c.h.b16 %v475
    %v1697 = vunpack.c.l.b16 %v476
    %v1698 = vunpack.c.h.b16 %v476
    %v1699 = vunpack.c.l.b16 %v477
    %v1700 = vunpack.c.h.b16 %v477
    %v1701 = vunpack.c.l.b16 %v478
    %v1702 = vunpack.c.h.b16 %v478
    %v1703 = vunpack.c.l.b16 %v479
    %v1704 = vunpack.c.h.b16 %v479
    %v1705 = vunpack.c.l.b16 %v480
    %v1706 = vunpack.c.h.b16 %v480
    %v1707 = vunpack.c.l.b16 %v481
    %v1708 = vunpack.c.h.b16 %v481
    %v1709 = vunpack.c.l.b16 %v482
    %v1710 = vunpack.c.h.b16 %v482
    %v1711 = vunpack.c.l.b16 %v483
    %v1712 = vunpack.c.h.b16 %v483
    %v1713 = vunpack.c.l.b16 %v484
    %v1714 = vunpack.c.h.b16 %v484
    %v1715 = vpack.c.b16 %v959, %v947
    %v1716 = vpack.c.b16 %v960, %v948
    %v1717 = vpack.c.b16 %v961, %v949
    %v1718 = vpack.c.b16 %v962, %v950
    %v1719 = vpack.c.b16 %v963, %v951
    %v1720 = vpack.c.b16 %v964, %v952
    %v1721 = vpack.c.b16 %v965, %v953
    %v1722 = vpack.c.b16 %v966, %v954
    %v1723 = vpack.c.b16 %v967, %v955
    %v1724 = vpack.c.b16 %v968, %v956
    %v1725 = vpack.c.b16 %v969, %v957
    %v1726 = vpack.c.b16 %v970, %v958
    %v1727 = vpack.c.b16 %v983, %v971
    %v1728 = vpack.c.b16 %v984, %v972
    %v1729 = vpack.c.b16 %v985, %v973
    %v1730 = vpack.c.b16 %v986, %v974
    %v1731 = vpack.c.b16 %v987, %v975
    %v1732 = vpack.c.b16 %v988, %v976
    %v1733 = vpack.c.b16 %v989, %v977
    %v1734 = vpack.c.b16 %v990, %v978
    %v1735 = vpack.c.b16 %v991, %v979
    %v1736 = vpack.c.b16 %v992, %v980
    %v1737 = vpack.c.b16 %v993, %v981
    %v1738 = vpack.c.b16 %v994, %v982
    %v1739 = vpack.c.b16 %v1007, %v995
    %v1740 = vpack.c.b16 %v1008, %v996
    %v1741 = vpack.c.b16 %v1009, %v997
    %v1742 = vpack.c.b16 %v1010, %v998
    %v1743 = vpack.c.b16 %v1011, %v999
    %v1744 = vpack.c.b16 %v1012, %v1000
    %v1745 = vpack.c.b16 %v1013, %v1001
    %v1746 = vpack.c.b16 %v1014, %v1002
    %v1747 = vpack.c.b16 %v1015, %v1003
    %v1748 = vpack.c.b16 %v1016, %v1004
    %v1749 = vpack.c.b16 %v1017, %v1005
    %v1750 = vpack.c.b16 %v1018, %v1006
    %v1751 = vpack.c.b16 %v1031, %v1019
    %v1752 = vpack.c.b16 %v1032, %v1020
    %v1753 = vpack.c.b16 %v1033, %v1021
    %v1754 = vpack.c.b16 %v1034, %v1022
    %v1755 = vpack.c.b16 %v1035, %v1023
    %v1756 = vpack.c.b16 %v1036, %v1024
    %v1757 = vpack.c.b16 %v1037, %v1025
    %v1758 = vpack.c.b16 %v1038, %v1026
    %v1759 = vpack.c.b16 %v1039, %v1027
    %v1760 = vpack.c.b16 %v1040, %v1028
    %v1761 = vpack.c.b16 %v1041, %v1029
    %v1762 = vpack.c.b16 %v1042, %v1030
    %v1763 = vpack.c.b16 %v1055, %v1043
    %v1764 = vpack.c.b16 %v1056, %v1044
    %v1765 = vpack.c.b16 %v1057, %v1045
    %v1766 = vpack.c.b16 %v1058, %v1046
    %v1767 = vpack.c.b16 %v1059, %v1047
    %v1768 = vpack.c.b16 %v1060, %v1048
    %v1769 = vpack.c.b16 %v1061, %v1049
    %v1770 = vpack.c.b16 %v1062, %v1050
    %v1771 = vpack.c.b16 %v1063, %v1051
    %v1772 = vpack.c.b16 %v1064, %v1052
    %v1773 = vpack.c.b16 %v1065, %v1053
    %v1774 = vpack.c.b16 %v1066, %v1054
    %v1775 = vpack.c.b16 %v1079, %v1067
    %v1776 = vpack.c.b16 %v1080, %v1068
    %v1777 = vpack.c.b16 %v1081, %v1069
    %v1778 = vpack.c.b16 %v1082, %v1070
    %v1779 = vpack.c.b16 %v1083, %v1071
    %v1780 = vpack.c.b16 %v1084, %v1072
    %v1781 = vpack.c.b16 %v1085, %v1073
    %v1782 = vpack.c.b16 %v1086, %v1074
    %v1783 = vpack.c.b16 %v1087, %v1075
    %v1784 = vpack.c.b16 %v1088, %v1076
    %v1785 = vpack.c.b16 %v1089, %v1077
    %v1786 = vpack.c.b16 %v1090, %v1078
    %v1787 = vpack.c.b16 %v1103, %v1091
    %v1788 = vpack.c.b16 %v1104, %v1092
    %v1789 = vpack.c.b16 %v1105, %v1093
    %v1790 = vpack.c.b16 %v1106, %v1094
    %v1791 = vpack.c.b16 %v1107, %v1095
    %v1792 = vpack.c.b16 %v1108, %v1096
    %v1793 = vpack.c.b16 %v1109, %v1097
    %v1794 = vpack.c.b16 %v1110, %v1098
    %v1795 = vpack.c.b16 %v1111, %v1099
    %v1796 = vpack.c.b16 %v1112, %v1100
    %v1797 = vpack.c.b16 %v1113, %v1101
    %v1798 = vpack.c.b16 %v1114, %v1102
    %v1799 = vpack.c.b16 %v1127, %v1115
    %v1800 = vpack.c.b16 %v1128, %v1116
    %v1801 = vpack.c.b16 %v1129, %v1117
    %v1802 = vpack.c.b16 %v1130, %v1118
    %v1803 = vpack.c.b16 %v1131, %v1119
    %v1804 = vpack.c.b16 %v1132, %v1120
    %v1805 = vpack.c.b16 %v1133, %v1121
    %v1806 = vpack.c.b16 %v1134, %v1122
    %v1807 = vpack.c.b16 %v1135, %v1123
    %v1808 = vpack.c.b16 %v1136, %v1124
    %v1809 = vpack.c.b16 %v1137, %v1125
    %v1810 = vpack.c.b16 %v1138, %v1126
    %v1811 = vpack.c.b16 %v1151, %v1139
    %v1812 = vpack.c.b16 %v1152, %v1140
    %v1813 = vpack.c.b16 %v1153, %v1141
    %v1814 = vpack.c.b16 %v1154, %v1142
    %v1815 = vpack.c.b16 %v1155, %v1143
    %v1816 = vpack.c.b16 %v1156, %v1144
    %v1817 = vpack.c.b16 %v1157, %v1145
    %v1818 = vpack.c.b16 %v1158, %v1146
    %v1819 = vpack.c.b16 %v1159, %v1147
    %v1820 = vpack.c.b16 %v1160, %v1148
    %v1821 = vpack.c.b16 %v1161, %v1149
    %v1822 = vpack.c.b16 %v1162, %v1150
    %v1823 = vpack.c.b16 %v1175, %v1163
    %v1824 = vpack.c.b16 %v1176, %v1164
    %v1825 = vpack.c.b16 %v1177, %v1165
    %v1826 = vpack.c.b16 %v1178, %v1166
    %v1827 = vpack.c.b16 %v1179, %v1167
    %v1828 = vpack.c.b16 %v1180, %v1168
    %v1829 = vpack.c.b16 %v1181, %v1169
    %v1830 = vpack.c.b16 %v1182, %v1170
    %v1831 = vpack.c.b16 %v1183, %v1171
    %v1832 = vpack.c.b16 %v1184, %v1172
    %v1833 = vpack.c.b16 %v1185, %v1173
    %v1834 = vpack.c.b16 %v1186, %v1174
    %v1835 = vpack.c.b16 %v1199, %v1187
    %v1836 = vpack.c.b16 %v1200, %v1188
    %v1837 = vpack.c.b16 %v1201, %v1189
    %v1838 = vpack.c.b16 %v1202, %v1190
    %v1839 = vpack.c.b16 %v1203, %v1191
    %v1840 = vpack.c.b16 %v1204, %v1192
    %v1841 = vpack.c.b16 %v1205, %v1193
    %v1842 = vpack.c.b16 %v1206, %v1194
    %v1843 = vpack.c.b16 %v1207, %v1195
    %v1844 = vpack.c.b16 %v1208, %v1196
    %v1845 = vpack.c.b16 %v1209, %v1197
    %v1846 = vpack.c.b16 %v1210, %v1198
    %v1847 = vpack.c.b16 %v1223, %v1211
    %v1848 = vpack.c.b16 %v1224, %v1212
    %v1849 = vpack.c.b16 %v1225, %v1213
    %v1850 = vpack.c.b16 %v1226, %v1214
    %v1851 = vpack.c.b16 %v1227, %v1215
    %v1852 = vpack.c.b16 %v1228, %v1216
    %v1853 = vpack.c.b16 %v1229, %v1217
    %v1854 = vpack.c.b16 %v1230, %v1218
    %v1855 = vpack.c.b16 %v1231, %v1219
    %v1856 = vpack.c.b16 %v1232, %v1220
    %v1857 = vpack.c.b16 %v1233, %v1221
    %v1858 = vpack.c.b16 %v1234, %v1222
    %v1859 = vpack.c.b16 %v1247, %v1235
    %v1860 = vpack.c.b16 %v1248, %v1236
    %v1861 = vpack.c.b16 %v1249, %v1237
    %v1862 = vpack.c.b16 %v1250, %v1238
    %v1863 = vpack.c.b16 %v1251, %v1239
    %v1864 = vpack.c.b16 %v1252, %v1240
    %v1865 = vpack.c.b16 %v1253, %v1241
    %v1866 = vpack.c.b16 %v1254, %v1242
    %v1867 = vpack.c.b16 %v1255, %v1243
    %v1868 = vpack.c.b16 %v1256, %v1244
    %v1869 = vpack.c.b16 %v1257, %v1245
    %v1870 = vpack.c.b16 %v1258, %v1246
    %v1871 = vpack.c.b16 %v1271, %v1259
    %v1872 = vpack.c.b16 %v1272, %v1260
    %v1873 = vpack.c.b16 %v1273, %v1261
    %v1874 = vpack.c.b16 %v1274, %v1262
    %v1875 = vpack.c.b16 %v1275, %v1263
    %v1876 = vpack.c.b16 %v1276, %v1264
    %v1877 = vpack.c.b16 %v1277, %v1265
    %v1878 = vpack.c.b16 %v1278, %v1266
    %v1879 = vpack.c.b16 %v1279, %v1267
    %v1880 = vpack.c.b16 %v1280, %v1268
    %v1881 = vpack.c.b16 %v1281, %v1269
    %v1882 = vpack.c.b16 %v1282, %v1270
    %v1883 = vpack.c.b16 %v1295, %v1283
    %v1884 = vpack.c.b16 %v1296, %v1284
    %v1885 = vpack.c.b16 %v1297, %v1285
    %v1886 = vpack.c.b16 %v1298, %v1286
    %v1887 = vpack.c.b16 %v1299, %v1287
    %v1888 = vpack.c.b16 %v1300, %v1288
    %v1889 = vpack.c.b16 %v1301, %v1289
    %v1890 = vpack.c.b16 %v1302, %v1290
    %v1891 = vpack.c.b16 %v1303, %v1291
    %v1892 = vpack.c.b16 %v1304, %v1292
    %v1893 = vpack.c.b16 %v1305, %v1293
    %v1894 = vpack.c.b16 %v1306, %v1294
    %v1895 = vpack.c.b16 %v1319, %v1307
    %v1896 = vpack.c.b16 %v1320, %v1308
    %v1897 = vpack.c.b16 %v1321, %v1309
    %v1898 = vpack.c.b16 %v1322, %v1310
    %v1899 = vpack.c.b16 %v1323, %v1311
    %v1900 = vpack.c.b16 %v1324, %v1312
    %v1901 = vpack.c.b16 %v1325, %v1313
    %v1902 = vpack.c.b16 %v1326, %v1314
    %v1903 = vpack.c.b16 %v1327, %v1315
    %v1904 = vpack.c.b16 %v1328, %v1316
    %v1905 = vpack.c.b16 %v1329, %v1317
    %v1906 = vpack.c.b16 %v1330, %v1318
    %v1907 = vpack.c.b16 %v1343, %v1331
    %v1908 = vpack.c.b16 %v1344, %v1332
    %v1909 = vpack.c.b16 %v1345, %v1333
    %v1910 = vpack.c.b16 %v1346, %v1334
    %v1911 = vpack.c.b16 %v1347, %v1335
    %v1912 = vpack.c.b16 %v1348, %v1336
    %v1913 = vpack.c.b16 %v1349, %v1337
    %v1914 = vpack.c.b16 %v1350, %v1338
    %v1915 = vpack.c.b16 %v1351, %v1339
    %v1916 = vpack.c.b16 %v1352, %v1340
    %v1917 = vpack.c.b16 %v1353, %v1341
    %v1918 = vpack.c.b16 %v1354, %v1342
    %v1919 = vpack.c.b16 %v1367, %v1355
    %v1920 = vpack.c.b16 %v1368, %v1356
    %v1921 = vpack.c.b16 %v1369, %v1357
    %v1922 = vpack.c.b16 %v1370, %v1358
    %v1923 = vpack.c.b16 %v1371, %v1359
    %v1924 = vpack.c.b16 %v1372, %v1360
    %v1925 = vpack.c.b16 %v1373, %v1361
    %v1926 = vpack.c.b16 %v1374, %v1362
    %v1927 = vpack.c.b16 %v1375, %v1363
    %v1928 = vpack.c.b16 %v1376, %v1364
    %v1929 = vpack.c.b16 %v1377, %v1365
    %v1930 = vpack.c.b16 %v1378, %v1366
    %v1931 = vpack.c.b16 %v1391, %v1379
    %v1932 = vpack.c.b16 %v1392, %v1380
    %v1933 = vpack.c.b16 %v1393, %v1381
    %v1934 = vpack.c.b16 %v1394, %v1382
    %v1935 = vpack.c.b16 %v1395, %v1383
    %v1936 = vpack.c.b16 %v1396, %v1384
    %v1937 = vpack.c.b16 %v1397, %v1385
    %v1938 = vpack.c.b16 %v1398, %v1386
    %v1939 = vpack.c.b16 %v1399, %v1387
    %v1940 = vpack.c.b16 %v1400, %v1388
    %v1941 = vpack.c.b16 %v1401, %v1389
    %v1942 = vpack.c.b16 %v1402, %v1390
    %v1943 = vpack.c.b16 %v1415, %v1403
    %v1944 = vpack.c.b16 %v1416, %v1404
    %v1945 = vpack.c.b16 %v1417, %v1405
    %v1946 = vpack.c.b16 %v1418, %v1406
    %v1947 = vpack.c.b16 %v1419, %v1407
    %v1948 = vpack.c.b16 %v1420, %v1408
    %v1949 = vpack.c.b16 %v1421, %v1409
    %v1950 = vpack.c.b16 %v1422, %v1410
    %v1951 = vpack.c.b16 %v1423, %v1411
    %v1952 = vpack.c.b16 %v1424, %v1412
    %v1953 = vpack.c.b16 %v1425, %v1413
    %v1954 = vpack.c.b16 %v1426, %v1414
    %v1955 = vpack.c.b16 %v1439, %v1427
    %v1956 = vpack.c.b16 %v1440, %v1428
    %v1957 = vpack.c.b16 %v1441, %v1429
    %v1958 = vpack.c.b16 %v1442, %v1430
    %v1959 = vpack.c.b16 %v1443, %v1431
    %v1960 = vpack.c.b16 %v1444, %v1432
    %v1961 = vpack.c.b16 %v1445, %v1433
    %v1962 = vpack.c.b16 %v1446, %v1434
    %v1963 = vpack.c.b16 %v1447, %v1435
    %v1964 = vpack.c.b16 %v1448, %v1436
    %v1965 = vpack.c.b16 %v1449, %v1437
    %v1966 = vpack.c.b16 %v1450, %v1438
    %v1967 = vpack.c.b16 %v1463, %v1451
    %v1968 = vpack.c.b16 %v1464, %v1452
    %v1969 = vpack.c.b16 %v1465, %v1453
    %v1970 = vpack.c.b16 %v1466, %v1454
    %v1971 = vpack.c.b16 %v1467, %v1455
    %v1972 = vpack.c.b16 %v1468, %v1456
    %v1973 = vpack.c.b16 %v1469, %v1457
    %v1974 = vpack.c.b16 %v1470, %v1458
    %v1975 = vpack.c.b16 %v1471, %v1459
    %v1976 = vpack.c.b16 %v1472, %v1460
    %v1977 = vpack.c.b16 %v1473, %v1461
    %v1978 = vpack.c.b16 %v1474, %v1462
    %v1979 = vpack.c.b16 %v1487, %v1475
    %v1980 = vpack.c.b16 %v1488, %v1476
    %v1981 = vpack.c.b16 %v1489, %v1477
    %v1982 = vpack.c.b16 %v1490, %v1478
    %v1983 = vpack.c.b16 %v1491, %v1479
    %v1984 = vpack.c.b16 %v1492, %v1480
    %v1985 = vpack.c.b16 %v1493, %v1481
    %v1986 = vpack.c.b16 %v1494, %v1482
    %v1987 = vpack.c.b16 %v1495, %v1483
    %v1988 = vpack.c.b16 %v1496, %v1484
    %v1989 = vpack.c.b16 %v1497, %v1485
    %v1990 = vpack.c.b16 %v1498, %v1486
    %v1991 = vpack.c.b16 %v1511, %v1499
    %v1992 = vpack.c.b16 %v1512, %v1500
    %v1993 = vpack.c.b16 %v1513, %v1501
    %v1994 = vpack.c.b16 %v1514, %v1502
    %v1995 = vpack.c.b16 %v1515, %v1503
    %v1996 = vpack.c.b16 %v1516, %v1504
    %v1997 = vpack.c.b16 %v1517, %v1505
    %v1998 = vpack.c.b16 %v1518, %v1506
    %v1999 = vpack.c.b16 %v1519, %v1507
    %v2000 = vpack.c.b16 %v1520, %v1508
    %v2001 = vpack.c.b16 %v1521, %v1509
    %v2002 = vpack.c.b16 %v1522, %v1510
    %v2003 = vpack.c.b16 %v1535, %v1523
    %v2004 = vpack.c.b16 %v1536, %v1524
    %v2005 = vpack.c.b16 %v1537, %v1525
    %v2006 = vpack.c.b16 %v1538, %v1526
    %v2007 = vpack.c.b16 %v1539, %v1527
    %v2008 = vpack.c.b16 %v1540, %v1528
    %v2009 = vpack.c.b16 %v1541, %v1529
    %v2010 = vpack.c.b16 %v1542, %v1530
    %v2011 = vpack.c.b16 %v1543, %v1531
    %v2012 = vpack.c.b16 %v1544, %v1532
    %v2013 = vpack.c.b16 %v1545, %v1533
    %v2014 = vpack.c.b16 %v1546, %v1534
    %v2015 = vpack.c.b16 %v1559, %v1547
    %v2016 = vpack.c.b16 %v1560, %v1548
    %v2017 = vpack.c.b16 %v1561, %v1549
    %v2018 = vpack.c.b16 %v1562, %v1550
    %v2019 = vpack.c.b16 %v1563, %v1551
    %v2020 = vpack.c.b16 %v1564, %v1552
    %v2021 = vpack.c.b16 %v1565, %v1553
    %v2022 = vpack.c.b16 %v1566, %v1554
    %v2023 = vpack.c.b16 %v1567, %v1555
    %v2024 = vpack.c.b16 %v1568, %v1556
    %v2025 = vpack.c.b16 %v1569, %v1557
    %v2026 = vpack.c.b16 %v1570, %v1558
    %v2027 = vpack.c.b16 %v1583, %v1571
    %v2028 = vpack.c.b16 %v1584, %v1572
    %v2029 = vpack.c.b16 %v1585, %v1573
    %v2030 = vpack.c.b16 %v1586, %v1574
    %v2031 = vpack.c.b16 %v1587, %v1575
    %v2032 = vpack.c.b16 %v1588, %v1576
    %v2033 = vpack.c.b16 %v1589, %v1577
    %v2034 = vpack.c.b16 %v1590, %v1578
    %v2035 = vpack.c.b16 %v1591, %v1579
    %v2036 = vpack.c.b16 %v1592, %v1580
    %v2037 = vpack.c.b16 %v1593, %v1581
    %v2038 = vpack.c.b16 %v1594, %v1582
    %v2039 = vpack.c.b16 %v1607, %v1595
    %v2040 = vpack.c.b16 %v1608, %v1596
    %v2041 = vpack.c.b16 %v1609, %v1597
    %v2042 = vpack.c.b16 %v1610, %v1598
    %v2043 = vpack.c.b16 %v1611, %v1599
    %v2044 = vpack.c.b16 %v1612, %v1600
    %v2045 = vpack.c.b16 %v1613, %v1601
    %v2046 = vpack.c.b16 %v1614, %v1602
    %v2047 = vpack.c.b16 %v1615, %v1603
    %v2048 = vpack.c.b16 %v1616, %v1604
    %v2049 = vpack.c.b16 %v1617, %v1605
    %v2050 = vpack.c.b16 %v1618, %v1606
    %v2051 = vpack.c.b16 %v1631, %v1619
    %v2052 = vpack.c.b16 %v1632, %v1620
    %v2053 = vpack.c.b16 %v1633, %v1621
    %v2054 = vpack.c.b16 %v1634, %v1622
    %v2055 = vpack.c.b16 %v1635, %v1623
    %v2056 = vpack.c.b16 %v1636, %v1624
    %v2057 = vpack.c.b16 %v1637, %v1625
    %v2058 = vpack.c.b16 %v1638, %v1626
    %v2059 = vpack.c.b16 %v1639, %v1627
    %v2060 = vpack.c.b16 %v1640, %v1628
    %v2061 = vpack.c.b16 %v1641, %v1629
    %v2062 = vpack.c.b16 %v1642, %v1630
    %v2063 = vpack.c.b16 %v1655, %v1643
    %v2064 = vpack.c.b16 %v1656, %v1644
    %v2065 = vpack.c.b16 %v1657, %v1645
    %v2066 = vpack.c.b16 %v1658, %v1646
    %v2067 = vpack.c.b16 %v1659, %v1647
    %v2068 = vpack.c.b16 %v1660, %v1648
    %v2069 = vpack.c.b16 %v1661, %v1649
    %v2070 = vpack.c.b16 %v1662, %v1650
    %v2071 = vpack.c.b16 %v1663, %v1651
    %v2072 = vpack.c.b16 %v1664, %v1652
    %v2073 = vpack.c.b16 %v1665, %v1653
    %v2074 = vpack.c.b16 %v1666, %v1654
    %v2075 = vpack.c.b16 %v1679, %v1667
    %v2076 = vpack.c.b16 %v1680, %v1668
    %v2077 = vpack.c.b16 %v1681, %v1669
    %v2078 = vpack.c.b16 %v1682, %v1670
    %v2079 = vpack.c.b16 %v1683, %v1671
    %v2080 = vpack.c.b16 %v1684, %v1672
    %v2081 = vpack.c.b16 %v1685, %v1673
    %v2082 = vpack.c.b16 %v1686, %v1674
    %v2083 = vpack.c.b16 %v1687, %v1675
    %v2084 = vpack.c.b16 %v1688, %v1676
    %v2085 = vpack.c.b16 %v1689, %v1677
    %v2086 = vpack.c.b16 %v1690, %v1678
    %v2087 = vpack.c.b16 %v1703, %v1691
    %v2088 = vpack.c.b16 %v1704, %v1692
    %v2089 = vpack.c.b16 %v1705, %v1693
    %v2090 = vpack.c.b16 %v1706, %v1694
    %v2091 = vpack.c.b16 %v1707, %v1695
    %v2092 = vpack.c.b16 %v1708, %v1696
    %v2093 = vpack.c.b16 %v1709, %v1697
    %v2094 = vpack.c.b16 %v1710, %v1698
    %v2095 = vpack.c.b16 %v1711, %v1699
    %v2096 = vpack.c.b16 %v1712, %v1700
    %v2097 = vpack.c.b16 %v1713, %v1701
    %v2098 = vpack.c.b16 %v1714, %v1702
    %2483 = vmatprep.subr.bf16.mxu0 %v1716
    %2484 = vmatpush1.bf16.msra.mxu0 %v1715
    %2485 = vmatprep.subr.bf16.mxu0 %v1728
    %2486 = vmatpush1.bf16.msra.mxu0 %v1727
    %2487 = vmatprep.subr.bf16.mxu0 %v1740
    %2488 = vmatpush1.bf16.msra.mxu0 %v1739
    %2489 = vmatprep.subr.bf16.mxu0 %v1752
    %2490 = vmatpush1.bf16.msra.mxu0 %v1751
    %2491 = vmatprep.subr.bf16.mxu0 %v1764
    %2492 = vmatpush1.bf16.msra.mxu0 %v1763
    %2493 = vmatprep.subr.bf16.mxu0 %v1776
    %2494 = vmatpush1.bf16.msra.mxu0 %v1775
    %2495 = vmatprep.subr.bf16.mxu0 %v1788
    %2496 = vmatpush1.bf16.msra.mxu0 %v1787
    %2497 = vmatprep.subr.bf16.mxu0 %v1800
    %2498 = vmatpush1.bf16.msra.mxu0 %v1799
    %2499 = vmatprep.subr.bf16.mxu0 %v1812
    %2500 = vmatpush1.bf16.msra.mxu0 %v1811
    %2501 = vmatprep.subr.bf16.mxu0 %v1824
    %2502 = vmatpush1.bf16.msra.mxu0 %v1823
    %2503 = vmatprep.subr.bf16.mxu0 %v1836
    %2504 = vmatpush1.bf16.msra.mxu0 %v1835
    %2505 = vmatprep.subr.bf16.mxu0 %v1848
    %2506 = vmatpush1.bf16.msra.mxu0 %v1847
    %2507 = vmatprep.subr.bf16.mxu0 %v1860
    %2508 = vmatpush1.bf16.msra.mxu0 %v1859
    %2509 = vmatprep.subr.bf16.mxu0 %v1872
    %2510 = vmatpush1.bf16.msra.mxu0 %v1871
    %2511 = vmatprep.subr.bf16.mxu0 %v1884
    %2512 = vmatpush1.bf16.msra.mxu0 %v1883
    %2513 = vmatprep.subr.bf16.mxu0 %v1896
    %2514 = vmatpush1.bf16.msra.mxu0 %v1895
    %2515 = vmatprep.mubr.bf16.mxu0 %v556
    %2516 = vmatmul.mubr.bf16.gmra.mrb[0].mxu0 %v555
    %v2517 = vpop.f32.mrb[0].mxu0
    %v2518 = vadd.f32 %v492, %v2517
    %v2519 = vpop.f32.mrb[0].mxu0
    %v2520 = vadd.f32 %v496, %v2519
    %v2521 = vpop.f32.mrb[0].mxu0
    %v2522 = vpop.f32.mrb[0].mxu0
    %2523 = vdwg.mxu0
    %2524 = vmatprep.subr.bf16.mxu0 %v1908
    %2525 = vmatpush1.bf16.msra.mxu0 %v1907
    %2526 = vmatprep.subr.bf16.mxu0 %v1920
    %2527 = vmatpush1.bf16.msra.mxu0 %v1919
    %2528 = vmatprep.subr.bf16.mxu0 %v1932
    %2529 = vmatpush1.bf16.msra.mxu0 %v1931
    %2530 = vmatprep.subr.bf16.mxu0 %v1944
    %2531 = vmatpush1.bf16.msra.mxu0 %v1943
    %2532 = vmatprep.subr.bf16.mxu0 %v1956
    %2533 = vmatpush1.bf16.msra.mxu0 %v1955
    %2534 = vmatprep.subr.bf16.mxu0 %v1968
    %2535 = vmatpush1.bf16.msra.mxu0 %v1967
    %2536 = vmatprep.subr.bf16.mxu0 %v1980
    %2537 = vmatpush1.bf16.msra.mxu0 %v1979
    %2538 = vmatprep.subr.bf16.mxu0 %v1992
    %2539 = vmatpush1.bf16.msra.mxu0 %v1991
    %2540 = vmatprep.subr.bf16.mxu0 %v2004
    %2541 = vmatpush1.bf16.msra.mxu0 %v2003
    %2542 = vmatprep.subr.bf16.mxu0 %v2016
    %2543 = vmatpush1.bf16.msra.mxu0 %v2015
    %2544 = vmatprep.subr.bf16.mxu0 %v2028
    %2545 = vmatpush1.bf16.msra.mxu0 %v2027
    %2546 = vmatprep.subr.bf16.mxu0 %v2040
    %2547 = vmatpush1.bf16.msra.mxu0 %v2039
    %2548 = vmatprep.subr.bf16.mxu0 %v2052
    %2549 = vmatpush1.bf16.msra.mxu0 %v2051
    %2550 = vmatprep.subr.bf16.mxu0 %v2064
    %2551 = vmatpush1.bf16.msra.mxu0 %v2063
    %2552 = vmatprep.subr.bf16.mxu0 %v2076
    %2553 = vmatpush1.bf16.msra.mxu0 %v2075
    %2554 = vmatprep.subr.bf16.mxu0 %v2088
    %2555 = vmatpush1.bf16.msra.mxu0 %v2087
    %2556 = vmatprep.mubr.bf16.mxu0 %v558
    %2557 = vmatmul.mubr.bf16.gmra.mrb[0].mxu0 %v557
    %v2558 = vpop.f32.mrb[0].mxu0
    %v2559 = vadd.f32 %v2518, %v2558
    %v2560 = vpop.f32.mrb[0].mxu0
    %v2561 = vadd.f32 %v2520, %v2560
    %v2562 = vpop.f32.mrb[0].mxu0
    %v2563 = vpop.f32.mrb[0].mxu0
    %2564 = vdwg.mxu0
    %2565 = vmatprep.subr.bf16.mxu0 %v1718
    %2566 = vmatpush1.bf16.msra.mxu0 %v1717
    %2567 = vmatprep.subr.bf16.mxu0 %v1730
    %2568 = vmatpush1.bf16.msra.mxu0 %v1729
    %2569 = vmatprep.subr.bf16.mxu0 %v1742
    %2570 = vmatpush1.bf16.msra.mxu0 %v1741
    %2571 = vmatprep.subr.bf16.mxu0 %v1754
    %2572 = vmatpush1.bf16.msra.mxu0 %v1753
    %2573 = vmatprep.subr.bf16.mxu0 %v1766
    %2574 = vmatpush1.bf16.msra.mxu0 %v1765
    %2575 = vmatprep.subr.bf16.mxu0 %v1778
    %2576 = vmatpush1.bf16.msra.mxu0 %v1777
    %2577 = vmatprep.subr.bf16.mxu0 %v1790
    %2578 = vmatpush1.bf16.msra.mxu0 %v1789
    %2579 = vmatprep.subr.bf16.mxu0 %v1802
    %2580 = vmatpush1.bf16.msra.mxu0 %v1801
    %2581 = vmatprep.subr.bf16.mxu0 %v1814
    %2582 = vmatpush1.bf16.msra.mxu0 %v1813
    %2583 = vmatprep.subr.bf16.mxu0 %v1826
    %2584 = vmatpush1.bf16.msra.mxu0 %v1825
    %2585 = vmatprep.subr.bf16.mxu0 %v1838
    %2586 = vmatpush1.bf16.msra.mxu0 %v1837
    %2587 = vmatprep.subr.bf16.mxu0 %v1850
    %2588 = vmatpush1.bf16.msra.mxu0 %v1849
    %2589 = vmatprep.subr.bf16.mxu0 %v1862
    %2590 = vmatpush1.bf16.msra.mxu0 %v1861
    %2591 = vmatprep.subr.bf16.mxu0 %v1874
    %2592 = vmatpush1.bf16.msra.mxu0 %v1873
    %2593 = vmatprep.subr.bf16.mxu0 %v1886
    %2594 = vmatpush1.bf16.msra.mxu0 %v1885
    %2595 = vmatprep.subr.bf16.mxu0 %v1898
    %2596 = vmatpush1.bf16.msra.mxu0 %v1897
    %2597 = vmatprep.mubr.bf16.mxu0 %v556
    %2598 = vmatmul.mubr.bf16.gmra.mrb[0].mxu0 %v555
    %v2599 = vpop.f32.mrb[0].mxu0
    %v2600 = vadd.f32 %v500, %v2599
    %v2601 = vpop.f32.mrb[0].mxu0
    %v2602 = vadd.f32 %v504, %v2601
    %v2603 = vpop.f32.mrb[0].mxu0
    %v2604 = vpop.f32.mrb[0].mxu0
    %2605 = vdwg.mxu0
    %2606 = vmatprep.subr.bf16.mxu0 %v1910
    %2607 = vmatpush1.bf16.msra.mxu0 %v1909
    %2608 = vmatprep.subr.bf16.mxu0 %v1922
    %2609 = vmatpush1.bf16.msra.mxu0 %v1921
    %2610 = vmatprep.subr.bf16.mxu0 %v1934
    %2611 = vmatpush1.bf16.msra.mxu0 %v1933
    %2612 = vmatprep.subr.bf16.mxu0 %v1946
    %2613 = vmatpush1.bf16.msra.mxu0 %v1945
    %2614 = vmatprep.subr.bf16.mxu0 %v1958
    %2615 = vmatpush1.bf16.msra.mxu0 %v1957
    %2616 = vmatprep.subr.bf16.mxu0 %v1970
    %2617 = vmatpush1.bf16.msra.mxu0 %v1969
    %2618 = vmatprep.subr.bf16.mxu0 %v1982
    %2619 = vmatpush1.bf16.msra.mxu0 %v1981
    %2620 = vmatprep.subr.bf16.mxu0 %v1994
    %2621 = vmatpush1.bf16.msra.mxu0 %v1993
    %2622 = vmatprep.subr.bf16.mxu0 %v2006
    %2623 = vmatpush1.bf16.msra.mxu0 %v2005
    %2624 = vmatprep.subr.bf16.mxu0 %v2018
    %2625 = vmatpush1.bf16.msra.mxu0 %v2017
    %2626 = vmatprep.subr.bf16.mxu0 %v2030
    %2627 = vmatpush1.bf16.msra.mxu0 %v2029
    %2628 = vmatprep.subr.bf16.mxu0 %v2042
    %2629 = vmatpush1.bf16.msra.mxu0 %v2041
    %2630 = vmatprep.subr.bf16.mxu0 %v2054
    %2631 = vmatpush1.bf16.msra.mxu0 %v2053
    %2632 = vmatprep.subr.bf16.mxu0 %v2066
    %2633 = vmatpush1.bf16.msra.mxu0 %v2065
    %2634 = vmatprep.subr.bf16.mxu0 %v2078
    %2635 = vmatpush1.bf16.msra.mxu0 %v2077
    %2636 = vmatprep.subr.bf16.mxu0 %v2090
    %2637 = vmatpush1.bf16.msra.mxu0 %v2089
    %2638 = vmatprep.mubr.bf16.mxu0 %v558
    %2639 = vmatmul.mubr.bf16.gmra.mrb[0].mxu0 %v557
    %v2640 = vpop.f32.mrb[0].mxu0
    %v2641 = vadd.f32 %v2600, %v2640
    %v2642 = vpop.f32.mrb[0].mxu0
    %v2643 = vadd.f32 %v2602, %v2642
    %v2644 = vpop.f32.mrb[0].mxu0
    %v2645 = vpop.f32.mrb[0].mxu0
    %2646 = vdwg.mxu0
    %2647 = vmatprep.subr.bf16.mxu0 %v1720
    %2648 = vmatpush1.bf16.msra.mxu0 %v1719
    %2649 = vmatprep.subr.bf16.mxu0 %v1732
    %2650 = vmatpush1.bf16.msra.mxu0 %v1731
    %2651 = vmatprep.subr.bf16.mxu0 %v1744
    %2652 = vmatpush1.bf16.msra.mxu0 %v1743
    %2653 = vmatprep.subr.bf16.mxu0 %v1756
    %2654 = vmatpush1.bf16.msra.mxu0 %v1755
    %2655 = vmatprep.subr.bf16.mxu0 %v1768
    %2656 = vmatpush1.bf16.msra.mxu0 %v1767
    %2657 = vmatprep.subr.bf16.mxu0 %v1780
    %2658 = vmatpush1.bf16.msra.mxu0 %v1779
    %2659 = vmatprep.subr.bf16.mxu0 %v1792
    %2660 = vmatpush1.bf16.msra.mxu0 %v1791
    %2661 = vmatprep.subr.bf16.mxu0 %v1804
    %2662 = vmatpush1.bf16.msra.mxu0 %v1803
    %2663 = vmatprep.subr.bf16.mxu0 %v1816
    %2664 = vmatpush1.bf16.msra.mxu0 %v1815
    %2665 = vmatprep.subr.bf16.mxu0 %v1828
    %2666 = vmatpush1.bf16.msra.mxu0 %v1827
    %2667 = vmatprep.subr.bf16.mxu0 %v1840
    %2668 = vmatpush1.bf16.msra.mxu0 %v1839
    %2669 = vmatprep.subr.bf16.mxu0 %v1852
    %2670 = vmatpush1.bf16.msra.mxu0 %v1851
    %2671 = vmatprep.subr.bf16.mxu0 %v1864
    %2672 = vmatpush1.bf16.msra.mxu0 %v1863
    %2673 = vmatprep.subr.bf16.mxu0 %v1876
    %2674 = vmatpush1.bf16.msra.mxu0 %v1875
    %2675 = vmatprep.subr.bf16.mxu0 %v1888
    %2676 = vmatpush1.bf16.msra.mxu0 %v1887
    %2677 = vmatprep.subr.bf16.mxu0 %v1900
    %2678 = vmatpush1.bf16.msra.mxu0 %v1899
    %2679 = vmatprep.mubr.bf16.mxu0 %v556
    %2680 = vmatmul.mubr.bf16.gmra.mrb[0].mxu0 %v555
    %v2681 = vpop.f32.mrb[0].mxu0
    %v2682 = vadd.f32 %v508, %v2681
    %v2683 = vpop.f32.mrb[0].mxu0
    %v2684 = vadd.f32 %v512, %v2683
    %v2685 = vpop.f32.mrb[0].mxu0
    %v2686 = vpop.f32.mrb[0].mxu0
    %2687 = vdwg.mxu0
    %2688 = vmatprep.subr.bf16.mxu0 %v1912
    %2689 = vmatpush1.bf16.msra.mxu0 %v1911
    %2690 = vmatprep.subr.bf16.mxu0 %v1924
    %2691 = vmatpush1.bf16.msra.mxu0 %v1923
    %2692 = vmatprep.subr.bf16.mxu0 %v1936
    %2693 = vmatpush1.bf16.msra.mxu0 %v1935
    %2694 = vmatprep.subr.bf16.mxu0 %v1948
    %2695 = vmatpush1.bf16.msra.mxu0 %v1947
    %2696 = vmatprep.subr.bf16.mxu0 %v1960
    %2697 = vmatpush1.bf16.msra.mxu0 %v1959
    %2698 = vmatprep.subr.bf16.mxu0 %v1972
    %2699 = vmatpush1.bf16.msra.mxu0 %v1971
    %2700 = vmatprep.subr.bf16.mxu0 %v1984
    %2701 = vmatpush1.bf16.msra.mxu0 %v1983
    %2702 = vmatprep.subr.bf16.mxu0 %v1996
    %2703 = vmatpush1.bf16.msra.mxu0 %v1995
    %2704 = vmatprep.subr.bf16.mxu0 %v2008
    %2705 = vmatpush1.bf16.msra.mxu0 %v2007
    %2706 = vmatprep.subr.bf16.mxu0 %v2020
    %2707 = vmatpush1.bf16.msra.mxu0 %v2019
    %2708 = vmatprep.subr.bf16.mxu0 %v2032
    %2709 = vmatpush1.bf16.msra.mxu0 %v2031
    %2710 = vmatprep.subr.bf16.mxu0 %v2044
    %2711 = vmatpush1.bf16.msra.mxu0 %v2043
    %2712 = vmatprep.subr.bf16.mxu0 %v2056
    %2713 = vmatpush1.bf16.msra.mxu0 %v2055
    %2714 = vmatprep.subr.bf16.mxu0 %v2068
    %2715 = vmatpush1.bf16.msra.mxu0 %v2067
    %2716 = vmatprep.subr.bf16.mxu0 %v2080
    %2717 = vmatpush1.bf16.msra.mxu0 %v2079
    %2718 = vmatprep.subr.bf16.mxu0 %v2092
    %2719 = vmatpush1.bf16.msra.mxu0 %v2091
    %2720 = vmatprep.mubr.bf16.mxu0 %v558
    %2721 = vmatmul.mubr.bf16.gmra.mrb[0].mxu0 %v557
    %v2722 = vpop.f32.mrb[0].mxu0
    %v2723 = vadd.f32 %v2682, %v2722
    %v2724 = vpop.f32.mrb[0].mxu0
    %v2725 = vadd.f32 %v2684, %v2724
    %v2726 = vpop.f32.mrb[0].mxu0
    %v2727 = vpop.f32.mrb[0].mxu0
    %2728 = vdwg.mxu0
    %2729 = vmatprep.subr.bf16.mxu0 %v1722
    %2730 = vmatpush1.bf16.msra.mxu0 %v1721
    %2731 = vmatprep.subr.bf16.mxu0 %v1734
    %2732 = vmatpush1.bf16.msra.mxu0 %v1733
    %2733 = vmatprep.subr.bf16.mxu0 %v1746
    %2734 = vmatpush1.bf16.msra.mxu0 %v1745
    %2735 = vmatprep.subr.bf16.mxu0 %v1758
    %2736 = vmatpush1.bf16.msra.mxu0 %v1757
    %2737 = vmatprep.subr.bf16.mxu0 %v1770
    %2738 = vmatpush1.bf16.msra.mxu0 %v1769
    %2739 = vmatprep.subr.bf16.mxu0 %v1782
    %2740 = vmatpush1.bf16.msra.mxu0 %v1781
    %2741 = vmatprep.subr.bf16.mxu0 %v1794
    %2742 = vmatpush1.bf16.msra.mxu0 %v1793
    %2743 = vmatprep.subr.bf16.mxu0 %v1806
    %2744 = vmatpush1.bf16.msra.mxu0 %v1805
    %2745 = vmatprep.subr.bf16.mxu0 %v1818
    %2746 = vmatpush1.bf16.msra.mxu0 %v1817
    %2747 = vmatprep.subr.bf16.mxu0 %v1830
    %2748 = vmatpush1.bf16.msra.mxu0 %v1829
    %2749 = vmatprep.subr.bf16.mxu0 %v1842
    %2750 = vmatpush1.bf16.msra.mxu0 %v1841
    %2751 = vmatprep.subr.bf16.mxu0 %v1854
    %2752 = vmatpush1.bf16.msra.mxu0 %v1853
    %2753 = vmatprep.subr.bf16.mxu0 %v1866
    %2754 = vmatpush1.bf16.msra.mxu0 %v1865
    %2755 = vmatprep.subr.bf16.mxu0 %v1878
    %2756 = vmatpush1.bf16.msra.mxu0 %v1877
    %2757 = vmatprep.subr.bf16.mxu0 %v1890
    %2758 = vmatpush1.bf16.msra.mxu0 %v1889
    %2759 = vmatprep.subr.bf16.mxu0 %v1902
    %2760 = vmatpush1.bf16.msra.mxu0 %v1901
    %2761 = vmatprep.mubr.bf16.mxu0 %v556
    %2762 = vmatmul.mubr.bf16.gmra.mrb[0].mxu0 %v555
    %v2763 = vpop.f32.mrb[0].mxu0
    %v2764 = vadd.f32 %v516, %v2763
    %v2765 = vpop.f32.mrb[0].mxu0
    %v2766 = vadd.f32 %v520, %v2765
    %v2767 = vpop.f32.mrb[0].mxu0
    %v2768 = vpop.f32.mrb[0].mxu0
    %2769 = vdwg.mxu0
    %2770 = vmatprep.subr.bf16.mxu0 %v1914
    %2771 = vmatpush1.bf16.msra.mxu0 %v1913
    %2772 = vmatprep.subr.bf16.mxu0 %v1926
    %2773 = vmatpush1.bf16.msra.mxu0 %v1925
    %2774 = vmatprep.subr.bf16.mxu0 %v1938
    %2775 = vmatpush1.bf16.msra.mxu0 %v1937
    %2776 = vmatprep.subr.bf16.mxu0 %v1950
    %2777 = vmatpush1.bf16.msra.mxu0 %v1949
    %2778 = vmatprep.subr.bf16.mxu0 %v1962
    %2779 = vmatpush1.bf16.msra.mxu0 %v1961
    %2780 = vmatprep.subr.bf16.mxu0 %v1974
    %2781 = vmatpush1.bf16.msra.mxu0 %v1973
    %2782 = vmatprep.subr.bf16.mxu0 %v1986
    %2783 = vmatpush1.bf16.msra.mxu0 %v1985
    %2784 = vmatprep.subr.bf16.mxu0 %v1998
    %2785 = vmatpush1.bf16.msra.mxu0 %v1997
    %2786 = vmatprep.subr.bf16.mxu0 %v2010
    %2787 = vmatpush1.bf16.msra.mxu0 %v2009
    %2788 = vmatprep.subr.bf16.mxu0 %v2022
    %2789 = vmatpush1.bf16.msra.mxu0 %v2021
    %2790 = vmatprep.subr.bf16.mxu0 %v2034
    %2791 = vmatpush1.bf16.msra.mxu0 %v2033
    %2792 = vmatprep.subr.bf16.mxu0 %v2046
    %2793 = vmatpush1.bf16.msra.mxu0 %v2045
    %2794 = vmatprep.subr.bf16.mxu0 %v2058
    %2795 = vmatpush1.bf16.msra.mxu0 %v2057
    %2796 = vmatprep.subr.bf16.mxu0 %v2070
    %2797 = vmatpush1.bf16.msra.mxu0 %v2069
    %2798 = vmatprep.subr.bf16.mxu0 %v2082
    %2799 = vmatpush1.bf16.msra.mxu0 %v2081
    %2800 = vmatprep.subr.bf16.mxu0 %v2094
    %2801 = vmatpush1.bf16.msra.mxu0 %v2093
    %2802 = vmatprep.mubr.bf16.mxu0 %v558
    %2803 = vmatmul.mubr.bf16.gmra.mrb[0].mxu0 %v557
    %v2804 = vpop.f32.mrb[0].mxu0
    %v2805 = vadd.f32 %v2764, %v2804
    %v2806 = vpop.f32.mrb[0].mxu0
    %v2807 = vadd.f32 %v2766, %v2806
    %v2808 = vpop.f32.mrb[0].mxu0
    %v2809 = vpop.f32.mrb[0].mxu0
    %2810 = vdwg.mxu0
    %2811 = vmatprep.subr.bf16.mxu0 %v1724
    %2812 = vmatpush1.bf16.msra.mxu0 %v1723
    %2813 = vmatprep.subr.bf16.mxu0 %v1736
    %2814 = vmatpush1.bf16.msra.mxu0 %v1735
    %2815 = vmatprep.subr.bf16.mxu0 %v1748
    %2816 = vmatpush1.bf16.msra.mxu0 %v1747
    %2817 = vmatprep.subr.bf16.mxu0 %v1760
    %2818 = vmatpush1.bf16.msra.mxu0 %v1759
    %2819 = vmatprep.subr.bf16.mxu0 %v1772
    %2820 = vmatpush1.bf16.msra.mxu0 %v1771
    %2821 = vmatprep.subr.bf16.mxu0 %v1784
    %2822 = vmatpush1.bf16.msra.mxu0 %v1783
    %2823 = vmatprep.subr.bf16.mxu0 %v1796
    %2824 = vmatpush1.bf16.msra.mxu0 %v1795
    %2825 = vmatprep.subr.bf16.mxu0 %v1808
    %2826 = vmatpush1.bf16.msra.mxu0 %v1807
    %2827 = vmatprep.subr.bf16.mxu0 %v1820
    %2828 = vmatpush1.bf16.msra.mxu0 %v1819
    %2829 = vmatprep.subr.bf16.mxu0 %v1832
    %2830 = vmatpush1.bf16.msra.mxu0 %v1831
    %2831 = vmatprep.subr.bf16.mxu0 %v1844
    %2832 = vmatpush1.bf16.msra.mxu0 %v1843
    %2833 = vmatprep.subr.bf16.mxu0 %v1856
    %2834 = vmatpush1.bf16.msra.mxu0 %v1855
    %2835 = vmatprep.subr.bf16.mxu0 %v1868
    %2836 = vmatpush1.bf16.msra.mxu0 %v1867
    %2837 = vmatprep.subr.bf16.mxu0 %v1880
    %2838 = vmatpush1.bf16.msra.mxu0 %v1879
    %2839 = vmatprep.subr.bf16.mxu0 %v1892
    %2840 = vmatpush1.bf16.msra.mxu0 %v1891
    %2841 = vmatprep.subr.bf16.mxu0 %v1904
    %2842 = vmatpush1.bf16.msra.mxu0 %v1903
    %2843 = vmatprep.mubr.bf16.mxu0 %v556
    %2844 = vmatmul.mubr.bf16.gmra.mrb[0].mxu0 %v555
    %v2845 = vpop.f32.mrb[0].mxu0
    %v2846 = vadd.f32 %v524, %v2845
    %v2847 = vpop.f32.mrb[0].mxu0
    %v2848 = vadd.f32 %v528, %v2847
    %v2849 = vpop.f32.mrb[0].mxu0
    %v2850 = vpop.f32.mrb[0].mxu0
    %2851 = vdwg.mxu0
    %2852 = vmatprep.subr.bf16.mxu0 %v1916
    %2853 = vmatpush1.bf16.msra.mxu0 %v1915
    %2854 = vmatprep.subr.bf16.mxu0 %v1928
    %2855 = vmatpush1.bf16.msra.mxu0 %v1927
    %2856 = vmatprep.subr.bf16.mxu0 %v1940
    %2857 = vmatpush1.bf16.msra.mxu0 %v1939
    %2858 = vmatprep.subr.bf16.mxu0 %v1952
    %2859 = vmatpush1.bf16.msra.mxu0 %v1951
    %2860 = vmatprep.subr.bf16.mxu0 %v1964
    %2861 = vmatpush1.bf16.msra.mxu0 %v1963
    %2862 = vmatprep.subr.bf16.mxu0 %v1976
    %2863 = vmatpush1.bf16.msra.mxu0 %v1975
    %2864 = vmatprep.subr.bf16.mxu0 %v1988
    %2865 = vmatpush1.bf16.msra.mxu0 %v1987
    %2866 = vmatprep.subr.bf16.mxu0 %v2000
    %2867 = vmatpush1.bf16.msra.mxu0 %v1999
    %2868 = vmatprep.subr.bf16.mxu0 %v2012
    %2869 = vmatpush1.bf16.msra.mxu0 %v2011
    %2870 = vmatprep.subr.bf16.mxu0 %v2024
    %2871 = vmatpush1.bf16.msra.mxu0 %v2023
    %2872 = vmatprep.subr.bf16.mxu0 %v2036
    %2873 = vmatpush1.bf16.msra.mxu0 %v2035
    %2874 = vmatprep.subr.bf16.mxu0 %v2048
    %2875 = vmatpush1.bf16.msra.mxu0 %v2047
    %2876 = vmatprep.subr.bf16.mxu0 %v2060
    %2877 = vmatpush1.bf16.msra.mxu0 %v2059
    %2878 = vmatprep.subr.bf16.mxu0 %v2072
    %2879 = vmatpush1.bf16.msra.mxu0 %v2071
    %2880 = vmatprep.subr.bf16.mxu0 %v2084
    %2881 = vmatpush1.bf16.msra.mxu0 %v2083
    %2882 = vmatprep.subr.bf16.mxu0 %v2096
    %2883 = vmatpush1.bf16.msra.mxu0 %v2095
    %2884 = vmatprep.mubr.bf16.mxu0 %v558
    %2885 = vmatmul.mubr.bf16.gmra.mrb[0].mxu0 %v557
    %v2886 = vpop.f32.mrb[0].mxu0
    %v2887 = vadd.f32 %v2846, %v2886
    %v2888 = vpop.f32.mrb[0].mxu0
    %v2889 = vadd.f32 %v2848, %v2888
    %v2890 = vpop.f32.mrb[0].mxu0
    %v2891 = vpop.f32.mrb[0].mxu0
    %2892 = vdwg.mxu0
    %2893 = vmatprep.subr.bf16.mxu0 %v1726
    %2894 = vmatpush1.bf16.msra.mxu0 %v1725
    %2895 = vmatprep.subr.bf16.mxu0 %v1738
    %2896 = vmatpush1.bf16.msra.mxu0 %v1737
    %2897 = vmatprep.subr.bf16.mxu0 %v1750
    %2898 = vmatpush1.bf16.msra.mxu0 %v1749
    %2899 = vmatprep.subr.bf16.mxu0 %v1762
    %2900 = vmatpush1.bf16.msra.mxu0 %v1761
    %2901 = vmatprep.subr.bf16.mxu0 %v1774
    %2902 = vmatpush1.bf16.msra.mxu0 %v1773
    %2903 = vmatprep.subr.bf16.mxu0 %v1786
    %2904 = vmatpush1.bf16.msra.mxu0 %v1785
    %2905 = vmatprep.subr.bf16.mxu0 %v1798
    %2906 = vmatpush1.bf16.msra.mxu0 %v1797
    %2907 = vmatprep.subr.bf16.mxu0 %v1810
    %2908 = vmatpush1.bf16.msra.mxu0 %v1809
    %2909 = vmatprep.subr.bf16.mxu0 %v1822
    %2910 = vmatpush1.bf16.msra.mxu0 %v1821
    %2911 = vmatprep.subr.bf16.mxu0 %v1834
    %2912 = vmatpush1.bf16.msra.mxu0 %v1833
    %2913 = vmatprep.subr.bf16.mxu0 %v1846
    %2914 = vmatpush1.bf16.msra.mxu0 %v1845
    %2915 = vmatprep.subr.bf16.mxu0 %v1858
    %2916 = vmatpush1.bf16.msra.mxu0 %v1857
    %2917 = vmatprep.subr.bf16.mxu0 %v1870
    %2918 = vmatpush1.bf16.msra.mxu0 %v1869
    %2919 = vmatprep.subr.bf16.mxu0 %v1882
    %2920 = vmatpush1.bf16.msra.mxu0 %v1881
    %2921 = vmatprep.subr.bf16.mxu0 %v1894
    %2922 = vmatpush1.bf16.msra.mxu0 %v1893
    %2923 = vmatprep.subr.bf16.mxu0 %v1906
    %2924 = vmatpush1.bf16.msra.mxu0 %v1905
    %2925 = vmatprep.mubr.bf16.mxu0 %v556
    %2926 = vmatmul.mubr.bf16.gmra.mrb[0].mxu0 %v555
    %v2927 = vpop.f32.mrb[0].mxu0
    %v2928 = vadd.f32 %v532, %v2927
    %v2929 = vpop.f32.mrb[0].mxu0
    %v2930 = vadd.f32 %v536, %v2929
    %v2931 = vpop.f32.mrb[0].mxu0
    %v2932 = vpop.f32.mrb[0].mxu0
    %2933 = vdwg.mxu0
    %2934 = vmatprep.subr.bf16.mxu0 %v1918
    %2935 = vmatpush1.bf16.msra.mxu0 %v1917
    %2936 = vmatprep.subr.bf16.mxu0 %v1930
    %2937 = vmatpush1.bf16.msra.mxu0 %v1929
    %2938 = vmatprep.subr.bf16.mxu0 %v1942
    %2939 = vmatpush1.bf16.msra.mxu0 %v1941
    %2940 = vmatprep.subr.bf16.mxu0 %v1954
    %2941 = vmatpush1.bf16.msra.mxu0 %v1953
    %2942 = vmatprep.subr.bf16.mxu0 %v1966
    %2943 = vmatpush1.bf16.msra.mxu0 %v1965
    %2944 = vmatprep.subr.bf16.mxu0 %v1978
    %2945 = vmatpush1.bf16.msra.mxu0 %v1977
    %2946 = vmatprep.subr.bf16.mxu0 %v1990
    %2947 = vmatpush1.bf16.msra.mxu0 %v1989
    %2948 = vmatprep.subr.bf16.mxu0 %v2002
    %2949 = vmatpush1.bf16.msra.mxu0 %v2001
    %2950 = vmatprep.subr.bf16.mxu0 %v2014
    %2951 = vmatpush1.bf16.msra.mxu0 %v2013
    %2952 = vmatprep.subr.bf16.mxu0 %v2026
    %2953 = vmatpush1.bf16.msra.mxu0 %v2025
    %2954 = vmatprep.subr.bf16.mxu0 %v2038
    %2955 = vmatpush1.bf16.msra.mxu0 %v2037
    %2956 = vmatprep.subr.bf16.mxu0 %v2050
    %2957 = vmatpush1.bf16.msra.mxu0 %v2049
    %2958 = vmatprep.subr.bf16.mxu0 %v2062
    %2959 = vmatpush1.bf16.msra.mxu0 %v2061
    %2960 = vmatprep.subr.bf16.mxu0 %v2074
    %2961 = vmatpush1.bf16.msra.mxu0 %v2073
    %2962 = vmatprep.subr.bf16.mxu0 %v2086
    %2963 = vmatpush1.bf16.msra.mxu0 %v2085
    %2964 = vmatprep.subr.bf16.mxu0 %v2098
    %2965 = vmatpush1.bf16.msra.mxu0 %v2097
    %2966 = vmatprep.mubr.bf16.mxu0 %v558
    %2967 = vmatmul.mubr.bf16.gmra.mrb[0].mxu0 %v557
    %v2968 = vpop.f32.mrb[0].mxu0
    %v2969 = vadd.f32 %v2928, %v2968
    %v2970 = vpop.f32.mrb[0].mxu0
    %v2971 = vadd.f32 %v2930, %v2970
    %v2972 = vpop.f32.mrb[0].mxu0
    %v2973 = vpop.f32.mrb[0].mxu0
    %2974 = vdwg.mxu0
    %2976 = vrot.lane.b32.xlu0 %v2559, 64
    %v2977 = vpop.permute.xlu0 %2976
    %2980 = vrot.lane.b32.xlu0 %v2561, 64
    %v2981 = vpop.permute.xlu0 %2980
    %2984 = vrot.lane.b32.xlu0 %v2641, 64
    %v2985 = vpop.permute.xlu0 %2984
    %2988 = vrot.lane.b32.xlu0 %v2643, 64
    %v2989 = vpop.permute.xlu0 %2988
    %v2991 = vcombine.low %v2559, %v2561
    %v2992 = vcombine.high %v2559, %v2561
    %v2994 = vunpack.c.l.s4 1983009808
    %v2995 = vunpack.c.0.s8 %v2994
    %v2996 = vlaneseq
    %v2997 = vshrl.u32 %v2996, 7
    %v2998 = vsub.s32 %v2995, %v2997
    %v2999 = vrot.slane %v2991, %v2998
    %v3001 = vunpack.c.l.s4 1983009808
    %v3002 = vunpack.c.0.s8 %v3001
    %v3003 = vlaneseq
    %v3004 = vshrl.u32 %v3003, 7
    %v3005 = vsub.s32 %v3002, %v3004
    %v3006 = vrot.slane %v2992, %v3005
    %v3007 = vcombine.low %v2977, %v2981
    %v3008 = vcombine.high %v2977, %v2981
    %v3010 = vunpack.c.l.s4 1983009808
    %v3011 = vunpack.c.0.s8 %v3010
    %v3012 = vlaneseq
    %v3013 = vshrl.u32 %v3012, 7
    %v3014 = vsub.s32 %v3011, %v3013
    %v3015 = vrot.slane %v3007, %v3014
    %v3017 = vunpack.c.l.s4 1983009808
    %v3018 = vunpack.c.0.s8 %v3017
    %v3019 = vlaneseq
    %v3020 = vshrl.u32 %v3019, 7
    %v3021 = vsub.s32 %v3018, %v3020
    %v3022 = vrot.slane %v3008, %v3021
    %v3023 = vcombine.low %v2641, %v2643
    %v3024 = vcombine.high %v2641, %v2643
    %v3026 = vunpack.c.l.s4 1983009808
    %v3027 = vunpack.c.0.s8 %v3026
    %v3028 = vlaneseq
    %v3029 = vshrl.u32 %v3028, 7
    %v3030 = vsub.s32 %v3027, %v3029
    %v3031 = vrot.slane %v3023, %v3030
    %v3033 = vunpack.c.l.s4 1983009808
    %v3034 = vunpack.c.0.s8 %v3033
    %v3035 = vlaneseq
    %v3036 = vshrl.u32 %v3035, 7
    %v3037 = vsub.s32 %v3034, %v3036
    %v3038 = vrot.slane %v3024, %v3037
    %v3039 = vcombine.low %v2985, %v2989
    %v3040 = vcombine.high %v2985, %v2989
    %v3042 = vunpack.c.l.s4 1983009808
    %v3043 = vunpack.c.0.s8 %v3042
    %v3044 = vlaneseq
    %v3045 = vshrl.u32 %v3044, 7
    %v3046 = vsub.s32 %v3043, %v3045
    %v3047 = vrot.slane %v3039, %v3046
    %v3049 = vunpack.c.l.s4 1983009808
    %v3050 = vunpack.c.0.s8 %v3049
    %v3051 = vlaneseq
    %v3052 = vshrl.u32 %v3051, 7
    %v3053 = vsub.s32 %v3050, %v3052
    %v3054 = vrot.slane %v3040, %v3053
    %v3055 = vcombine.low %v2999, %v3015
    %v3056 = vcombine.high %v2999, %v3015
    %v3058 = vunpack.c.l.s4 1934713408
    %v3059 = vunpack.c.0.s8 %v3058
    %v3060 = vlaneseq
    %v3061 = vshrl.u32 %v3060, 7
    %v3062 = vsub.s32 %v3059, %v3061
    %v3063 = vrot.slane %v3055, %v3062
    %v3065 = vunpack.c.l.s4 1934713408
    %v3066 = vunpack.c.0.s8 %v3065
    %v3067 = vlaneseq
    %v3068 = vshrl.u32 %v3067, 7
    %v3069 = vsub.s32 %v3066, %v3068
    %v3070 = vrot.slane %v3056, %v3069
    %v3071 = vcombine.low %v3006, %v3022
    %v3072 = vcombine.high %v3006, %v3022
    %v3074 = vunpack.c.l.s4 1934713408
    %v3075 = vunpack.c.0.s8 %v3074
    %v3076 = vlaneseq
    %v3077 = vshrl.u32 %v3076, 7
    %v3078 = vsub.s32 %v3075, %v3077
    %v3079 = vrot.slane %v3071, %v3078
    %v3081 = vunpack.c.l.s4 1934713408
    %v3082 = vunpack.c.0.s8 %v3081
    %v3083 = vlaneseq
    %v3084 = vshrl.u32 %v3083, 7
    %v3085 = vsub.s32 %v3082, %v3084
    %v3086 = vrot.slane %v3072, %v3085
    %v3087 = vcombine.low %v3031, %v3047
    %v3088 = vcombine.high %v3031, %v3047
    %v3090 = vunpack.c.l.s4 1934713408
    %v3091 = vunpack.c.0.s8 %v3090
    %v3092 = vlaneseq
    %v3093 = vshrl.u32 %v3092, 7
    %v3094 = vsub.s32 %v3091, %v3093
    %v3095 = vrot.slane %v3087, %v3094
    %v3097 = vunpack.c.l.s4 1934713408
    %v3098 = vunpack.c.0.s8 %v3097
    %v3099 = vlaneseq
    %v3100 = vshrl.u32 %v3099, 7
    %v3101 = vsub.s32 %v3098, %v3100
    %v3102 = vrot.slane %v3088, %v3101
    %v3103 = vcombine.low %v3038, %v3054
    %v3104 = vcombine.high %v3038, %v3054
    %v3106 = vunpack.c.l.s4 1934713408
    %v3107 = vunpack.c.0.s8 %v3106
    %v3108 = vlaneseq
    %v3109 = vshrl.u32 %v3108, 7
    %v3110 = vsub.s32 %v3107, %v3109
    %v3111 = vrot.slane %v3103, %v3110
    %v3113 = vunpack.c.l.s4 1934713408
    %v3114 = vunpack.c.0.s8 %v3113
    %v3115 = vlaneseq
    %v3116 = vshrl.u32 %v3115, 7
    %v3117 = vsub.s32 %v3114, %v3116
    %v3118 = vrot.slane %v3104, %v3117
    %v3119 = vcombine.low %v3063, %v3095
    %v3120 = vcombine.high %v3063, %v3095
    %v3121 = vcombine.low %v3070, %v3102
    %v3122 = vcombine.high %v3070, %v3102
    %v3123 = vcombine.low %v3079, %v3111
    %v3124 = vcombine.high %v3079, %v3111
    %v3125 = vcombine.low %v3086, %v3118
    %v3126 = vcombine.high %v3086, %v3118
    %v3127 = vcombine.low %v3119, %v3121
    %v3128 = vcombine.high %v3119, %v3121
    %v3130 = vunpack.c.l.s4 1983009808
    %v3131 = vunpack.c.0.s8 %v3130
    %v3132 = vlaneseq
    %v3133 = vshrl.u32 %v3132, 7
    %v3134 = vsub.s32 %v3131, %v3133
    %v3135 = vrot.slane %v3127, %v3134
    %v3137 = vunpack.c.l.s4 1983009808
    %v3138 = vunpack.c.0.s8 %v3137
    %v3139 = vlaneseq
    %v3140 = vshrl.u32 %v3139, 7
    %v3141 = vsub.s32 %v3138, %v3140
    %v3142 = vrot.slane %v3128, %v3141
    %v3143 = vcombine.low %v3120, %v3122
    %v3144 = vcombine.high %v3120, %v3122
    %v3146 = vunpack.c.l.s4 1983009808
    %v3147 = vunpack.c.0.s8 %v3146
    %v3148 = vlaneseq
    %v3149 = vshrl.u32 %v3148, 7
    %v3150 = vsub.s32 %v3147, %v3149
    %v3151 = vrot.slane %v3143, %v3150
    %v3153 = vunpack.c.l.s4 1983009808
    %v3154 = vunpack.c.0.s8 %v3153
    %v3155 = vlaneseq
    %v3156 = vshrl.u32 %v3155, 7
    %v3157 = vsub.s32 %v3154, %v3156
    %v3158 = vrot.slane %v3144, %v3157
    %v3159 = vcombine.low %v3123, %v3125
    %v3160 = vcombine.high %v3123, %v3125
    %v3162 = vunpack.c.l.s4 1983009808
    %v3163 = vunpack.c.0.s8 %v3162
    %v3164 = vlaneseq
    %v3165 = vshrl.u32 %v3164, 7
    %v3166 = vsub.s32 %v3163, %v3165
    %v3167 = vrot.slane %v3159, %v3166
    %v3169 = vunpack.c.l.s4 1983009808
    %v3170 = vunpack.c.0.s8 %v3169
    %v3171 = vlaneseq
    %v3172 = vshrl.u32 %v3171, 7
    %v3173 = vsub.s32 %v3170, %v3172
    %v3174 = vrot.slane %v3160, %v3173
    %v3175 = vcombine.low %v3124, %v3126
    %v3176 = vcombine.high %v3124, %v3126
    %v3178 = vunpack.c.l.s4 1983009808
    %v3179 = vunpack.c.0.s8 %v3178
    %v3180 = vlaneseq
    %v3181 = vshrl.u32 %v3180, 7
    %v3182 = vsub.s32 %v3179, %v3181
    %v3183 = vrot.slane %v3175, %v3182
    %v3185 = vunpack.c.l.s4 1983009808
    %v3186 = vunpack.c.0.s8 %v3185
    %v3187 = vlaneseq
    %v3188 = vshrl.u32 %v3187, 7
    %v3189 = vsub.s32 %v3186, %v3188
    %v3190 = vrot.slane %v3176, %v3189
    %v3191 = vcombine.low %v3135, %v3151
    %v3192 = vcombine.high %v3135, %v3151
    %v3194 = vunpack.c.l.s4 1934713408
    %v3195 = vunpack.c.0.s8 %v3194
    %v3196 = vlaneseq
    %v3197 = vshrl.u32 %v3196, 7
    %v3198 = vsub.s32 %v3195, %v3197
    %v3199 = vrot.slane %v3191, %v3198
    %v3201 = vunpack.c.l.s4 1934713408
    %v3202 = vunpack.c.0.s8 %v3201
    %v3203 = vlaneseq
    %v3204 = vshrl.u32 %v3203, 7
    %v3205 = vsub.s32 %v3202, %v3204
    %v3206 = vrot.slane %v3192, %v3205
    %v3207 = vcombine.low %v3142, %v3158
    %v3208 = vcombine.high %v3142, %v3158
    %v3210 = vunpack.c.l.s4 1934713408
    %v3211 = vunpack.c.0.s8 %v3210
    %v3212 = vlaneseq
    %v3213 = vshrl.u32 %v3212, 7
    %v3214 = vsub.s32 %v3211, %v3213
    %v3215 = vrot.slane %v3207, %v3214
    %v3217 = vunpack.c.l.s4 1934713408
    %v3218 = vunpack.c.0.s8 %v3217
    %v3219 = vlaneseq
    %v3220 = vshrl.u32 %v3219, 7
    %v3221 = vsub.s32 %v3218, %v3220
    %v3222 = vrot.slane %v3208, %v3221
    %v3223 = vcombine.low %v3167, %v3183
    %v3224 = vcombine.high %v3167, %v3183
    %v3226 = vunpack.c.l.s4 1934713408
    %v3227 = vunpack.c.0.s8 %v3226
    %v3228 = vlaneseq
    %v3229 = vshrl.u32 %v3228, 7
    %v3230 = vsub.s32 %v3227, %v3229
    %v3231 = vrot.slane %v3223, %v3230
    %v3233 = vunpack.c.l.s4 1934713408
    %v3234 = vunpack.c.0.s8 %v3233
    %v3235 = vlaneseq
    %v3236 = vshrl.u32 %v3235, 7
    %v3237 = vsub.s32 %v3234, %v3236
    %v3238 = vrot.slane %v3224, %v3237
    %v3239 = vcombine.low %v3174, %v3190
    %v3240 = vcombine.high %v3174, %v3190
    %v3242 = vunpack.c.l.s4 1934713408
    %v3243 = vunpack.c.0.s8 %v3242
    %v3244 = vlaneseq
    %v3245 = vshrl.u32 %v3244, 7
    %v3246 = vsub.s32 %v3243, %v3245
    %v3247 = vrot.slane %v3239, %v3246
    %v3249 = vunpack.c.l.s4 1934713408
    %v3250 = vunpack.c.0.s8 %v3249
    %v3251 = vlaneseq
    %v3252 = vshrl.u32 %v3251, 7
    %v3253 = vsub.s32 %v3250, %v3252
    %v3254 = vrot.slane %v3240, %v3253
    %v3255 = vcombine.low %v3199, %v3231
    %v3256 = vcombine.high %v3199, %v3231
    %v3257 = vcombine.low %v3206, %v3238
    %v3258 = vcombine.high %v3206, %v3238
    %v3259 = vcombine.low %v3215, %v3247
    %v3260 = vcombine.high %v3215, %v3247
    %v3261 = vcombine.low %v3222, %v3254
    %v3262 = vcombine.high %v3222, %v3254
    %v3263 = vpack.c.bf16 %v3255, %v3255
    %v3264 = vpack.c.bf16 %v3256, %v3256
    %v3265 = vpack.c.bf16 %v3257, %v3257
    %v3266 = vpack.c.bf16 %v3258, %v3258
    %v3267 = vpack.c.bf16 %v3259, %v3259
    %v3268 = vpack.c.bf16 %v3260, %v3260
    %v3269 = vpack.c.bf16 %v3261, %v3261
    %v3270 = vpack.c.bf16 %v3262, %v3262
    %3272 = vrot.lane.b32.xlu0 %v2723, 64
    %v3273 = vpop.permute.xlu0 %3272
    %3276 = vrot.lane.b32.xlu0 %v2725, 64
    %v3277 = vpop.permute.xlu0 %3276
    %3280 = vrot.lane.b32.xlu0 %v2805, 64
    %v3281 = vpop.permute.xlu0 %3280
    %3284 = vrot.lane.b32.xlu0 %v2807, 64
    %v3285 = vpop.permute.xlu0 %3284
    %v3287 = vcombine.low %v2723, %v2725
    %v3288 = vcombine.high %v2723, %v2725
    %v3290 = vunpack.c.l.s4 1983009808
    %v3291 = vunpack.c.0.s8 %v3290
    %v3292 = vlaneseq
    %v3293 = vshrl.u32 %v3292, 7
    %v3294 = vsub.s32 %v3291, %v3293
    %v3295 = vrot.slane %v3287, %v3294
    %v3297 = vunpack.c.l.s4 1983009808
    %v3298 = vunpack.c.0.s8 %v3297
    %v3299 = vlaneseq
    %v3300 = vshrl.u32 %v3299, 7
    %v3301 = vsub.s32 %v3298, %v3300
    %v3302 = vrot.slane %v3288, %v3301
    %v3303 = vcombine.low %v3273, %v3277
    %v3304 = vcombine.high %v3273, %v3277
    %v3306 = vunpack.c.l.s4 1983009808
    %v3307 = vunpack.c.0.s8 %v3306
    %v3308 = vlaneseq
    %v3309 = vshrl.u32 %v3308, 7
    %v3310 = vsub.s32 %v3307, %v3309
    %v3311 = vrot.slane %v3303, %v3310
    %v3313 = vunpack.c.l.s4 1983009808
    %v3314 = vunpack.c.0.s8 %v3313
    %v3315 = vlaneseq
    %v3316 = vshrl.u32 %v3315, 7
    %v3317 = vsub.s32 %v3314, %v3316
    %v3318 = vrot.slane %v3304, %v3317
    %v3319 = vcombine.low %v2805, %v2807
    %v3320 = vcombine.high %v2805, %v2807
    %v3322 = vunpack.c.l.s4 1983009808
    %v3323 = vunpack.c.0.s8 %v3322
    %v3324 = vlaneseq
    %v3325 = vshrl.u32 %v3324, 7
    %v3326 = vsub.s32 %v3323, %v3325
    %v3327 = vrot.slane %v3319, %v3326
    %v3329 = vunpack.c.l.s4 1983009808
    %v3330 = vunpack.c.0.s8 %v3329
    %v3331 = vlaneseq
    %v3332 = vshrl.u32 %v3331, 7
    %v3333 = vsub.s32 %v3330, %v3332
    %v3334 = vrot.slane %v3320, %v3333
    %v3335 = vcombine.low %v3281, %v3285
    %v3336 = vcombine.high %v3281, %v3285
    %v3338 = vunpack.c.l.s4 1983009808
    %v3339 = vunpack.c.0.s8 %v3338
    %v3340 = vlaneseq
    %v3341 = vshrl.u32 %v3340, 7
    %v3342 = vsub.s32 %v3339, %v3341
    %v3343 = vrot.slane %v3335, %v3342
    %v3345 = vunpack.c.l.s4 1983009808
    %v3346 = vunpack.c.0.s8 %v3345
    %v3347 = vlaneseq
    %v3348 = vshrl.u32 %v3347, 7
    %v3349 = vsub.s32 %v3346, %v3348
    %v3350 = vrot.slane %v3336, %v3349
    %v3351 = vcombine.low %v3295, %v3311
    %v3352 = vcombine.high %v3295, %v3311
    %v3354 = vunpack.c.l.s4 1934713408
    %v3355 = vunpack.c.0.s8 %v3354
    %v3356 = vlaneseq
    %v3357 = vshrl.u32 %v3356, 7
    %v3358 = vsub.s32 %v3355, %v3357
    %v3359 = vrot.slane %v3351, %v3358
    %v3361 = vunpack.c.l.s4 1934713408
    %v3362 = vunpack.c.0.s8 %v3361
    %v3363 = vlaneseq
    %v3364 = vshrl.u32 %v3363, 7
    %v3365 = vsub.s32 %v3362, %v3364
    %v3366 = vrot.slane %v3352, %v3365
    %v3367 = vcombine.low %v3302, %v3318
    %v3368 = vcombine.high %v3302, %v3318
    %v3370 = vunpack.c.l.s4 1934713408
    %v3371 = vunpack.c.0.s8 %v3370
    %v3372 = vlaneseq
    %v3373 = vshrl.u32 %v3372, 7
    %v3374 = vsub.s32 %v3371, %v3373
    %v3375 = vrot.slane %v3367, %v3374
    %v3377 = vunpack.c.l.s4 1934713408
    %v3378 = vunpack.c.0.s8 %v3377
    %v3379 = vlaneseq
    %v3380 = vshrl.u32 %v3379, 7
    %v3381 = vsub.s32 %v3378, %v3380
    %v3382 = vrot.slane %v3368, %v3381
    %v3383 = vcombine.low %v3327, %v3343
    %v3384 = vcombine.high %v3327, %v3343
    %v3386 = vunpack.c.l.s4 1934713408
    %v3387 = vunpack.c.0.s8 %v3386
    %v3388 = vlaneseq
    %v3389 = vshrl.u32 %v3388, 7
    %v3390 = vsub.s32 %v3387, %v3389
    %v3391 = vrot.slane %v3383, %v3390
    %v3393 = vunpack.c.l.s4 1934713408
    %v3394 = vunpack.c.0.s8 %v3393
    %v3395 = vlaneseq
    %v3396 = vshrl.u32 %v3395, 7
    %v3397 = vsub.s32 %v3394, %v3396
    %v3398 = vrot.slane %v3384, %v3397
    %v3399 = vcombine.low %v3334, %v3350
    %v3400 = vcombine.high %v3334, %v3350
    %v3402 = vunpack.c.l.s4 1934713408
    %v3403 = vunpack.c.0.s8 %v3402
    %v3404 = vlaneseq
    %v3405 = vshrl.u32 %v3404, 7
    %v3406 = vsub.s32 %v3403, %v3405
    %v3407 = vrot.slane %v3399, %v3406
    %v3409 = vunpack.c.l.s4 1934713408
    %v3410 = vunpack.c.0.s8 %v3409
    %v3411 = vlaneseq
    %v3412 = vshrl.u32 %v3411, 7
    %v3413 = vsub.s32 %v3410, %v3412
    %v3414 = vrot.slane %v3400, %v3413
    %v3415 = vcombine.low %v3359, %v3391
    %v3416 = vcombine.high %v3359, %v3391
    %v3417 = vcombine.low %v3366, %v3398
    %v3418 = vcombine.high %v3366, %v3398
    %v3419 = vcombine.low %v3375, %v3407
    %v3420 = vcombine.high %v3375, %v3407
    %v3421 = vcombine.low %v3382, %v3414
    %v3422 = vcombine.high %v3382, %v3414
    %v3423 = vcombine.low %v3415, %v3417
    %v3424 = vcombine.high %v3415, %v3417
    %v3426 = vunpack.c.l.s4 1983009808
    %v3427 = vunpack.c.0.s8 %v3426
    %v3428 = vlaneseq
    %v3429 = vshrl.u32 %v3428, 7
    %v3430 = vsub.s32 %v3427, %v3429
    %v3431 = vrot.slane %v3423, %v3430
    %v3433 = vunpack.c.l.s4 1983009808
    %v3434 = vunpack.c.0.s8 %v3433
    %v3435 = vlaneseq
    %v3436 = vshrl.u32 %v3435, 7
    %v3437 = vsub.s32 %v3434, %v3436
    %v3438 = vrot.slane %v3424, %v3437
    %v3439 = vcombine.low %v3416, %v3418
    %v3440 = vcombine.high %v3416, %v3418
    %v3442 = vunpack.c.l.s4 1983009808
    %v3443 = vunpack.c.0.s8 %v3442
    %v3444 = vlaneseq
    %v3445 = vshrl.u32 %v3444, 7
    %v3446 = vsub.s32 %v3443, %v3445
    %v3447 = vrot.slane %v3439, %v3446
    %v3449 = vunpack.c.l.s4 1983009808
    %v3450 = vunpack.c.0.s8 %v3449
    %v3451 = vlaneseq
    %v3452 = vshrl.u32 %v3451, 7
    %v3453 = vsub.s32 %v3450, %v3452
    %v3454 = vrot.slane %v3440, %v3453
    %v3455 = vcombine.low %v3419, %v3421
    %v3456 = vcombine.high %v3419, %v3421
    %v3458 = vunpack.c.l.s4 1983009808
    %v3459 = vunpack.c.0.s8 %v3458
    %v3460 = vlaneseq
    %v3461 = vshrl.u32 %v3460, 7
    %v3462 = vsub.s32 %v3459, %v3461
    %v3463 = vrot.slane %v3455, %v3462
    %v3465 = vunpack.c.l.s4 1983009808
    %v3466 = vunpack.c.0.s8 %v3465
    %v3467 = vlaneseq
    %v3468 = vshrl.u32 %v3467, 7
    %v3469 = vsub.s32 %v3466, %v3468
    %v3470 = vrot.slane %v3456, %v3469
    %v3471 = vcombine.low %v3420, %v3422
    %v3472 = vcombine.high %v3420, %v3422
    %v3474 = vunpack.c.l.s4 1983009808
    %v3475 = vunpack.c.0.s8 %v3474
    %v3476 = vlaneseq
    %v3477 = vshrl.u32 %v3476, 7
    %v3478 = vsub.s32 %v3475, %v3477
    %v3479 = vrot.slane %v3471, %v3478
    %v3481 = vunpack.c.l.s4 1983009808
    %v3482 = vunpack.c.0.s8 %v3481
    %v3483 = vlaneseq
    %v3484 = vshrl.u32 %v3483, 7
    %v3485 = vsub.s32 %v3482, %v3484
    %v3486 = vrot.slane %v3472, %v3485
    %v3487 = vcombine.low %v3431, %v3447
    %v3488 = vcombine.high %v3431, %v3447
    %v3490 = vunpack.c.l.s4 1934713408
    %v3491 = vunpack.c.0.s8 %v3490
    %v3492 = vlaneseq
    %v3493 = vshrl.u32 %v3492, 7
    %v3494 = vsub.s32 %v3491, %v3493
    %v3495 = vrot.slane %v3487, %v3494
    %v3497 = vunpack.c.l.s4 1934713408
    %v3498 = vunpack.c.0.s8 %v3497
    %v3499 = vlaneseq
    %v3500 = vshrl.u32 %v3499, 7
    %v3501 = vsub.s32 %v3498, %v3500
    %v3502 = vrot.slane %v3488, %v3501
    %v3503 = vcombine.low %v3438, %v3454
    %v3504 = vcombine.high %v3438, %v3454
    %v3506 = vunpack.c.l.s4 1934713408
    %v3507 = vunpack.c.0.s8 %v3506
    %v3508 = vlaneseq
    %v3509 = vshrl.u32 %v3508, 7
    %v3510 = vsub.s32 %v3507, %v3509
    %v3511 = vrot.slane %v3503, %v3510
    %v3513 = vunpack.c.l.s4 1934713408
    %v3514 = vunpack.c.0.s8 %v3513
    %v3515 = vlaneseq
    %v3516 = vshrl.u32 %v3515, 7
    %v3517 = vsub.s32 %v3514, %v3516
    %v3518 = vrot.slane %v3504, %v3517
    %v3519 = vcombine.low %v3463, %v3479
    %v3520 = vcombine.high %v3463, %v3479
    %v3522 = vunpack.c.l.s4 1934713408
    %v3523 = vunpack.c.0.s8 %v3522
    %v3524 = vlaneseq
    %v3525 = vshrl.u32 %v3524, 7
    %v3526 = vsub.s32 %v3523, %v3525
    %v3527 = vrot.slane %v3519, %v3526
    %v3529 = vunpack.c.l.s4 1934713408
    %v3530 = vunpack.c.0.s8 %v3529
    %v3531 = vlaneseq
    %v3532 = vshrl.u32 %v3531, 7
    %v3533 = vsub.s32 %v3530, %v3532
    %v3534 = vrot.slane %v3520, %v3533
    %v3535 = vcombine.low %v3470, %v3486
    %v3536 = vcombine.high %v3470, %v3486
    %v3538 = vunpack.c.l.s4 1934713408
    %v3539 = vunpack.c.0.s8 %v3538
    %v3540 = vlaneseq
    %v3541 = vshrl.u32 %v3540, 7
    %v3542 = vsub.s32 %v3539, %v3541
    %v3543 = vrot.slane %v3535, %v3542
    %v3545 = vunpack.c.l.s4 1934713408
    %v3546 = vunpack.c.0.s8 %v3545
    %v3547 = vlaneseq
    %v3548 = vshrl.u32 %v3547, 7
    %v3549 = vsub.s32 %v3546, %v3548
    %v3550 = vrot.slane %v3536, %v3549
    %v3551 = vcombine.low %v3495, %v3527
    %v3552 = vcombine.high %v3495, %v3527
    %v3553 = vcombine.low %v3502, %v3534
    %v3554 = vcombine.high %v3502, %v3534
    %v3555 = vcombine.low %v3511, %v3543
    %v3556 = vcombine.high %v3511, %v3543
    %v3557 = vcombine.low %v3518, %v3550
    %v3558 = vcombine.high %v3518, %v3550
    %v3559 = vpack.c.bf16 %v3551, %v3551
    %v3560 = vpack.c.bf16 %v3552, %v3552
    %v3561 = vpack.c.bf16 %v3553, %v3553
    %v3562 = vpack.c.bf16 %v3554, %v3554
    %v3563 = vpack.c.bf16 %v3555, %v3555
    %v3564 = vpack.c.bf16 %v3556, %v3556
    %v3565 = vpack.c.bf16 %v3557, %v3557
    %v3566 = vpack.c.bf16 %v3558, %v3558
    %3568 = vrot.lane.b32.xlu0 %v2887, 64
    %v3569 = vpop.permute.xlu0 %3568
    %3572 = vrot.lane.b32.xlu0 %v2889, 64
    %v3573 = vpop.permute.xlu0 %3572
    %3576 = vrot.lane.b32.xlu0 %v2969, 64
    %v3577 = vpop.permute.xlu0 %3576
    %3580 = vrot.lane.b32.xlu0 %v2971, 64
    %v3581 = vpop.permute.xlu0 %3580
    %v3583 = vcombine.low %v2887, %v2889
    %v3584 = vcombine.high %v2887, %v2889
    %v3586 = vunpack.c.l.s4 1983009808
    %v3587 = vunpack.c.0.s8 %v3586
    %v3588 = vlaneseq
    %v3589 = vshrl.u32 %v3588, 7
    %v3590 = vsub.s32 %v3587, %v3589
    %v3591 = vrot.slane %v3583, %v3590
    %v3593 = vunpack.c.l.s4 1983009808
    %v3594 = vunpack.c.0.s8 %v3593
    %v3595 = vlaneseq
    %v3596 = vshrl.u32 %v3595, 7
    %v3597 = vsub.s32 %v3594, %v3596
    %v3598 = vrot.slane %v3584, %v3597
    %v3599 = vcombine.low %v3569, %v3573
    %v3600 = vcombine.high %v3569, %v3573
    %v3602 = vunpack.c.l.s4 1983009808
    %v3603 = vunpack.c.0.s8 %v3602
    %v3604 = vlaneseq
    %v3605 = vshrl.u32 %v3604, 7
    %v3606 = vsub.s32 %v3603, %v3605
    %v3607 = vrot.slane %v3599, %v3606
    %v3609 = vunpack.c.l.s4 1983009808
    %v3610 = vunpack.c.0.s8 %v3609
    %v3611 = vlaneseq
    %v3612 = vshrl.u32 %v3611, 7
    %v3613 = vsub.s32 %v3610, %v3612
    %v3614 = vrot.slane %v3600, %v3613
    %v3615 = vcombine.low %v2969, %v2971
    %v3616 = vcombine.high %v2969, %v2971
    %v3618 = vunpack.c.l.s4 1983009808
    %v3619 = vunpack.c.0.s8 %v3618
    %v3620 = vlaneseq
    %v3621 = vshrl.u32 %v3620, 7
    %v3622 = vsub.s32 %v3619, %v3621
    %v3623 = vrot.slane %v3615, %v3622
    %v3625 = vunpack.c.l.s4 1983009808
    %v3626 = vunpack.c.0.s8 %v3625
    %v3627 = vlaneseq
    %v3628 = vshrl.u32 %v3627, 7
    %v3629 = vsub.s32 %v3626, %v3628
    %v3630 = vrot.slane %v3616, %v3629
    %v3631 = vcombine.low %v3577, %v3581
    %v3632 = vcombine.high %v3577, %v3581
    %v3634 = vunpack.c.l.s4 1983009808
    %v3635 = vunpack.c.0.s8 %v3634
    %v3636 = vlaneseq
    %v3637 = vshrl.u32 %v3636, 7
    %v3638 = vsub.s32 %v3635, %v3637
    %v3639 = vrot.slane %v3631, %v3638
    %v3641 = vunpack.c.l.s4 1983009808
    %v3642 = vunpack.c.0.s8 %v3641
    %v3643 = vlaneseq
    %v3644 = vshrl.u32 %v3643, 7
    %v3645 = vsub.s32 %v3642, %v3644
    %v3646 = vrot.slane %v3632, %v3645
    %v3647 = vcombine.low %v3591, %v3607
    %v3648 = vcombine.high %v3591, %v3607
    %v3650 = vunpack.c.l.s4 1934713408
    %v3651 = vunpack.c.0.s8 %v3650
    %v3652 = vlaneseq
    %v3653 = vshrl.u32 %v3652, 7
    %v3654 = vsub.s32 %v3651, %v3653
    %v3655 = vrot.slane %v3647, %v3654
    %v3657 = vunpack.c.l.s4 1934713408
    %v3658 = vunpack.c.0.s8 %v3657
    %v3659 = vlaneseq
    %v3660 = vshrl.u32 %v3659, 7
    %v3661 = vsub.s32 %v3658, %v3660
    %v3662 = vrot.slane %v3648, %v3661
    %v3663 = vcombine.low %v3598, %v3614
    %v3664 = vcombine.high %v3598, %v3614
    %v3666 = vunpack.c.l.s4 1934713408
    %v3667 = vunpack.c.0.s8 %v3666
    %v3668 = vlaneseq
    %v3669 = vshrl.u32 %v3668, 7
    %v3670 = vsub.s32 %v3667, %v3669
    %v3671 = vrot.slane %v3663, %v3670
    %v3673 = vunpack.c.l.s4 1934713408
    %v3674 = vunpack.c.0.s8 %v3673
    %v3675 = vlaneseq
    %v3676 = vshrl.u32 %v3675, 7
    %v3677 = vsub.s32 %v3674, %v3676
    %v3678 = vrot.slane %v3664, %v3677
    %v3679 = vcombine.low %v3623, %v3639
    %v3680 = vcombine.high %v3623, %v3639
    %v3682 = vunpack.c.l.s4 1934713408
    %v3683 = vunpack.c.0.s8 %v3682
    %v3684 = vlaneseq
    %v3685 = vshrl.u32 %v3684, 7
    %v3686 = vsub.s32 %v3683, %v3685
    %v3687 = vrot.slane %v3679, %v3686
    %v3689 = vunpack.c.l.s4 1934713408
    %v3690 = vunpack.c.0.s8 %v3689
    %v3691 = vlaneseq
    %v3692 = vshrl.u32 %v3691, 7
    %v3693 = vsub.s32 %v3690, %v3692
    %v3694 = vrot.slane %v3680, %v3693
    %v3695 = vcombine.low %v3630, %v3646
    %v3696 = vcombine.high %v3630, %v3646
    %v3698 = vunpack.c.l.s4 1934713408
    %v3699 = vunpack.c.0.s8 %v3698
    %v3700 = vlaneseq
    %v3701 = vshrl.u32 %v3700, 7
    %v3702 = vsub.s32 %v3699, %v3701
    %v3703 = vrot.slane %v3695, %v3702
    %v3705 = vunpack.c.l.s4 1934713408
    %v3706 = vunpack.c.0.s8 %v3705
    %v3707 = vlaneseq
    %v3708 = vshrl.u32 %v3707, 7
    %v3709 = vsub.s32 %v3706, %v3708
    %v3710 = vrot.slane %v3696, %v3709
    %v3711 = vcombine.low %v3655, %v3687
    %v3712 = vcombine.high %v3655, %v3687
    %v3713 = vcombine.low %v3662, %v3694
    %v3714 = vcombine.high %v3662, %v3694
    %v3715 = vcombine.low %v3671, %v3703
    %v3716 = vcombine.high %v3671, %v3703
    %v3717 = vcombine.low %v3678, %v3710
    %v3718 = vcombine.high %v3678, %v3710
    %v3719 = vcombine.low %v3711, %v3713
    %v3720 = vcombine.high %v3711, %v3713
    %v3722 = vunpack.c.l.s4 1983009808
    %v3723 = vunpack.c.0.s8 %v3722
    %v3724 = vlaneseq
    %v3725 = vshrl.u32 %v3724, 7
    %v3726 = vsub.s32 %v3723, %v3725
    %v3727 = vrot.slane %v3719, %v3726
    %v3729 = vunpack.c.l.s4 1983009808
    %v3730 = vunpack.c.0.s8 %v3729
    %v3731 = vlaneseq
    %v3732 = vshrl.u32 %v3731, 7
    %v3733 = vsub.s32 %v3730, %v3732
    %v3734 = vrot.slane %v3720, %v3733
    %v3735 = vcombine.low %v3712, %v3714
    %v3736 = vcombine.high %v3712, %v3714
    %v3738 = vunpack.c.l.s4 1983009808
    %v3739 = vunpack.c.0.s8 %v3738
    %v3740 = vlaneseq
    %v3741 = vshrl.u32 %v3740, 7
    %v3742 = vsub.s32 %v3739, %v3741
    %v3743 = vrot.slane %v3735, %v3742
    %v3745 = vunpack.c.l.s4 1983009808
    %v3746 = vunpack.c.0.s8 %v3745
    %v3747 = vlaneseq
    %v3748 = vshrl.u32 %v3747, 7
    %v3749 = vsub.s32 %v3746, %v3748
    %v3750 = vrot.slane %v3736, %v3749
    %v3751 = vcombine.low %v3715, %v3717
    %v3752 = vcombine.high %v3715, %v3717
    %v3754 = vunpack.c.l.s4 1983009808
    %v3755 = vunpack.c.0.s8 %v3754
    %v3756 = vlaneseq
    %v3757 = vshrl.u32 %v3756, 7
    %v3758 = vsub.s32 %v3755, %v3757
    %v3759 = vrot.slane %v3751, %v3758
    %v3761 = vunpack.c.l.s4 1983009808
    %v3762 = vunpack.c.0.s8 %v3761
    %v3763 = vlaneseq
    %v3764 = vshrl.u32 %v3763, 7
    %v3765 = vsub.s32 %v3762, %v3764
    %v3766 = vrot.slane %v3752, %v3765
    %v3767 = vcombine.low %v3716, %v3718
    %v3768 = vcombine.high %v3716, %v3718
    %v3770 = vunpack.c.l.s4 1983009808
    %v3771 = vunpack.c.0.s8 %v3770
    %v3772 = vlaneseq
    %v3773 = vshrl.u32 %v3772, 7
    %v3774 = vsub.s32 %v3771, %v3773
    %v3775 = vrot.slane %v3767, %v3774
    %v3777 = vunpack.c.l.s4 1983009808
    %v3778 = vunpack.c.0.s8 %v3777
    %v3779 = vlaneseq
    %v3780 = vshrl.u32 %v3779, 7
    %v3781 = vsub.s32 %v3778, %v3780
    %v3782 = vrot.slane %v3768, %v3781
    %v3783 = vcombine.low %v3727, %v3743
    %v3784 = vcombine.high %v3727, %v3743
    %v3786 = vunpack.c.l.s4 1934713408
    %v3787 = vunpack.c.0.s8 %v3786
    %v3788 = vlaneseq
    %v3789 = vshrl.u32 %v3788, 7
    %v3790 = vsub.s32 %v3787, %v3789
    %v3791 = vrot.slane %v3783, %v3790
    %v3793 = vunpack.c.l.s4 1934713408
    %v3794 = vunpack.c.0.s8 %v3793
    %v3795 = vlaneseq
    %v3796 = vshrl.u32 %v3795, 7
    %v3797 = vsub.s32 %v3794, %v3796
    %v3798 = vrot.slane %v3784, %v3797
    %v3799 = vcombine.low %v3734, %v3750
    %v3800 = vcombine.high %v3734, %v3750
    %v3802 = vunpack.c.l.s4 1934713408
    %v3803 = vunpack.c.0.s8 %v3802
    %v3804 = vlaneseq
    %v3805 = vshrl.u32 %v3804, 7
    %v3806 = vsub.s32 %v3803, %v3805
    %v3807 = vrot.slane %v3799, %v3806
    %v3809 = vunpack.c.l.s4 1934713408
    %v3810 = vunpack.c.0.s8 %v3809
    %v3811 = vlaneseq
    %v3812 = vshrl.u32 %v3811, 7
    %v3813 = vsub.s32 %v3810, %v3812
    %v3814 = vrot.slane %v3800, %v3813
    %v3815 = vcombine.low %v3759, %v3775
    %v3816 = vcombine.high %v3759, %v3775
    %v3818 = vunpack.c.l.s4 1934713408
    %v3819 = vunpack.c.0.s8 %v3818
    %v3820 = vlaneseq
    %v3821 = vshrl.u32 %v3820, 7
    %v3822 = vsub.s32 %v3819, %v3821
    %v3823 = vrot.slane %v3815, %v3822
    %v3825 = vunpack.c.l.s4 1934713408
    %v3826 = vunpack.c.0.s8 %v3825
    %v3827 = vlaneseq
    %v3828 = vshrl.u32 %v3827, 7
    %v3829 = vsub.s32 %v3826, %v3828
    %v3830 = vrot.slane %v3816, %v3829
    %v3831 = vcombine.low %v3766, %v3782
    %v3832 = vcombine.high %v3766, %v3782
    %v3834 = vunpack.c.l.s4 1934713408
    %v3835 = vunpack.c.0.s8 %v3834
    %v3836 = vlaneseq
    %v3837 = vshrl.u32 %v3836, 7
    %v3838 = vsub.s32 %v3835, %v3837
    %v3839 = vrot.slane %v3831, %v3838
    %v3841 = vunpack.c.l.s4 1934713408
    %v3842 = vunpack.c.0.s8 %v3841
    %v3843 = vlaneseq
    %v3844 = vshrl.u32 %v3843, 7
    %v3845 = vsub.s32 %v3842, %v3844
    %v3846 = vrot.slane %v3832, %v3845
    %v3847 = vcombine.low %v3791, %v3823
    %v3848 = vcombine.high %v3791, %v3823
    %v3849 = vcombine.low %v3798, %v3830
    %v3850 = vcombine.high %v3798, %v3830
    %v3851 = vcombine.low %v3807, %v3839
    %v3852 = vcombine.high %v3807, %v3839
    %v3853 = vcombine.low %v3814, %v3846
    %v3854 = vcombine.high %v3814, %v3846
    %v3855 = vpack.c.bf16 %v3847, %v3847
    %v3856 = vpack.c.bf16 %v3848, %v3848
    %v3857 = vpack.c.bf16 %v3849, %v3849
    %v3858 = vpack.c.bf16 %v3850, %v3850
    %v3859 = vpack.c.bf16 %v3851, %v3851
    %v3860 = vpack.c.bf16 %v3852, %v3852
    %v3861 = vpack.c.bf16 %v3853, %v3853
    %v3862 = vpack.c.bf16 %v3854, %v3854
    %v3863 = vld [vmem:[#allocation11] sm:$0xff]
    %vm3864 = vcmask 523264
    %v3866 = vsel %vm3864, %v3263, 0
    %v3869 = vsel %vm3864, %v3559, 0
    %3871 = vmatprep.subr.bf16.mxu0 0
    %3872 = vmatpush1.bf16.xpose.msra.mxu0 %v3869
    %3873 = vmatprep.subr.bf16.mxu0 0
    %3874 = vmatpush1.bf16.xpose.msra.mxu0 0
    %3875 = vmatprep.subr.bf16.mxu0 0
    %3876 = vmatpush1.bf16.xpose.msra.mxu0 0
    %3877 = vmatprep.subr.bf16.mxu0 0
    %3878 = vmatpush1.bf16.xpose.msra.mxu0 0
    %3879 = vmatprep.subr.bf16.mxu0 0
    %3880 = vmatpush1.bf16.xpose.msra.mxu0 0
    %3881 = vmatprep.subr.bf16.mxu0 0
    %3882 = vmatpush1.bf16.xpose.msra.mxu0 0
    %3883 = vmatprep.subr.bf16.mxu0 0
    %3884 = vmatpush1.bf16.xpose.msra.mxu0 0
    %3885 = vmatprep.subr.bf16.mxu0 0
    %3886 = vmatpush1.bf16.xpose.msra.mxu0 0
    %3887 = vmatprep.subr.bf16.mxu0 0
    %3888 = vmatpush1.bf16.xpose.msra.mxu0 0
    %3889 = vmatprep.subr.bf16.mxu0 0
    %3890 = vmatpush1.bf16.xpose.msra.mxu0 0
    %3891 = vmatprep.subr.bf16.mxu0 0
    %3892 = vmatpush1.bf16.xpose.msra.mxu0 0
    %3893 = vmatprep.subr.bf16.mxu0 0
    %3894 = vmatpush1.bf16.xpose.msra.mxu0 0
    %3895 = vmatprep.subr.bf16.mxu0 0
    %3896 = vmatpush1.bf16.xpose.msra.mxu0 0
    %3897 = vmatprep.subr.bf16.mxu0 0
    %3898 = vmatpush1.bf16.xpose.msra.mxu0 0
    %3899 = vmatprep.subr.bf16.mxu0 0
    %3900 = vmatpush1.bf16.xpose.msra.mxu0 0
    %3901 = vmatprep.subr.bf16.mxu0 0
    %3902 = vmatpush1.bf16.xpose.msra.mxu0 0
    %3903 = vmatprep.mubr.bf16.mxu0 0
    %3904 = vmatmul.mubr.bf16.gmra.mrb[0].mxu0 %v3866
    %v3905 = vpop.f32.mrb[0].mxu0
    %v3906 = vadd.f32 %v3863, %v3905
    %v3907 = vpop.f32.mrb[0].mxu0
    %v3908 = vpop.f32.mrb[0].mxu0
    %v3909 = vpop.f32.mrb[0].mxu0
    %3910 = vdwg.mxu0
    %v3912 = vsel %vm3864, %v3264, 0
    %v3915 = vsel %vm3864, %v3560, 0
    %3917 = vmatprep.subr.bf16.mxu0 0
    %3918 = vmatpush1.bf16.xpose.msra.mxu0 %v3915
    %3919 = vmatprep.subr.bf16.mxu0 0
    %3920 = vmatpush1.bf16.xpose.msra.mxu0 0
    %3921 = vmatprep.subr.bf16.mxu0 0
    %3922 = vmatpush1.bf16.xpose.msra.mxu0 0
    %3923 = vmatprep.subr.bf16.mxu0 0
    %3924 = vmatpush1.bf16.xpose.msra.mxu0 0
    %3925 = vmatprep.subr.bf16.mxu0 0
    %3926 = vmatpush1.bf16.xpose.msra.mxu0 0
    %3927 = vmatprep.subr.bf16.mxu0 0
    %3928 = vmatpush1.bf16.xpose.msra.mxu0 0
    %3929 = vmatprep.subr.bf16.mxu0 0
    %3930 = vmatpush1.bf16.xpose.msra.mxu0 0
    %3931 = vmatprep.subr.bf16.mxu0 0
    %3932 = vmatpush1.bf16.xpose.msra.mxu0 0
    %3933 = vmatprep.subr.bf16.mxu0 0
    %3934 = vmatpush1.bf16.xpose.msra.mxu0 0
    %3935 = vmatprep.subr.bf16.mxu0 0
    %3936 = vmatpush1.bf16.xpose.msra.mxu0 0
    %3937 = vmatprep.subr.bf16.mxu0 0
    %3938 = vmatpush1.bf16.xpose.msra.mxu0 0
    %3939 = vmatprep.subr.bf16.mxu0 0
    %3940 = vmatpush1.bf16.xpose.msra.mxu0 0
    %3941 = vmatprep.subr.bf16.mxu0 0
    %3942 = vmatpush1.bf16.xpose.msra.mxu0 0
    %3943 = vmatprep.subr.bf16.mxu0 0
    %3944 = vmatpush1.bf16.xpose.msra.mxu0 0
    %3945 = vmatprep.subr.bf16.mxu0 0
    %3946 = vmatpush1.bf16.xpose.msra.mxu0 0
    %3947 = vmatprep.subr.bf16.mxu0 0
    %3948 = vmatpush1.bf16.xpose.msra.mxu0 0
    %3949 = vmatprep.mubr.bf16.mxu0 0
    %3950 = vmatmul.mubr.bf16.gmra.mrb[0].mxu0 %v3912
    %v3951 = vpop.f32.mrb[0].mxu0
    %v3952 = vadd.f32 %v3863, %v3951
    %v3953 = vpop.f32.mrb[0].mxu0
    %v3954 = vpop.f32.mrb[0].mxu0
    %v3955 = vpop.f32.mrb[0].mxu0
    %3956 = vdwg.mxu0
    %v3958 = vsel %vm3864, %v3265, 0
    %v3961 = vsel %vm3864, %v3561, 0
    %3963 = vmatprep.subr.bf16.mxu0 0
    %3964 = vmatpush1.bf16.xpose.msra.mxu0 %v3961
    %3965 = vmatprep.subr.bf16.mxu0 0
    %3966 = vmatpush1.bf16.xpose.msra.mxu0 0
    %3967 = vmatprep.subr.bf16.mxu0 0
    %3968 = vmatpush1.bf16.xpose.msra.mxu0 0
    %3969 = vmatprep.subr.bf16.mxu0 0
    %3970 = vmatpush1.bf16.xpose.msra.mxu0 0
    %3971 = vmatprep.subr.bf16.mxu0 0
    %3972 = vmatpush1.bf16.xpose.msra.mxu0 0
    %3973 = vmatprep.subr.bf16.mxu0 0
    %3974 = vmatpush1.bf16.xpose.msra.mxu0 0
    %3975 = vmatprep.subr.bf16.mxu0 0
    %3976 = vmatpush1.bf16.xpose.msra.mxu0 0
    %3977 = vmatprep.subr.bf16.mxu0 0
    %3978 = vmatpush1.bf16.xpose.msra.mxu0 0
    %3979 = vmatprep.subr.bf16.mxu0 0
    %3980 = vmatpush1.bf16.xpose.msra.mxu0 0
    %3981 = vmatprep.subr.bf16.mxu0 0
    %3982 = vmatpush1.bf16.xpose.msra.mxu0 0
    %3983 = vmatprep.subr.bf16.mxu0 0
    %3984 = vmatpush1.bf16.xpose.msra.mxu0 0
    %3985 = vmatprep.subr.bf16.mxu0 0
    %3986 = vmatpush1.bf16.xpose.msra.mxu0 0
    %3987 = vmatprep.subr.bf16.mxu0 0
    %3988 = vmatpush1.bf16.xpose.msra.mxu0 0
    %3989 = vmatprep.subr.bf16.mxu0 0
    %3990 = vmatpush1.bf16.xpose.msra.mxu0 0
    %3991 = vmatprep.subr.bf16.mxu0 0
    %3992 = vmatpush1.bf16.xpose.msra.mxu0 0
    %3993 = vmatprep.subr.bf16.mxu0 0
    %3994 = vmatpush1.bf16.xpose.msra.mxu0 0
    %3995 = vmatprep.mubr.bf16.mxu0 0
    %3996 = vmatmul.mubr.bf16.gmra.mrb[0].mxu0 %v3958
    %v3997 = vpop.f32.mrb[0].mxu0
    %v3998 = vadd.f32 %v3863, %v3997
    %v3999 = vpop.f32.mrb[0].mxu0
    %v4000 = vpop.f32.mrb[0].mxu0
    %v4001 = vpop.f32.mrb[0].mxu0
    %4002 = vdwg.mxu0
    %v4004 = vsel %vm3864, %v3266, 0
    %v4007 = vsel %vm3864, %v3562, 0
    %4009 = vmatprep.subr.bf16.mxu0 0
    %4010 = vmatpush1.bf16.xpose.msra.mxu0 %v4007
    %4011 = vmatprep.subr.bf16.mxu0 0
    %4012 = vmatpush1.bf16.xpose.msra.mxu0 0
    %4013 = vmatprep.subr.bf16.mxu0 0
    %4014 = vmatpush1.bf16.xpose.msra.mxu0 0
    %4015 = vmatprep.subr.bf16.mxu0 0
    %4016 = vmatpush1.bf16.xpose.msra.mxu0 0
    %4017 = vmatprep.subr.bf16.mxu0 0
    %4018 = vmatpush1.bf16.xpose.msra.mxu0 0
    %4019 = vmatprep.subr.bf16.mxu0 0
    %4020 = vmatpush1.bf16.xpose.msra.mxu0 0
    %4021 = vmatprep.subr.bf16.mxu0 0
    %4022 = vmatpush1.bf16.xpose.msra.mxu0 0
    %4023 = vmatprep.subr.bf16.mxu0 0
    %4024 = vmatpush1.bf16.xpose.msra.mxu0 0
    %4025 = vmatprep.subr.bf16.mxu0 0
    %4026 = vmatpush1.bf16.xpose.msra.mxu0 0
    %4027 = vmatprep.subr.bf16.mxu0 0
    %4028 = vmatpush1.bf16.xpose.msra.mxu0 0
    %4029 = vmatprep.subr.bf16.mxu0 0
    %4030 = vmatpush1.bf16.xpose.msra.mxu0 0
    %4031 = vmatprep.subr.bf16.mxu0 0
    %4032 = vmatpush1.bf16.xpose.msra.mxu0 0
    %4033 = vmatprep.subr.bf16.mxu0 0
    %4034 = vmatpush1.bf16.xpose.msra.mxu0 0
    %4035 = vmatprep.subr.bf16.mxu0 0
    %4036 = vmatpush1.bf16.xpose.msra.mxu0 0
    %4037 = vmatprep.subr.bf16.mxu0 0
    %4038 = vmatpush1.bf16.xpose.msra.mxu0 0
    %4039 = vmatprep.subr.bf16.mxu0 0
    %4040 = vmatpush1.bf16.xpose.msra.mxu0 0
    %4041 = vmatprep.mubr.bf16.mxu0 0
    %4042 = vmatmul.mubr.bf16.gmra.mrb[0].mxu0 %v4004
    %v4043 = vpop.f32.mrb[0].mxu0
    %v4044 = vadd.f32 %v3863, %v4043
    %v4045 = vpop.f32.mrb[0].mxu0
    %v4046 = vpop.f32.mrb[0].mxu0
    %v4047 = vpop.f32.mrb[0].mxu0
    %4048 = vdwg.mxu0
    %v4050 = vsel %vm3864, %v3267, 0
    %v4053 = vsel %vm3864, %v3563, 0
    %4055 = vmatprep.subr.bf16.mxu0 0
    %4056 = vmatpush1.bf16.xpose.msra.mxu0 %v4053
    %4057 = vmatprep.subr.bf16.mxu0 0
    %4058 = vmatpush1.bf16.xpose.msra.mxu0 0
    %4059 = vmatprep.subr.bf16.mxu0 0
    %4060 = vmatpush1.bf16.xpose.msra.mxu0 0
    %4061 = vmatprep.subr.bf16.mxu0 0
    %4062 = vmatpush1.bf16.xpose.msra.mxu0 0
    %4063 = vmatprep.subr.bf16.mxu0 0
    %4064 = vmatpush1.bf16.xpose.msra.mxu0 0
    %4065 = vmatprep.subr.bf16.mxu0 0
    %4066 = vmatpush1.bf16.xpose.msra.mxu0 0
    %4067 = vmatprep.subr.bf16.mxu0 0
    %4068 = vmatpush1.bf16.xpose.msra.mxu0 0
    %4069 = vmatprep.subr.bf16.mxu0 0
    %4070 = vmatpush1.bf16.xpose.msra.mxu0 0
    %4071 = vmatprep.subr.bf16.mxu0 0
    %4072 = vmatpush1.bf16.xpose.msra.mxu0 0
    %4073 = vmatprep.subr.bf16.mxu0 0
    %4074 = vmatpush1.bf16.xpose.msra.mxu0 0
    %4075 = vmatprep.subr.bf16.mxu0 0
    %4076 = vmatpush1.bf16.xpose.msra.mxu0 0
    %4077 = vmatprep.subr.bf16.mxu0 0
    %4078 = vmatpush1.bf16.xpose.msra.mxu0 0
    %4079 = vmatprep.subr.bf16.mxu0 0
    %4080 = vmatpush1.bf16.xpose.msra.mxu0 0
    %4081 = vmatprep.subr.bf16.mxu0 0
    %4082 = vmatpush1.bf16.xpose.msra.mxu0 0
    %4083 = vmatprep.subr.bf16.mxu0 0
    %4084 = vmatpush1.bf16.xpose.msra.mxu0 0
    %4085 = vmatprep.subr.bf16.mxu0 0
    %4086 = vmatpush1.bf16.xpose.msra.mxu0 0
    %4087 = vmatprep.mubr.bf16.mxu0 0
    %4088 = vmatmul.mubr.bf16.gmra.mrb[0].mxu0 %v4050
    %v4089 = vpop.f32.mrb[0].mxu0
    %v4090 = vadd.f32 %v3863, %v4089
    %v4091 = vpop.f32.mrb[0].mxu0
    %v4092 = vpop.f32.mrb[0].mxu0
    %v4093 = vpop.f32.mrb[0].mxu0
    %4094 = vdwg.mxu0
    %v4096 = vsel %vm3864, %v3268, 0
    %v4099 = vsel %vm3864, %v3564, 0
    %4101 = vmatprep.subr.bf16.mxu0 0
    %4102 = vmatpush1.bf16.xpose.msra.mxu0 %v4099
    %4103 = vmatprep.subr.bf16.mxu0 0
    %4104 = vmatpush1.bf16.xpose.msra.mxu0 0
    %4105 = vmatprep.subr.bf16.mxu0 0
    %4106 = vmatpush1.bf16.xpose.msra.mxu0 0
    %4107 = vmatprep.subr.bf16.mxu0 0
    %4108 = vmatpush1.bf16.xpose.msra.mxu0 0
    %4109 = vmatprep.subr.bf16.mxu0 0
    %4110 = vmatpush1.bf16.xpose.msra.mxu0 0
    %4111 = vmatprep.subr.bf16.mxu0 0
    %4112 = vmatpush1.bf16.xpose.msra.mxu0 0
    %4113 = vmatprep.subr.bf16.mxu0 0
    %4114 = vmatpush1.bf16.xpose.msra.mxu0 0
    %4115 = vmatprep.subr.bf16.mxu0 0
    %4116 = vmatpush1.bf16.xpose.msra.mxu0 0
    %4117 = vmatprep.subr.bf16.mxu0 0
    %4118 = vmatpush1.bf16.xpose.msra.mxu0 0
    %4119 = vmatprep.subr.bf16.mxu0 0
    %4120 = vmatpush1.bf16.xpose.msra.mxu0 0
    %4121 = vmatprep.subr.bf16.mxu0 0
    %4122 = vmatpush1.bf16.xpose.msra.mxu0 0
    %4123 = vmatprep.subr.bf16.mxu0 0
    %4124 = vmatpush1.bf16.xpose.msra.mxu0 0
    %4125 = vmatprep.subr.bf16.mxu0 0
    %4126 = vmatpush1.bf16.xpose.msra.mxu0 0
    %4127 = vmatprep.subr.bf16.mxu0 0
    %4128 = vmatpush1.bf16.xpose.msra.mxu0 0
    %4129 = vmatprep.subr.bf16.mxu0 0
    %4130 = vmatpush1.bf16.xpose.msra.mxu0 0
    %4131 = vmatprep.subr.bf16.mxu0 0
    %4132 = vmatpush1.bf16.xpose.msra.mxu0 0
    %4133 = vmatprep.mubr.bf16.mxu0 0
    %4134 = vmatmul.mubr.bf16.gmra.mrb[0].mxu0 %v4096
    %v4135 = vpop.f32.mrb[0].mxu0
    %v4136 = vadd.f32 %v3863, %v4135
    %v4137 = vpop.f32.mrb[0].mxu0
    %v4138 = vpop.f32.mrb[0].mxu0
    %v4139 = vpop.f32.mrb[0].mxu0
    %4140 = vdwg.mxu0
    %v4142 = vsel %vm3864, %v3269, 0
    %v4145 = vsel %vm3864, %v3565, 0
    %4147 = vmatprep.subr.bf16.mxu0 0
    %4148 = vmatpush1.bf16.xpose.msra.mxu0 %v4145
    %4149 = vmatprep.subr.bf16.mxu0 0
    %4150 = vmatpush1.bf16.xpose.msra.mxu0 0
    %4151 = vmatprep.subr.bf16.mxu0 0
    %4152 = vmatpush1.bf16.xpose.msra.mxu0 0
    %4153 = vmatprep.subr.bf16.mxu0 0
    %4154 = vmatpush1.bf16.xpose.msra.mxu0 0
    %4155 = vmatprep.subr.bf16.mxu0 0
    %4156 = vmatpush1.bf16.xpose.msra.mxu0 0
    %4157 = vmatprep.subr.bf16.mxu0 0
    %4158 = vmatpush1.bf16.xpose.msra.mxu0 0
    %4159 = vmatprep.subr.bf16.mxu0 0
    %4160 = vmatpush1.bf16.xpose.msra.mxu0 0
    %4161 = vmatprep.subr.bf16.mxu0 0
    %4162 = vmatpush1.bf16.xpose.msra.mxu0 0
    %4163 = vmatprep.subr.bf16.mxu0 0
    %4164 = vmatpush1.bf16.xpose.msra.mxu0 0
    %4165 = vmatprep.subr.bf16.mxu0 0
    %4166 = vmatpush1.bf16.xpose.msra.mxu0 0
    %4167 = vmatprep.subr.bf16.mxu0 0
    %4168 = vmatpush1.bf16.xpose.msra.mxu0 0
    %4169 = vmatprep.subr.bf16.mxu0 0
    %4170 = vmatpush1.bf16.xpose.msra.mxu0 0
    %4171 = vmatprep.subr.bf16.mxu0 0
    %4172 = vmatpush1.bf16.xpose.msra.mxu0 0
    %4173 = vmatprep.subr.bf16.mxu0 0
    %4174 = vmatpush1.bf16.xpose.msra.mxu0 0
    %4175 = vmatprep.subr.bf16.mxu0 0
    %4176 = vmatpush1.bf16.xpose.msra.mxu0 0
    %4177 = vmatprep.subr.bf16.mxu0 0
    %4178 = vmatpush1.bf16.xpose.msra.mxu0 0
    %4179 = vmatprep.mubr.bf16.mxu0 0
    %4180 = vmatmul.mubr.bf16.gmra.mrb[0].mxu0 %v4142
    %v4181 = vpop.f32.mrb[0].mxu0
    %v4182 = vadd.f32 %v3863, %v4181
    %v4183 = vpop.f32.mrb[0].mxu0
    %v4184 = vpop.f32.mrb[0].mxu0
    %v4185 = vpop.f32.mrb[0].mxu0
    %4186 = vdwg.mxu0
    %v4188 = vsel %vm3864, %v3270, 0
    %v4191 = vsel %vm3864, %v3566, 0
    %4193 = vmatprep.subr.bf16.mxu0 0
    %4194 = vmatpush1.bf16.xpose.msra.mxu0 %v4191
    %4195 = vmatprep.subr.bf16.mxu0 0
    %4196 = vmatpush1.bf16.xpose.msra.mxu0 0
    %4197 = vmatprep.subr.bf16.mxu0 0
    %4198 = vmatpush1.bf16.xpose.msra.mxu0 0
    %4199 = vmatprep.subr.bf16.mxu0 0
    %4200 = vmatpush1.bf16.xpose.msra.mxu0 0
    %4201 = vmatprep.subr.bf16.mxu0 0
    %4202 = vmatpush1.bf16.xpose.msra.mxu0 0
    %4203 = vmatprep.subr.bf16.mxu0 0
    %4204 = vmatpush1.bf16.xpose.msra.mxu0 0
    %4205 = vmatprep.subr.bf16.mxu0 0
    %4206 = vmatpush1.bf16.xpose.msra.mxu0 0
    %4207 = vmatprep.subr.bf16.mxu0 0
    %4208 = vmatpush1.bf16.xpose.msra.mxu0 0
    %4209 = vmatprep.subr.bf16.mxu0 0
    %4210 = vmatpush1.bf16.xpose.msra.mxu0 0
    %4211 = vmatprep.subr.bf16.mxu0 0
    %4212 = vmatpush1.bf16.xpose.msra.mxu0 0
    %4213 = vmatprep.subr.bf16.mxu0 0
    %4214 = vmatpush1.bf16.xpose.msra.mxu0 0
    %4215 = vmatprep.subr.bf16.mxu0 0
    %4216 = vmatpush1.bf16.xpose.msra.mxu0 0
    %4217 = vmatprep.subr.bf16.mxu0 0
    %4218 = vmatpush1.bf16.xpose.msra.mxu0 0
    %4219 = vmatprep.subr.bf16.mxu0 0
    %4220 = vmatpush1.bf16.xpose.msra.mxu0 0
    %4221 = vmatprep.subr.bf16.mxu0 0
    %4222 = vmatpush1.bf16.xpose.msra.mxu0 0
    %4223 = vmatprep.subr.bf16.mxu0 0
    %4224 = vmatpush1.bf16.xpose.msra.mxu0 0
    %4225 = vmatprep.mubr.bf16.mxu0 0
    %4226 = vmatmul.mubr.bf16.gmra.mrb[0].mxu0 %v4188
    %v4227 = vpop.f32.mrb[0].mxu0
    %v4228 = vadd.f32 %v3863, %v4227
    %v4229 = vpop.f32.mrb[0].mxu0
    %v4230 = vpop.f32.mrb[0].mxu0
    %v4231 = vpop.f32.mrb[0].mxu0
    %4232 = vdwg.mxu0
    %vm4233 = vcmask 64512
    %v4234 = vsel %vm4233, %v3906, -inf
    %4235 = vmax.xlane.f32.xlu0 %v4234
    %v4236 = vpop.xlane.xlu0 %4235
    %v4237 = vsel %vm4233, %v3952, -inf
    %4238 = vmax.xlane.f32.xlu0 %v4237
    %v4239 = vpop.xlane.xlu0 %4238
    %v4240 = vsel %vm4233, %v3998, -inf
    %4241 = vmax.xlane.f32.xlu0 %v4240
    %v4242 = vpop.xlane.xlu0 %4241
    %v4243 = vsel %vm4233, %v4044, -inf
    %4244 = vmax.xlane.f32.xlu0 %v4243
    %v4245 = vpop.xlane.xlu0 %4244
    %v4246 = vsel %vm4233, %v4090, -inf
    %4247 = vmax.xlane.f32.xlu0 %v4246
    %v4248 = vpop.xlane.xlu0 %4247
    %v4249 = vsel %vm4233, %v4136, -inf
    %4250 = vmax.xlane.f32.xlu0 %v4249
    %v4251 = vpop.xlane.xlu0 %4250
    %v4252 = vsel %vm4233, %v4182, -inf
    %4253 = vmax.xlane.f32.xlu0 %v4252
    %v4254 = vpop.xlane.xlu0 %4253
    %v4255 = vsel %vm4233, %v4228, -inf
    %4256 = vmax.xlane.f32.xlu0 %v4255
    %v4257 = vpop.xlane.xlu0 %4256
    %v4258 = vsub.f32 %v3906, %v4236
    %v4259 = vsub.f32 %v3952, %v4239
    %v4260 = vsub.f32 %v3998, %v4242
    %v4261 = vsub.f32 %v4044, %v4245
    %v4262 = vsub.f32 %v4090, %v4248
    %v4263 = vsub.f32 %v4136, %v4251
    %v4264 = vsub.f32 %v4182, %v4254
    %v4265 = vsub.f32 %v4228, %v4257
    %v4266 = vmul.f32 %v4258, 1.442695
    %v4267 = vpow.pop %v4266
    %v4268 = vmul.f32 %v4259, 1.442695
    %v4269 = vpow.pop %v4268
    %v4270 = vmul.f32 %v4260, 1.442695
    %v4271 = vpow.pop %v4270
    %v4272 = vmul.f32 %v4261, 1.442695
    %v4273 = vpow.pop %v4272
    %v4274 = vmul.f32 %v4262, 1.442695
    %v4275 = vpow.pop %v4274
    %v4276 = vmul.f32 %v4263, 1.442695
    %v4277 = vpow.pop %v4276
    %v4278 = vmul.f32 %v4264, 1.442695
    %v4279 = vpow.pop %v4278
    %v4280 = vmul.f32 %v4265, 1.442695
    %v4281 = vpow.pop %v4280
    %v4282 = vsel %vm4233, %v4267, 0.0
    %4283 = vadd.xlane.f32.xlu0 %v4282
    %v4284 = vpop.xlane.xlu0 %4283
    %v4285 = vsel %vm4233, %v4269, 0.0
    %4286 = vadd.xlane.f32.xlu0 %v4285
    %v4287 = vpop.xlane.xlu0 %4286
    %v4288 = vsel %vm4233, %v4271, 0.0
    %4289 = vadd.xlane.f32.xlu0 %v4288
    %v4290 = vpop.xlane.xlu0 %4289
    %v4291 = vsel %vm4233, %v4273, 0.0
    %4292 = vadd.xlane.f32.xlu0 %v4291
    %v4293 = vpop.xlane.xlu0 %4292
    %v4294 = vsel %vm4233, %v4275, 0.0
    %4295 = vadd.xlane.f32.xlu0 %v4294
    %v4296 = vpop.xlane.xlu0 %4295
    %v4297 = vsel %vm4233, %v4277, 0.0
    %4298 = vadd.xlane.f32.xlu0 %v4297
    %v4299 = vpop.xlane.xlu0 %4298
    %v4300 = vsel %vm4233, %v4279, 0.0
    %4301 = vadd.xlane.f32.xlu0 %v4300
    %v4302 = vpop.xlane.xlu0 %4301
    %v4303 = vsel %vm4233, %v4281, 0.0
    %4304 = vadd.xlane.f32.xlu0 %v4303
    %v4305 = vpop.xlane.xlu0 %4304
    %v4306 = vrcp.pop %v4284
    %v4307 = vrcp.pop %v4287
    %v4308 = vrcp.pop %v4290
    %v4309 = vrcp.pop %v4293
    %v4310 = vrcp.pop %v4296
    %v4311 = vrcp.pop %v4299
    %v4312 = vrcp.pop %v4302
    %v4313 = vrcp.pop %v4305
    %v4314 = vmul.f32 %v4267, %v4306
    %v4315 = vmul.f32 %v4269, %v4307
    %v4316 = vmul.f32 %v4271, %v4308
    %v4317 = vmul.f32 %v4273, %v4309
    %v4318 = vmul.f32 %v4275, %v4310
    %v4319 = vmul.f32 %v4277, %v4311
    %v4320 = vmul.f32 %v4279, %v4312
    %v4321 = vmul.f32 %v4281, %v4313
    %v4322 = vpack.c.bf16 %v4314, %v4314
    %v4323 = vpack.c.bf16 %v4315, %v4315
    %v4324 = vpack.c.bf16 %v4316, %v4316
    %v4325 = vpack.c.bf16 %v4317, %v4317
    %v4326 = vpack.c.bf16 %v4318, %v4318
    %v4327 = vpack.c.bf16 %v4319, %v4319
    %v4328 = vpack.c.bf16 %v4320, %v4320
    %v4329 = vpack.c.bf16 %v4321, %v4321
    %v4331 = vsel %vm4233, %v4322, 0
    %vm4333 = vcmask 1043456
    %v4335 = vsel %vm4333, %v3855, 0
    %4337 = vmatprep.subr.bf16.mxu0 0
    %4338 = vmatpush1.bf16.msra.mxu0 %v4335
    %4339 = vmatprep.subr.bf16.mxu0 0
    %4340 = vmatpush1.bf16.msra.mxu0 0
    %4341 = vmatprep.subr.bf16.mxu0 0
    %4342 = vmatpush1.bf16.msra.mxu0 0
    %4343 = vmatprep.subr.bf16.mxu0 0
    %4344 = vmatpush1.bf16.msra.mxu0 0
    %4345 = vmatprep.subr.bf16.mxu0 0
    %4346 = vmatpush1.bf16.msra.mxu0 0
    %4347 = vmatprep.subr.bf16.mxu0 0
    %4348 = vmatpush1.bf16.msra.mxu0 0
    %4349 = vmatprep.subr.bf16.mxu0 0
    %4350 = vmatpush1.bf16.msra.mxu0 0
    %4351 = vmatprep.subr.bf16.mxu0 0
    %4352 = vmatpush1.bf16.msra.mxu0 0
    %4353 = vmatprep.subr.bf16.mxu0 0
    %4354 = vmatpush1.bf16.msra.mxu0 0
    %4355 = vmatprep.subr.bf16.mxu0 0
    %4356 = vmatpush1.bf16.msra.mxu0 0
    %4357 = vmatprep.subr.bf16.mxu0 0
    %4358 = vmatpush1.bf16.msra.mxu0 0
    %4359 = vmatprep.subr.bf16.mxu0 0
    %4360 = vmatpush1.bf16.msra.mxu0 0
    %4361 = vmatprep.subr.bf16.mxu0 0
    %4362 = vmatpush1.bf16.msra.mxu0 0
    %4363 = vmatprep.subr.bf16.mxu0 0
    %4364 = vmatpush1.bf16.msra.mxu0 0
    %4365 = vmatprep.subr.bf16.mxu0 0
    %4366 = vmatpush1.bf16.msra.mxu0 0
    %4367 = vmatprep.subr.bf16.mxu0 0
    %4368 = vmatpush1.bf16.msra.mxu0 0
    %4369 = vmatprep.mubr.bf16.mxu0 0
    %4370 = vmatmul.mubr.bf16.gmra.mrb[0].mxu0 %v4331
    %v4371 = vpop.f32.mrb[0].mxu0
    %v4372 = vadd.f32 0.0, %v4371
    %v4373 = vpop.f32.mrb[0].mxu0
    %v4374 = vpop.f32.mrb[0].mxu0
    %v4375 = vpop.f32.mrb[0].mxu0
    %4376 = vdwg.mxu0
    %v4378 = vsel %vm4233, %v4323, 0
    %v4381 = vsel %vm4333, %v3856, 0
    %4383 = vmatprep.subr.bf16.mxu0 0
    %4384 = vmatpush1.bf16.msra.mxu0 %v4381
    %4385 = vmatprep.subr.bf16.mxu0 0
    %4386 = vmatpush1.bf16.msra.mxu0 0
    %4387 = vmatprep.subr.bf16.mxu0 0
    %4388 = vmatpush1.bf16.msra.mxu0 0
    %4389 = vmatprep.subr.bf16.mxu0 0
    %4390 = vmatpush1.bf16.msra.mxu0 0
    %4391 = vmatprep.subr.bf16.mxu0 0
    %4392 = vmatpush1.bf16.msra.mxu0 0
    %4393 = vmatprep.subr.bf16.mxu0 0
    %4394 = vmatpush1.bf16.msra.mxu0 0
    %4395 = vmatprep.subr.bf16.mxu0 0
    %4396 = vmatpush1.bf16.msra.mxu0 0
    %4397 = vmatprep.subr.bf16.mxu0 0
    %4398 = vmatpush1.bf16.msra.mxu0 0
    %4399 = vmatprep.subr.bf16.mxu0 0
    %4400 = vmatpush1.bf16.msra.mxu0 0
    %4401 = vmatprep.subr.bf16.mxu0 0
    %4402 = vmatpush1.bf16.msra.mxu0 0
    %4403 = vmatprep.subr.bf16.mxu0 0
    %4404 = vmatpush1.bf16.msra.mxu0 0
    %4405 = vmatprep.subr.bf16.mxu0 0
    %4406 = vmatpush1.bf16.msra.mxu0 0
    %4407 = vmatprep.subr.bf16.mxu0 0
    %4408 = vmatpush1.bf16.msra.mxu0 0
    %4409 = vmatprep.subr.bf16.mxu0 0
    %4410 = vmatpush1.bf16.msra.mxu0 0
    %4411 = vmatprep.subr.bf16.mxu0 0
    %4412 = vmatpush1.bf16.msra.mxu0 0
    %4413 = vmatprep.subr.bf16.mxu0 0
    %4414 = vmatpush1.bf16.msra.mxu0 0
    %4415 = vmatprep.mubr.bf16.mxu0 0
    %4416 = vmatmul.mubr.bf16.gmra.mrb[0].mxu0 %v4378
    %v4417 = vpop.f32.mrb[0].mxu0
    %v4418 = vadd.f32 0.0, %v4417
    %v4419 = vpop.f32.mrb[0].mxu0
    %v4420 = vpop.f32.mrb[0].mxu0
    %v4421 = vpop.f32.mrb[0].mxu0
    %4422 = vdwg.mxu0
    %v4424 = vsel %vm4233, %v4324, 0
    %v4427 = vsel %vm4333, %v3857, 0
    %4429 = vmatprep.subr.bf16.mxu0 0
    %4430 = vmatpush1.bf16.msra.mxu0 %v4427
    %4431 = vmatprep.subr.bf16.mxu0 0
    %4432 = vmatpush1.bf16.msra.mxu0 0
    %4433 = vmatprep.subr.bf16.mxu0 0
    %4434 = vmatpush1.bf16.msra.mxu0 0
    %4435 = vmatprep.subr.bf16.mxu0 0
    %4436 = vmatpush1.bf16.msra.mxu0 0
    %4437 = vmatprep.subr.bf16.mxu0 0
    %4438 = vmatpush1.bf16.msra.mxu0 0
    %4439 = vmatprep.subr.bf16.mxu0 0
    %4440 = vmatpush1.bf16.msra.mxu0 0
    %4441 = vmatprep.subr.bf16.mxu0 0
    %4442 = vmatpush1.bf16.msra.mxu0 0
    %4443 = vmatprep.subr.bf16.mxu0 0
    %4444 = vmatpush1.bf16.msra.mxu0 0
    %4445 = vmatprep.subr.bf16.mxu0 0
    %4446 = vmatpush1.bf16.msra.mxu0 0
    %4447 = vmatprep.subr.bf16.mxu0 0
    %4448 = vmatpush1.bf16.msra.mxu0 0
    %4449 = vmatprep.subr.bf16.mxu0 0
    %4450 = vmatpush1.bf16.msra.mxu0 0
    %4451 = vmatprep.subr.bf16.mxu0 0
    %4452 = vmatpush1.bf16.msra.mxu0 0
    %4453 = vmatprep.subr.bf16.mxu0 0
    %4454 = vmatpush1.bf16.msra.mxu0 0
    %4455 = vmatprep.subr.bf16.mxu0 0
    %4456 = vmatpush1.bf16.msra.mxu0 0
    %4457 = vmatprep.subr.bf16.mxu0 0
    %4458 = vmatpush1.bf16.msra.mxu0 0
    %4459 = vmatprep.subr.bf16.mxu0 0
    %4460 = vmatpush1.bf16.msra.mxu0 0
    %4461 = vmatprep.mubr.bf16.mxu0 0
    %4462 = vmatmul.mubr.bf16.gmra.mrb[0].mxu0 %v4424
    %v4463 = vpop.f32.mrb[0].mxu0
    %v4464 = vadd.f32 0.0, %v4463
    %v4465 = vpop.f32.mrb[0].mxu0
    %v4466 = vpop.f32.mrb[0].mxu0
    %v4467 = vpop.f32.mrb[0].mxu0
    %4468 = vdwg.mxu0
    %v4470 = vsel %vm4233, %v4325, 0
    %v4473 = vsel %vm4333, %v3858, 0
    %4475 = vmatprep.subr.bf16.mxu0 0
    %4476 = vmatpush1.bf16.msra.mxu0 %v4473
    %4477 = vmatprep.subr.bf16.mxu0 0
    %4478 = vmatpush1.bf16.msra.mxu0 0
    %4479 = vmatprep.subr.bf16.mxu0 0
    %4480 = vmatpush1.bf16.msra.mxu0 0
    %4481 = vmatprep.subr.bf16.mxu0 0
    %4482 = vmatpush1.bf16.msra.mxu0 0
    %4483 = vmatprep.subr.bf16.mxu0 0
    %4484 = vmatpush1.bf16.msra.mxu0 0
    %4485 = vmatprep.subr.bf16.mxu0 0
    %4486 = vmatpush1.bf16.msra.mxu0 0
    %4487 = vmatprep.subr.bf16.mxu0 0
    %4488 = vmatpush1.bf16.msra.mxu0 0
    %4489 = vmatprep.subr.bf16.mxu0 0
    %4490 = vmatpush1.bf16.msra.mxu0 0
    %4491 = vmatprep.subr.bf16.mxu0 0
    %4492 = vmatpush1.bf16.msra.mxu0 0
    %4493 = vmatprep.subr.bf16.mxu0 0
    %4494 = vmatpush1.bf16.msra.mxu0 0
    %4495 = vmatprep.subr.bf16.mxu0 0
    %4496 = vmatpush1.bf16.msra.mxu0 0
    %4497 = vmatprep.subr.bf16.mxu0 0
    %4498 = vmatpush1.bf16.msra.mxu0 0
    %4499 = vmatprep.subr.bf16.mxu0 0
    %4500 = vmatpush1.bf16.msra.mxu0 0
    %4501 = vmatprep.subr.bf16.mxu0 0
    %4502 = vmatpush1.bf16.msra.mxu0 0
    %4503 = vmatprep.subr.bf16.mxu0 0
    %4504 = vmatpush1.bf16.msra.mxu0 0
    %4505 = vmatprep.subr.bf16.mxu0 0
    %4506 = vmatpush1.bf16.msra.mxu0 0
    %4507 = vmatprep.mubr.bf16.mxu0 0
    %4508 = vmatmul.mubr.bf16.gmra.mrb[0].mxu0 %v4470
    %v4509 = vpop.f32.mrb[0].mxu0
    %v4510 = vadd.f32 0.0, %v4509
    %v4511 = vpop.f32.mrb[0].mxu0
    %v4512 = vpop.f32.mrb[0].mxu0
    %v4513 = vpop.f32.mrb[0].mxu0
    %4514 = vdwg.mxu0
    %v4516 = vsel %vm4233, %v4326, 0
    %v4519 = vsel %vm4333, %v3859, 0
    %4521 = vmatprep.subr.bf16.mxu0 0
    %4522 = vmatpush1.bf16.msra.mxu0 %v4519
    %4523 = vmatprep.subr.bf16.mxu0 0
    %4524 = vmatpush1.bf16.msra.mxu0 0
    %4525 = vmatprep.subr.bf16.mxu0 0
    %4526 = vmatpush1.bf16.msra.mxu0 0
    %4527 = vmatprep.subr.bf16.mxu0 0
    %4528 = vmatpush1.bf16.msra.mxu0 0
    %4529 = vmatprep.subr.bf16.mxu0 0
    %4530 = vmatpush1.bf16.msra.mxu0 0
    %4531 = vmatprep.subr.bf16.mxu0 0
    %4532 = vmatpush1.bf16.msra.mxu0 0
    %4533 = vmatprep.subr.bf16.mxu0 0
    %4534 = vmatpush1.bf16.msra.mxu0 0
    %4535 = vmatprep.subr.bf16.mxu0 0
    %4536 = vmatpush1.bf16.msra.mxu0 0
    %4537 = vmatprep.subr.bf16.mxu0 0
    %4538 = vmatpush1.bf16.msra.mxu0 0
    %4539 = vmatprep.subr.bf16.mxu0 0
    %4540 = vmatpush1.bf16.msra.mxu0 0
    %4541 = vmatprep.subr.bf16.mxu0 0
    %4542 = vmatpush1.bf16.msra.mxu0 0
    %4543 = vmatprep.subr.bf16.mxu0 0
    %4544 = vmatpush1.bf16.msra.mxu0 0
    %4545 = vmatprep.subr.bf16.mxu0 0
    %4546 = vmatpush1.bf16.msra.mxu0 0
    %4547 = vmatprep.subr.bf16.mxu0 0
    %4548 = vmatpush1.bf16.msra.mxu0 0
    %4549 = vmatprep.subr.bf16.mxu0 0
    %4550 = vmatpush1.bf16.msra.mxu0 0
    %4551 = vmatprep.subr.bf16.mxu0 0
    %4552 = vmatpush1.bf16.msra.mxu0 0
    %4553 = vmatprep.mubr.bf16.mxu0 0
    %4554 = vmatmul.mubr.bf16.gmra.mrb[0].mxu0 %v4516
    %v4555 = vpop.f32.mrb[0].mxu0
    %v4556 = vadd.f32 0.0, %v4555
    %v4557 = vpop.f32.mrb[0].mxu0
    %v4558 = vpop.f32.mrb[0].mxu0
    %v4559 = vpop.f32.mrb[0].mxu0
    %4560 = vdwg.mxu0
    %v4562 = vsel %vm4233, %v4327, 0
    %v4565 = vsel %vm4333, %v3860, 0
    %4567 = vmatprep.subr.bf16.mxu0 0
    %4568 = vmatpush1.bf16.msra.mxu0 %v4565
    %4569 = vmatprep.subr.bf16.mxu0 0
    %4570 = vmatpush1.bf16.msra.mxu0 0
    %4571 = vmatprep.subr.bf16.mxu0 0
    %4572 = vmatpush1.bf16.msra.mxu0 0
    %4573 = vmatprep.subr.bf16.mxu0 0
    %4574 = vmatpush1.bf16.msra.mxu0 0
    %4575 = vmatprep.subr.bf16.mxu0 0
    %4576 = vmatpush1.bf16.msra.mxu0 0
    %4577 = vmatprep.subr.bf16.mxu0 0
    %4578 = vmatpush1.bf16.msra.mxu0 0
    %4579 = vmatprep.subr.bf16.mxu0 0
    %4580 = vmatpush1.bf16.msra.mxu0 0
    %4581 = vmatprep.subr.bf16.mxu0 0
    %4582 = vmatpush1.bf16.msra.mxu0 0
    %4583 = vmatprep.subr.bf16.mxu0 0
    %4584 = vmatpush1.bf16.msra.mxu0 0
    %4585 = vmatprep.subr.bf16.mxu0 0
    %4586 = vmatpush1.bf16.msra.mxu0 0
    %4587 = vmatprep.subr.bf16.mxu0 0
    %4588 = vmatpush1.bf16.msra.mxu0 0
    %4589 = vmatprep.subr.bf16.mxu0 0
    %4590 = vmatpush1.bf16.msra.mxu0 0
    %4591 = vmatprep.subr.bf16.mxu0 0
    %4592 = vmatpush1.bf16.msra.mxu0 0
    %4593 = vmatprep.subr.bf16.mxu0 0
    %4594 = vmatpush1.bf16.msra.mxu0 0
    %4595 = vmatprep.subr.bf16.mxu0 0
    %4596 = vmatpush1.bf16.msra.mxu0 0
    %4597 = vmatprep.subr.bf16.mxu0 0
    %4598 = vmatpush1.bf16.msra.mxu0 0
    %4599 = vmatprep.mubr.bf16.mxu0 0
    %4600 = vmatmul.mubr.bf16.gmra.mrb[0].mxu0 %v4562
    %v4601 = vpop.f32.mrb[0].mxu0
    %v4602 = vadd.f32 0.0, %v4601
    %v4603 = vpop.f32.mrb[0].mxu0
    %v4604 = vpop.f32.mrb[0].mxu0
    %v4605 = vpop.f32.mrb[0].mxu0
    %4606 = vdwg.mxu0
    %v4608 = vsel %vm4233, %v4328, 0
    %v4611 = vsel %vm4333, %v3861, 0
    %4613 = vmatprep.subr.bf16.mxu0 0
    %4614 = vmatpush1.bf16.msra.mxu0 %v4611
    %4615 = vmatprep.subr.bf16.mxu0 0
    %4616 = vmatpush1.bf16.msra.mxu0 0
    %4617 = vmatprep.subr.bf16.mxu0 0
    %4618 = vmatpush1.bf16.msra.mxu0 0
    %4619 = vmatprep.subr.bf16.mxu0 0
    %4620 = vmatpush1.bf16.msra.mxu0 0
    %4621 = vmatprep.subr.bf16.mxu0 0
    %4622 = vmatpush1.bf16.msra.mxu0 0
    %4623 = vmatprep.subr.bf16.mxu0 0
    %4624 = vmatpush1.bf16.msra.mxu0 0
    %4625 = vmatprep.subr.bf16.mxu0 0
    %4626 = vmatpush1.bf16.msra.mxu0 0
    %4627 = vmatprep.subr.bf16.mxu0 0
    %4628 = vmatpush1.bf16.msra.mxu0 0
    %4629 = vmatprep.subr.bf16.mxu0 0
    %4630 = vmatpush1.bf16.msra.mxu0 0
    %4631 = vmatprep.subr.bf16.mxu0 0
    %4632 = vmatpush1.bf16.msra.mxu0 0
    %4633 = vmatprep.subr.bf16.mxu0 0
    %4634 = vmatpush1.bf16.msra.mxu0 0
    %4635 = vmatprep.subr.bf16.mxu0 0
    %4636 = vmatpush1.bf16.msra.mxu0 0
    %4637 = vmatprep.subr.bf16.mxu0 0
    %4638 = vmatpush1.bf16.msra.mxu0 0
    %4639 = vmatprep.subr.bf16.mxu0 0
    %4640 = vmatpush1.bf16.msra.mxu0 0
    %4641 = vmatprep.subr.bf16.mxu0 0
    %4642 = vmatpush1.bf16.msra.mxu0 0
    %4643 = vmatprep.subr.bf16.mxu0 0
    %4644 = vmatpush1.bf16.msra.mxu0 0
    %4645 = vmatprep.mubr.bf16.mxu0 0
    %4646 = vmatmul.mubr.bf16.gmra.mrb[0].mxu0 %v4608
    %v4647 = vpop.f32.mrb[0].mxu0
    %v4648 = vadd.f32 0.0, %v4647
    %v4649 = vpop.f32.mrb[0].mxu0
    %v4650 = vpop.f32.mrb[0].mxu0
    %v4651 = vpop.f32.mrb[0].mxu0
    %4652 = vdwg.mxu0
    %v4654 = vsel %vm4233, %v4329, 0
    %v4657 = vsel %vm4333, %v3862, 0
    %4659 = vmatprep.subr.bf16.mxu0 0
    %4660 = vmatpush1.bf16.msra.mxu0 %v4657
    %4661 = vmatprep.subr.bf16.mxu0 0
    %4662 = vmatpush1.bf16.msra.mxu0 0
    %4663 = vmatprep.subr.bf16.mxu0 0
    %4664 = vmatpush1.bf16.msra.mxu0 0
    %4665 = vmatprep.subr.bf16.mxu0 0
    %4666 = vmatpush1.bf16.msra.mxu0 0
    %4667 = vmatprep.subr.bf16.mxu0 0
    %4668 = vmatpush1.bf16.msra.mxu0 0
    %4669 = vmatprep.subr.bf16.mxu0 0
    %4670 = vmatpush1.bf16.msra.mxu0 0
    %4671 = vmatprep.subr.bf16.mxu0 0
    %4672 = vmatpush1.bf16.msra.mxu0 0
    %4673 = vmatprep.subr.bf16.mxu0 0
    %4674 = vmatpush1.bf16.msra.mxu0 0
    %4675 = vmatprep.subr.bf16.mxu0 0
    %4676 = vmatpush1.bf16.msra.mxu0 0
    %4677 = vmatprep.subr.bf16.mxu0 0
    %4678 = vmatpush1.bf16.msra.mxu0 0
    %4679 = vmatprep.subr.bf16.mxu0 0
    %4680 = vmatpush1.bf16.msra.mxu0 0
    %4681 = vmatprep.subr.bf16.mxu0 0
    %4682 = vmatpush1.bf16.msra.mxu0 0
    %4683 = vmatprep.subr.bf16.mxu0 0
    %4684 = vmatpush1.bf16.msra.mxu0 0
    %4685 = vmatprep.subr.bf16.mxu0 0
    %4686 = vmatpush1.bf16.msra.mxu0 0
    %4687 = vmatprep.subr.bf16.mxu0 0
    %4688 = vmatpush1.bf16.msra.mxu0 0
    %4689 = vmatprep.subr.bf16.mxu0 0
    %4690 = vmatpush1.bf16.msra.mxu0 0
    %4691 = vmatprep.mubr.bf16.mxu0 0
    %4692 = vmatmul.mubr.bf16.gmra.mrb[0].mxu0 %v4654
    %v4693 = vpop.f32.mrb[0].mxu0
    %v4694 = vadd.f32 0.0, %v4693
    %v4695 = vpop.f32.mrb[0].mxu0
    %v4696 = vpop.f32.mrb[0].mxu0
    %v4697 = vpop.f32.mrb[0].mxu0
    %4698 = vdwg.mxu0
    %v4699 = vcombine.low %v4372, %v4464
    %v4700 = vcombine.high %v4372, %v4464
    %v4702 = vunpack.c.l.s4 1983009808
    %v4703 = vunpack.c.0.s8 %v4702
    %v4704 = vlaneseq
    %v4705 = vshrl.u32 %v4704, 7
    %v4706 = vsub.s32 %v4703, %v4705
    %v4707 = vrot.slane %v4699, %v4706
    %v4709 = vunpack.c.l.s4 1983009808
    %v4710 = vunpack.c.0.s8 %v4709
    %v4711 = vlaneseq
    %v4712 = vshrl.u32 %v4711, 7
    %v4713 = vsub.s32 %v4710, %v4712
    %v4714 = vrot.slane %v4700, %v4713
    %v4715 = vcombine.low %v4418, %v4510
    %v4716 = vcombine.high %v4418, %v4510
    %v4718 = vunpack.c.l.s4 1983009808
    %v4719 = vunpack.c.0.s8 %v4718
    %v4720 = vlaneseq
    %v4721 = vshrl.u32 %v4720, 7
    %v4722 = vsub.s32 %v4719, %v4721
    %v4723 = vrot.slane %v4715, %v4722
    %v4725 = vunpack.c.l.s4 1983009808
    %v4726 = vunpack.c.0.s8 %v4725
    %v4727 = vlaneseq
    %v4728 = vshrl.u32 %v4727, 7
    %v4729 = vsub.s32 %v4726, %v4728
    %v4730 = vrot.slane %v4716, %v4729
    %v4731 = vcombine.low %v4556, %v4648
    %v4732 = vcombine.high %v4556, %v4648
    %v4734 = vunpack.c.l.s4 1983009808
    %v4735 = vunpack.c.0.s8 %v4734
    %v4736 = vlaneseq
    %v4737 = vshrl.u32 %v4736, 7
    %v4738 = vsub.s32 %v4735, %v4737
    %v4739 = vrot.slane %v4731, %v4738
    %v4741 = vunpack.c.l.s4 1983009808
    %v4742 = vunpack.c.0.s8 %v4741
    %v4743 = vlaneseq
    %v4744 = vshrl.u32 %v4743, 7
    %v4745 = vsub.s32 %v4742, %v4744
    %v4746 = vrot.slane %v4732, %v4745
    %v4747 = vcombine.low %v4602, %v4694
    %v4748 = vcombine.high %v4602, %v4694
    %v4750 = vunpack.c.l.s4 1983009808
    %v4751 = vunpack.c.0.s8 %v4750
    %v4752 = vlaneseq
    %v4753 = vshrl.u32 %v4752, 7
    %v4754 = vsub.s32 %v4751, %v4753
    %v4755 = vrot.slane %v4747, %v4754
    %v4757 = vunpack.c.l.s4 1983009808
    %v4758 = vunpack.c.0.s8 %v4757
    %v4759 = vlaneseq
    %v4760 = vshrl.u32 %v4759, 7
    %v4761 = vsub.s32 %v4758, %v4760
    %v4762 = vrot.slane %v4748, %v4761
    %v4763 = vcombine.low %v4707, %v4723
    %v4764 = vcombine.high %v4707, %v4723
    %v4766 = vunpack.c.l.s4 1934713408
    %v4767 = vunpack.c.0.s8 %v4766
    %v4768 = vlaneseq
    %v4769 = vshrl.u32 %v4768, 7
    %v4770 = vsub.s32 %v4767, %v4769
    %v4771 = vrot.slane %v4763, %v4770
    %v4773 = vunpack.c.l.s4 1934713408
    %v4774 = vunpack.c.0.s8 %v4773
    %v4775 = vlaneseq
    %v4776 = vshrl.u32 %v4775, 7
    %v4777 = vsub.s32 %v4774, %v4776
    %v4778 = vrot.slane %v4764, %v4777
    %v4779 = vcombine.low %v4714, %v4730
    %v4780 = vcombine.high %v4714, %v4730
    %v4782 = vunpack.c.l.s4 1934713408
    %v4783 = vunpack.c.0.s8 %v4782
    %v4784 = vlaneseq
    %v4785 = vshrl.u32 %v4784, 7
    %v4786 = vsub.s32 %v4783, %v4785
    %v4787 = vrot.slane %v4779, %v4786
    %v4789 = vunpack.c.l.s4 1934713408
    %v4790 = vunpack.c.0.s8 %v4789
    %v4791 = vlaneseq
    %v4792 = vshrl.u32 %v4791, 7
    %v4793 = vsub.s32 %v4790, %v4792
    %v4794 = vrot.slane %v4780, %v4793
    %v4795 = vcombine.low %v4739, %v4755
    %v4796 = vcombine.high %v4739, %v4755
    %v4798 = vunpack.c.l.s4 1934713408
    %v4799 = vunpack.c.0.s8 %v4798
    %v4800 = vlaneseq
    %v4801 = vshrl.u32 %v4800, 7
    %v4802 = vsub.s32 %v4799, %v4801
    %v4803 = vrot.slane %v4795, %v4802
    %v4805 = vunpack.c.l.s4 1934713408
    %v4806 = vunpack.c.0.s8 %v4805
    %v4807 = vlaneseq
    %v4808 = vshrl.u32 %v4807, 7
    %v4809 = vsub.s32 %v4806, %v4808
    %v4810 = vrot.slane %v4796, %v4809
    %v4811 = vcombine.low %v4746, %v4762
    %v4812 = vcombine.high %v4746, %v4762
    %v4814 = vunpack.c.l.s4 1934713408
    %v4815 = vunpack.c.0.s8 %v4814
    %v4816 = vlaneseq
    %v4817 = vshrl.u32 %v4816, 7
    %v4818 = vsub.s32 %v4815, %v4817
    %v4819 = vrot.slane %v4811, %v4818
    %v4821 = vunpack.c.l.s4 1934713408
    %v4822 = vunpack.c.0.s8 %v4821
    %v4823 = vlaneseq
    %v4824 = vshrl.u32 %v4823, 7
    %v4825 = vsub.s32 %v4822, %v4824
    %v4826 = vrot.slane %v4812, %v4825
    %v4827 = vcombine.low %v4771, %v4803
    %v4828 = vcombine.high %v4771, %v4803
    %v4829 = vcombine.low %v4778, %v4810
    %v4830 = vcombine.high %v4778, %v4810
    %v4831 = vcombine.low %v4787, %v4819
    %v4832 = vcombine.high %v4787, %v4819
    %v4833 = vcombine.low %v4794, %v4826
    %v4834 = vcombine.high %v4794, %v4826
    %v4835 = vcombine.low %v4827, %v4829
    %v4836 = vcombine.high %v4827, %v4829
    %v4838 = vunpack.c.l.s4 1983009808
    %v4839 = vunpack.c.0.s8 %v4838
    %v4840 = vlaneseq
    %v4841 = vshrl.u32 %v4840, 7
    %v4842 = vsub.s32 %v4839, %v4841
    %v4843 = vrot.slane %v4835, %v4842
    %v4845 = vunpack.c.l.s4 1983009808
    %v4846 = vunpack.c.0.s8 %v4845
    %v4847 = vlaneseq
    %v4848 = vshrl.u32 %v4847, 7
    %v4849 = vsub.s32 %v4846, %v4848
    %v4850 = vrot.slane %v4836, %v4849
    %v4851 = vcombine.low %v4828, %v4830
    %v4852 = vcombine.high %v4828, %v4830
    %v4854 = vunpack.c.l.s4 1983009808
    %v4855 = vunpack.c.0.s8 %v4854
    %v4856 = vlaneseq
    %v4857 = vshrl.u32 %v4856, 7
    %v4858 = vsub.s32 %v4855, %v4857
    %v4859 = vrot.slane %v4851, %v4858
    %v4861 = vunpack.c.l.s4 1983009808
    %v4862 = vunpack.c.0.s8 %v4861
    %v4863 = vlaneseq
    %v4864 = vshrl.u32 %v4863, 7
    %v4865 = vsub.s32 %v4862, %v4864
    %v4866 = vrot.slane %v4852, %v4865
    %v4867 = vcombine.low %v4831, %v4833
    %v4868 = vcombine.high %v4831, %v4833
    %v4870 = vunpack.c.l.s4 1983009808
    %v4871 = vunpack.c.0.s8 %v4870
    %v4872 = vlaneseq
    %v4873 = vshrl.u32 %v4872, 7
    %v4874 = vsub.s32 %v4871, %v4873
    %v4875 = vrot.slane %v4867, %v4874
    %v4877 = vunpack.c.l.s4 1983009808
    %v4878 = vunpack.c.0.s8 %v4877
    %v4879 = vlaneseq
    %v4880 = vshrl.u32 %v4879, 7
    %v4881 = vsub.s32 %v4878, %v4880
    %v4882 = vrot.slane %v4868, %v4881
    %v4883 = vcombine.low %v4832, %v4834
    %v4884 = vcombine.high %v4832, %v4834
    %v4886 = vunpack.c.l.s4 1983009808
    %v4887 = vunpack.c.0.s8 %v4886
    %v4888 = vlaneseq
    %v4889 = vshrl.u32 %v4888, 7
    %v4890 = vsub.s32 %v4887, %v4889
    %v4891 = vrot.slane %v4883, %v4890
    %v4893 = vunpack.c.l.s4 1983009808
    %v4894 = vunpack.c.0.s8 %v4893
    %v4895 = vlaneseq
    %v4896 = vshrl.u32 %v4895, 7
    %v4897 = vsub.s32 %v4894, %v4896
    %v4898 = vrot.slane %v4884, %v4897
    %v4899 = vcombine.low %v4843, %v4859
    %v4900 = vcombine.high %v4843, %v4859
    %v4902 = vunpack.c.l.s4 1934713408
    %v4903 = vunpack.c.0.s8 %v4902
    %v4904 = vlaneseq
    %v4905 = vshrl.u32 %v4904, 7
    %v4906 = vsub.s32 %v4903, %v4905
    %v4907 = vrot.slane %v4899, %v4906
    %v4909 = vunpack.c.l.s4 1934713408
    %v4910 = vunpack.c.0.s8 %v4909
    %v4911 = vlaneseq
    %v4912 = vshrl.u32 %v4911, 7
    %v4913 = vsub.s32 %v4910, %v4912
    %v4914 = vrot.slane %v4900, %v4913
    %v4915 = vcombine.low %v4850, %v4866
    %v4916 = vcombine.high %v4850, %v4866
    %v4918 = vunpack.c.l.s4 1934713408
    %v4919 = vunpack.c.0.s8 %v4918
    %v4920 = vlaneseq
    %v4921 = vshrl.u32 %v4920, 7
    %v4922 = vsub.s32 %v4919, %v4921
    %v4923 = vrot.slane %v4915, %v4922
    %v4925 = vunpack.c.l.s4 1934713408
    %v4926 = vunpack.c.0.s8 %v4925
    %v4927 = vlaneseq
    %v4928 = vshrl.u32 %v4927, 7
    %v4929 = vsub.s32 %v4926, %v4928
    %v4930 = vrot.slane %v4916, %v4929
    %v4931 = vcombine.low %v4875, %v4891
    %v4932 = vcombine.high %v4875, %v4891
    %v4934 = vunpack.c.l.s4 1934713408
    %v4935 = vunpack.c.0.s8 %v4934
    %v4936 = vlaneseq
    %v4937 = vshrl.u32 %v4936, 7
    %v4938 = vsub.s32 %v4935, %v4937
    %v4939 = vrot.slane %v4931, %v4938
    %v4941 = vunpack.c.l.s4 1934713408
    %v4942 = vunpack.c.0.s8 %v4941
    %v4943 = vlaneseq
    %v4944 = vshrl.u32 %v4943, 7
    %v4945 = vsub.s32 %v4942, %v4944
    %v4946 = vrot.slane %v4932, %v4945
    %v4947 = vcombine.low %v4882, %v4898
    %v4948 = vcombine.high %v4882, %v4898
    %v4950 = vunpack.c.l.s4 1934713408
    %v4951 = vunpack.c.0.s8 %v4950
    %v4952 = vlaneseq
    %v4953 = vshrl.u32 %v4952, 7
    %v4954 = vsub.s32 %v4951, %v4953
    %v4955 = vrot.slane %v4947, %v4954
    %v4957 = vunpack.c.l.s4 1934713408
    %v4958 = vunpack.c.0.s8 %v4957
    %v4959 = vlaneseq
    %v4960 = vshrl.u32 %v4959, 7
    %v4961 = vsub.s32 %v4958, %v4960
    %v4962 = vrot.slane %v4948, %v4961
    %v4963 = vcombine.low %v4907, %v4939
    %v4964 = vcombine.high %v4907, %v4939
    %v4965 = vcombine.low %v4914, %v4946
    %v4966 = vcombine.high %v4914, %v4946
    %v4967 = vcombine.low %v4923, %v4955
    %v4968 = vcombine.high %v4923, %v4955
    %v4969 = vcombine.low %v4930, %v4962
    %v4970 = vcombine.high %v4930, %v4962
    %4972 = vrot.lane.b32.xlu0 %v4964, 64
    %v4973 = vpop.permute.xlu0 %4972
    %4976 = vrot.lane.b32.xlu0 %v4966, 64
    %v4977 = vpop.permute.xlu0 %4976
    %4980 = vrot.lane.b32.xlu0 %v4968, 64
    %v4981 = vpop.permute.xlu0 %4980
    %4984 = vrot.lane.b32.xlu0 %v4970, 64
    %v4985 = vpop.permute.xlu0 %4984
    %v4987 = vsel %vm3864, %v4963, %v4973
    %v4988 = vsel %vm3864, %v4965, %v4977
    %v4989 = vsel %vm3864, %v4967, %v4981
    %v4990 = vsel %vm3864, %v4969, %v4985
    %v4991 = vpack.c.bf16 %v4987, %v4987
    %v4992 = vpack.c.bf16 %v4988, %v4988
    %v4993 = vpack.c.bf16 %v4989, %v4989
    %v4994 = vpack.c.bf16 %v4990, %v4990
    %v4995 = vld [vmem:[#allocation8] sm:$0xff]
    %v4996 = vld [vmem:[#allocation8 + $0x8] sm:$0xff]
    %v4997 = vld [vmem:[#allocation8 + $0x10] sm:$0xff]
    %v4998 = vld [vmem:[#allocation8 + $0x18] sm:$0xff]
    %v4999 = vld [vmem:[#allocation8 + $0x20] sm:$0xff]
    %v5000 = vld [vmem:[#allocation8 + $0x28] sm:$0xff]
    %v5001 = vld [vmem:[#allocation8 + $0x30] sm:$0xff]
    %v5002 = vld [vmem:[#allocation8 + $0x38] sm:$0xff]
    %v5003 = vld [vmem:[#allocation8 + $0x40] sm:$0xff]
    %v5004 = vld [vmem:[#allocation8 + $0x48] sm:$0xff]
    %v5005 = vld [vmem:[#allocation8 + $0x50] sm:$0xff]
    %v5006 = vld [vmem:[#allocation8 + $0x58] sm:$0xff]
    %v5007 = vld [vmem:[#allocation8 + $0x60] sm:$0xff]
    %v5008 = vld [vmem:[#allocation8 + $0x68] sm:$0xff]
    %v5009 = vld [vmem:[#allocation8 + $0x70] sm:$0xff]
    %v5010 = vld [vmem:[#allocation8 + $0x78] sm:$0xff]
    %v5011 = vld [vmem:[#allocation8 + $0x80] sm:$0xff]
    %v5012 = vld [vmem:[#allocation8 + $0x88] sm:$0xff]
    %v5013 = vld [vmem:[#allocation8 + $0x90] sm:$0xff]
    %v5014 = vld [vmem:[#allocation8 + $0x98] sm:$0xff]
    %v5015 = vld [vmem:[#allocation8 + $0xa0] sm:$0xff]
    %v5016 = vld [vmem:[#allocation8 + $0xa8] sm:$0xff]
    %v5017 = vld [vmem:[#allocation8 + $0xb0] sm:$0xff]
    %v5018 = vld [vmem:[#allocation8 + $0xb8] sm:$0xff]
    %v5019 = vld [vmem:[#allocation8 + $0xc0] sm:$0xff]
    %v5020 = vld [vmem:[#allocation8 + $0xc8] sm:$0xff]
    %v5021 = vld [vmem:[#allocation8 + $0xd0] sm:$0xff]
    %v5022 = vld [vmem:[#allocation8 + $0xd8] sm:$0xff]
    %v5023 = vld [vmem:[#allocation8 + $0xe0] sm:$0xff]
    %v5024 = vld [vmem:[#allocation8 + $0xe8] sm:$0xff]
    %v5025 = vld [vmem:[#allocation8 + $0xf0] sm:$0xff]
    %v5026 = vld [vmem:[#allocation8 + $0xf8] sm:$0xff]
    %v5027 = vld [vmem:[#allocation8 + $0x100] sm:$0xff]
    %v5028 = vld [vmem:[#allocation8 + $0x108] sm:$0xff]
    %v5029 = vld [vmem:[#allocation8 + $0x110] sm:$0xff]
    %v5030 = vld [vmem:[#allocation8 + $0x118] sm:$0xff]
    %v5031 = vld [vmem:[#allocation8 + $0x120] sm:$0xff]
    %v5032 = vld [vmem:[#allocation8 + $0x128] sm:$0xff]
    %v5033 = vld [vmem:[#allocation8 + $0x130] sm:$0xff]
    %v5034 = vld [vmem:[#allocation8 + $0x138] sm:$0xff]
    %v5035 = vld [vmem:[#allocation8 + $0x140] sm:$0xff]
    %v5036 = vld [vmem:[#allocation8 + $0x148] sm:$0xff]
    %v5037 = vld [vmem:[#allocation8 + $0x150] sm:$0xff]
    %v5038 = vld [vmem:[#allocation8 + $0x158] sm:$0xff]
    %v5039 = vld [vmem:[#allocation8 + $0x160] sm:$0xff]
    %v5040 = vld [vmem:[#allocation8 + $0x168] sm:$0xff]
    %v5041 = vld [vmem:[#allocation8 + $0x170] sm:$0xff]
    %v5042 = vld [vmem:[#allocation8 + $0x178] sm:$0xff]
    %v5043 = vld [vmem:[#allocation8 + $0x180] sm:$0xff]
    %v5044 = vld [vmem:[#allocation8 + $0x188] sm:$0xff]
    %v5045 = vld [vmem:[#allocation8 + $0x190] sm:$0xff]
    %v5046 = vld [vmem:[#allocation8 + $0x198] sm:$0xff]
    %v5047 = vld [vmem:[#allocation8 + $0x1a0] sm:$0xff]
    %v5048 = vld [vmem:[#allocation8 + $0x1a8] sm:$0xff]
    %v5049 = vld [vmem:[#allocation8 + $0x1b0] sm:$0xff]
    %v5050 = vld [vmem:[#allocation8 + $0x1b8] sm:$0xff]
    %v5051 = vld [vmem:[#allocation8 + $0x1c0] sm:$0xff]
    %v5052 = vld [vmem:[#allocation8 + $0x1c8] sm:$0xff]
    %v5053 = vld [vmem:[#allocation8 + $0x1d0] sm:$0xff]
    %v5054 = vld [vmem:[#allocation8 + $0x1d8] sm:$0xff]
    %v5055 = vld [vmem:[#allocation8 + $0x1e0] sm:$0xff]
    %v5056 = vld [vmem:[#allocation8 + $0x1e8] sm:$0xff]
    %v5057 = vld [vmem:[#allocation8 + $0x1f0] sm:$0xff]
    %v5058 = vld [vmem:[#allocation8 + $0x1f8] sm:$0xff]
    %v5059 = vld [vmem:[#allocation8 + $0x200] sm:$0xff]
    %v5060 = vld [vmem:[#allocation8 + $0x208] sm:$0xff]
    %v5061 = vld [vmem:[#allocation8 + $0x210] sm:$0xff]
    %v5062 = vld [vmem:[#allocation8 + $0x218] sm:$0xff]
    %v5063 = vld [vmem:[#allocation8 + $0x220] sm:$0xff]
    %v5064 = vld [vmem:[#allocation8 + $0x228] sm:$0xff]
    %v5065 = vld [vmem:[#allocation8 + $0x230] sm:$0xff]
    %v5066 = vld [vmem:[#allocation8 + $0x238] sm:$0xff]
    %v5067 = vld [vmem:[#allocation8 + $0x240] sm:$0xff]
    %v5068 = vld [vmem:[#allocation8 + $0x248] sm:$0xff]
    %v5069 = vld [vmem:[#allocation8 + $0x250] sm:$0xff]
    %v5070 = vld [vmem:[#allocation8 + $0x258] sm:$0xff]
    %v5071 = vld [vmem:[#allocation8 + $0x260] sm:$0xff]
    %v5072 = vld [vmem:[#allocation8 + $0x268] sm:$0xff]
    %v5073 = vld [vmem:[#allocation8 + $0x270] sm:$0xff]
    %v5074 = vld [vmem:[#allocation8 + $0x278] sm:$0xff]
    %v5075 = vld [vmem:[#allocation8 + $0x280] sm:$0xff]
    %v5076 = vld [vmem:[#allocation8 + $0x288] sm:$0xff]
    %v5077 = vld [vmem:[#allocation8 + $0x290] sm:$0xff]
    %v5078 = vld [vmem:[#allocation8 + $0x298] sm:$0xff]
    %v5079 = vld [vmem:[#allocation8 + $0x2a0] sm:$0xff]
    %v5080 = vld [vmem:[#allocation8 + $0x2a8] sm:$0xff]
    %v5081 = vld [vmem:[#allocation8 + $0x2b0] sm:$0xff]
    %v5082 = vld [vmem:[#allocation8 + $0x2b8] sm:$0xff]
    %v5083 = vld [vmem:[#allocation8 + $0x2c0] sm:$0xff]
    %v5084 = vld [vmem:[#allocation8 + $0x2c8] sm:$0xff]
    %v5085 = vld [vmem:[#allocation8 + $0x2d0] sm:$0xff]
    %v5086 = vld [vmem:[#allocation8 + $0x2d8] sm:$0xff]
    %v5087 = vld [vmem:[#allocation8 + $0x2e0] sm:$0xff]
    %v5088 = vld [vmem:[#allocation8 + $0x2e8] sm:$0xff]
    %v5089 = vld [vmem:[#allocation8 + $0x2f0] sm:$0xff]
    %v5090 = vld [vmem:[#allocation8 + $0x2f8] sm:$0xff]
    %v5091 = vld [vmem:[#allocation8 + $0x300] sm:$0xff]
    %v5092 = vld [vmem:[#allocation8 + $0x308] sm:$0xff]
    %v5093 = vld [vmem:[#allocation8 + $0x310] sm:$0xff]
    %v5094 = vld [vmem:[#allocation8 + $0x318] sm:$0xff]
    %v5095 = vld [vmem:[#allocation8 + $0x320] sm:$0xff]
    %v5096 = vld [vmem:[#allocation8 + $0x328] sm:$0xff]
    %v5097 = vld [vmem:[#allocation8 + $0x330] sm:$0xff]
    %v5098 = vld [vmem:[#allocation8 + $0x338] sm:$0xff]
    %v5099 = vld [vmem:[#allocation8 + $0x340] sm:$0xff]
    %v5100 = vld [vmem:[#allocation8 + $0x348] sm:$0xff]
    %v5101 = vld [vmem:[#allocation8 + $0x350] sm:$0xff]
    %v5102 = vld [vmem:[#allocation8 + $0x358] sm:$0xff]
    %v5103 = vld [vmem:[#allocation8 + $0x360] sm:$0xff]
    %v5104 = vld [vmem:[#allocation8 + $0x368] sm:$0xff]
    %v5105 = vld [vmem:[#allocation8 + $0x370] sm:$0xff]
    %v5106 = vld [vmem:[#allocation8 + $0x378] sm:$0xff]
    %v5107 = vld [vmem:[#allocation8 + $0x380] sm:$0xff]
    %v5108 = vld [vmem:[#allocation8 + $0x388] sm:$0xff]
    %v5109 = vld [vmem:[#allocation8 + $0x390] sm:$0xff]
    %v5110 = vld [vmem:[#allocation8 + $0x398] sm:$0xff]
    %v5111 = vld [vmem:[#allocation8 + $0x3a0] sm:$0xff]
    %v5112 = vld [vmem:[#allocation8 + $0x3a8] sm:$0xff]
    %v5113 = vld [vmem:[#allocation8 + $0x3b0] sm:$0xff]
    %v5114 = vld [vmem:[#allocation8 + $0x3b8] sm:$0xff]
    %v5115 = vld [vmem:[#allocation8 + $0x3c0] sm:$0xff]
    %v5116 = vld [vmem:[#allocation8 + $0x3c8] sm:$0xff]
    %v5117 = vld [vmem:[#allocation8 + $0x3d0] sm:$0xff]
    %v5118 = vld [vmem:[#allocation8 + $0x3d8] sm:$0xff]
    %v5119 = vld [vmem:[#allocation8 + $0x3e0] sm:$0xff]
    %v5120 = vld [vmem:[#allocation8 + $0x3e8] sm:$0xff]
    %v5121 = vld [vmem:[#allocation8 + $0x3f0] sm:$0xff]
    %v5122 = vld [vmem:[#allocation8 + $0x3f8] sm:$0xff]
    %v5123 = vld [vmem:[#allocation10] sm:$0xf]
    %v5125 = vlaneseq
    %v5126 = vshrl.u32 %v5125, 7
    %v5127 = vsub.s32 0, %v5126
    %v5128 = vrot.slane %v5123, %v5127
    %v5129 = vlaneseq
    %v5130 = vshrl.u32 %v5129, 7
    %v5131 = vsub.s32 1, %v5130
    %v5132 = vrot.slane %v5123, %v5131
    %v5133 = vlaneseq
    %v5134 = vshrl.u32 %v5133, 7
    %v5135 = vsub.s32 2, %v5134
    %v5136 = vrot.slane %v5123, %v5135
    %v5137 = vlaneseq
    %v5138 = vshrl.u32 %v5137, 7
    %v5139 = vsub.s32 3, %v5138
    %v5140 = vrot.slane %v5123, %v5139
    %v5273 = vunpack.c.l.b16 %v4995
    %v5274 = vunpack.c.h.b16 %v4995
    %v5275 = vunpack.c.l.b16 %v4996
    %v5276 = vunpack.c.h.b16 %v4996
    %v5277 = vunpack.c.l.b16 %v4997
    %v5278 = vunpack.c.h.b16 %v4997
    %v5279 = vunpack.c.l.b16 %v4998
    %v5280 = vunpack.c.h.b16 %v4998
    %v5281 = vunpack.c.l.b16 %v4999
    %v5282 = vunpack.c.h.b16 %v4999
    %v5283 = vunpack.c.l.b16 %v5000
    %v5284 = vunpack.c.h.b16 %v5000
    %v5285 = vunpack.c.l.b16 %v5001
    %v5286 = vunpack.c.h.b16 %v5001
    %v5287 = vunpack.c.l.b16 %v5002
    %v5288 = vunpack.c.h.b16 %v5002
    %v5289 = vunpack.c.l.b16 %v5003
    %v5290 = vunpack.c.h.b16 %v5003
    %v5291 = vunpack.c.l.b16 %v5004
    %v5292 = vunpack.c.h.b16 %v5004
    %v5293 = vunpack.c.l.b16 %v5005
    %v5294 = vunpack.c.h.b16 %v5005
    %v5295 = vunpack.c.l.b16 %v5006
    %v5296 = vunpack.c.h.b16 %v5006
    %v5297 = vunpack.c.l.b16 %v5007
    %v5298 = vunpack.c.h.b16 %v5007
    %v5299 = vunpack.c.l.b16 %v5008
    %v5300 = vunpack.c.h.b16 %v5008
    %v5301 = vunpack.c.l.b16 %v5009
    %v5302 = vunpack.c.h.b16 %v5009
    %v5303 = vunpack.c.l.b16 %v5010
    %v5304 = vunpack.c.h.b16 %v5010
    %v5305 = vunpack.c.l.b16 %v5011
    %v5306 = vunpack.c.h.b16 %v5011
    %v5307 = vunpack.c.l.b16 %v5012
    %v5308 = vunpack.c.h.b16 %v5012
    %v5309 = vunpack.c.l.b16 %v5013
    %v5310 = vunpack.c.h.b16 %v5013
    %v5311 = vunpack.c.l.b16 %v5014
    %v5312 = vunpack.c.h.b16 %v5014
    %v5313 = vunpack.c.l.b16 %v5015
    %v5314 = vunpack.c.h.b16 %v5015
    %v5315 = vunpack.c.l.b16 %v5016
    %v5316 = vunpack.c.h.b16 %v5016
    %v5317 = vunpack.c.l.b16 %v5017
    %v5318 = vunpack.c.h.b16 %v5017
    %v5319 = vunpack.c.l.b16 %v5018
    %v5320 = vunpack.c.h.b16 %v5018
    %v5321 = vunpack.c.l.b16 %v5019
    %v5322 = vunpack.c.h.b16 %v5019
    %v5323 = vunpack.c.l.b16 %v5020
    %v5324 = vunpack.c.h.b16 %v5020
    %v5325 = vunpack.c.l.b16 %v5021
    %v5326 = vunpack.c.h.b16 %v5021
    %v5327 = vunpack.c.l.b16 %v5022
    %v5328 = vunpack.c.h.b16 %v5022
    %v5329 = vunpack.c.l.b16 %v5023
    %v5330 = vunpack.c.h.b16 %v5023
    %v5331 = vunpack.c.l.b16 %v5024
    %v5332 = vunpack.c.h.b16 %v5024
    %v5333 = vunpack.c.l.b16 %v5025
    %v5334 = vunpack.c.h.b16 %v5025
    %v5335 = vunpack.c.l.b16 %v5026
    %v5336 = vunpack.c.h.b16 %v5026
    %v5337 = vunpack.c.l.b16 %v5027
    %v5338 = vunpack.c.h.b16 %v5027
    %v5339 = vunpack.c.l.b16 %v5028
    %v5340 = vunpack.c.h.b16 %v5028
    %v5341 = vunpack.c.l.b16 %v5029
    %v5342 = vunpack.c.h.b16 %v5029
    %v5343 = vunpack.c.l.b16 %v5030
    %v5344 = vunpack.c.h.b16 %v5030
    %v5345 = vunpack.c.l.b16 %v5031
    %v5346 = vunpack.c.h.b16 %v5031
    %v5347 = vunpack.c.l.b16 %v5032
    %v5348 = vunpack.c.h.b16 %v5032
    %v5349 = vunpack.c.l.b16 %v5033
    %v5350 = vunpack.c.h.b16 %v5033
    %v5351 = vunpack.c.l.b16 %v5034
    %v5352 = vunpack.c.h.b16 %v5034
    %v5353 = vunpack.c.l.b16 %v5035
    %v5354 = vunpack.c.h.b16 %v5035
    %v5355 = vunpack.c.l.b16 %v5036
    %v5356 = vunpack.c.h.b16 %v5036
    %v5357 = vunpack.c.l.b16 %v5037
    %v5358 = vunpack.c.h.b16 %v5037
    %v5359 = vunpack.c.l.b16 %v5038
    %v5360 = vunpack.c.h.b16 %v5038
    %v5361 = vunpack.c.l.b16 %v5039
    %v5362 = vunpack.c.h.b16 %v5039
    %v5363 = vunpack.c.l.b16 %v5040
    %v5364 = vunpack.c.h.b16 %v5040
    %v5365 = vunpack.c.l.b16 %v5041
    %v5366 = vunpack.c.h.b16 %v5041
    %v5367 = vunpack.c.l.b16 %v5042
    %v5368 = vunpack.c.h.b16 %v5042
    %v5369 = vunpack.c.l.b16 %v5043
    %v5370 = vunpack.c.h.b16 %v5043
    %v5371 = vunpack.c.l.b16 %v5044
    %v5372 = vunpack.c.h.b16 %v5044
    %v5373 = vunpack.c.l.b16 %v5045
    %v5374 = vunpack.c.h.b16 %v5045
    %v5375 = vunpack.c.l.b16 %v5046
    %v5376 = vunpack.c.h.b16 %v5046
    %v5377 = vunpack.c.l.b16 %v5047
    %v5378 = vunpack.c.h.b16 %v5047
    %v5379 = vunpack.c.l.b16 %v5048
    %v5380 = vunpack.c.h.b16 %v5048
    %v5381 = vunpack.c.l.b16 %v5049
    %v5382 = vunpack.c.h.b16 %v5049
    %v5383 = vunpack.c.l.b16 %v5050
    %v5384 = vunpack.c.h.b16 %v5050
    %v5385 = vunpack.c.l.b16 %v5051
    %v5386 = vunpack.c.h.b16 %v5051
    %v5387 = vunpack.c.l.b16 %v5052
    %v5388 = vunpack.c.h.b16 %v5052
    %v5389 = vunpack.c.l.b16 %v5053
    %v5390 = vunpack.c.h.b16 %v5053
    %v5391 = vunpack.c.l.b16 %v5054
    %v5392 = vunpack.c.h.b16 %v5054
    %v5393 = vunpack.c.l.b16 %v5055
    %v5394 = vunpack.c.h.b16 %v5055
    %v5395 = vunpack.c.l.b16 %v5056
    %v5396 = vunpack.c.h.b16 %v5056
    %v5397 = vunpack.c.l.b16 %v5057
    %v5398 = vunpack.c.h.b16 %v5057
    %v5399 = vunpack.c.l.b16 %v5058
    %v5400 = vunpack.c.h.b16 %v5058
    %v5401 = vunpack.c.l.b16 %v5059
    %v5402 = vunpack.c.h.b16 %v5059
    %v5403 = vunpack.c.l.b16 %v5060
    %v5404 = vunpack.c.h.b16 %v5060
    %v5405 = vunpack.c.l.b16 %v5061
    %v5406 = vunpack.c.h.b16 %v5061
    %v5407 = vunpack.c.l.b16 %v5062
    %v5408 = vunpack.c.h.b16 %v5062
    %v5409 = vunpack.c.l.b16 %v5063
    %v5410 = vunpack.c.h.b16 %v5063
    %v5411 = vunpack.c.l.b16 %v5064
    %v5412 = vunpack.c.h.b16 %v5064
    %v5413 = vunpack.c.l.b16 %v5065
    %v5414 = vunpack.c.h.b16 %v5065
    %v5415 = vunpack.c.l.b16 %v5066
    %v5416 = vunpack.c.h.b16 %v5066
    %v5417 = vunpack.c.l.b16 %v5067
    %v5418 = vunpack.c.h.b16 %v5067
    %v5419 = vunpack.c.l.b16 %v5068
    %v5420 = vunpack.c.h.b16 %v5068
    %v5421 = vunpack.c.l.b16 %v5069
    %v5422 = vunpack.c.h.b16 %v5069
    %v5423 = vunpack.c.l.b16 %v5070
    %v5424 = vunpack.c.h.b16 %v5070
    %v5425 = vunpack.c.l.b16 %v5071
    %v5426 = vunpack.c.h.b16 %v5071
    %v5427 = vunpack.c.l.b16 %v5072
    %v5428 = vunpack.c.h.b16 %v5072
    %v5429 = vunpack.c.l.b16 %v5073
    %v5430 = vunpack.c.h.b16 %v5073
    %v5431 = vunpack.c.l.b16 %v5074
    %v5432 = vunpack.c.h.b16 %v5074
    %v5433 = vunpack.c.l.b16 %v5075
    %v5434 = vunpack.c.h.b16 %v5075
    %v5435 = vunpack.c.l.b16 %v5076
    %v5436 = vunpack.c.h.b16 %v5076
    %v5437 = vunpack.c.l.b16 %v5077
    %v5438 = vunpack.c.h.b16 %v5077
    %v5439 = vunpack.c.l.b16 %v5078
    %v5440 = vunpack.c.h.b16 %v5078
    %v5441 = vunpack.c.l.b16 %v5079
    %v5442 = vunpack.c.h.b16 %v5079
    %v5443 = vunpack.c.l.b16 %v5080
    %v5444 = vunpack.c.h.b16 %v5080
    %v5445 = vunpack.c.l.b16 %v5081
    %v5446 = vunpack.c.h.b16 %v5081
    %v5447 = vunpack.c.l.b16 %v5082
    %v5448 = vunpack.c.h.b16 %v5082
    %v5449 = vunpack.c.l.b16 %v5083
    %v5450 = vunpack.c.h.b16 %v5083
    %v5451 = vunpack.c.l.b16 %v5084
    %v5452 = vunpack.c.h.b16 %v5084
    %v5453 = vunpack.c.l.b16 %v5085
    %v5454 = vunpack.c.h.b16 %v5085
    %v5455 = vunpack.c.l.b16 %v5086
    %v5456 = vunpack.c.h.b16 %v5086
    %v5457 = vunpack.c.l.b16 %v5087
    %v5458 = vunpack.c.h.b16 %v5087
    %v5459 = vunpack.c.l.b16 %v5088
    %v5460 = vunpack.c.h.b16 %v5088
    %v5461 = vunpack.c.l.b16 %v5089
    %v5462 = vunpack.c.h.b16 %v5089
    %v5463 = vunpack.c.l.b16 %v5090
    %v5464 = vunpack.c.h.b16 %v5090
    %v5465 = vunpack.c.l.b16 %v5091
    %v5466 = vunpack.c.h.b16 %v5091
    %v5467 = vunpack.c.l.b16 %v5092
    %v5468 = vunpack.c.h.b16 %v5092
    %v5469 = vunpack.c.l.b16 %v5093
    %v5470 = vunpack.c.h.b16 %v5093
    %v5471 = vunpack.c.l.b16 %v5094
    %v5472 = vunpack.c.h.b16 %v5094
    %v5473 = vunpack.c.l.b16 %v5095
    %v5474 = vunpack.c.h.b16 %v5095
    %v5475 = vunpack.c.l.b16 %v5096
    %v5476 = vunpack.c.h.b16 %v5096
    %v5477 = vunpack.c.l.b16 %v5097
    %v5478 = vunpack.c.h.b16 %v5097
    %v5479 = vunpack.c.l.b16 %v5098
    %v5480 = vunpack.c.h.b16 %v5098
    %v5481 = vunpack.c.l.b16 %v5099
    %v5482 = vunpack.c.h.b16 %v5099
    %v5483 = vunpack.c.l.b16 %v5100
    %v5484 = vunpack.c.h.b16 %v5100
    %v5485 = vunpack.c.l.b16 %v5101
    %v5486 = vunpack.c.h.b16 %v5101
    %v5487 = vunpack.c.l.b16 %v5102
    %v5488 = vunpack.c.h.b16 %v5102
    %v5489 = vunpack.c.l.b16 %v5103
    %v5490 = vunpack.c.h.b16 %v5103
    %v5491 = vunpack.c.l.b16 %v5104
    %v5492 = vunpack.c.h.b16 %v5104
    %v5493 = vunpack.c.l.b16 %v5105
    %v5494 = vunpack.c.h.b16 %v5105
    %v5495 = vunpack.c.l.b16 %v5106
    %v5496 = vunpack.c.h.b16 %v5106
    %v5497 = vunpack.c.l.b16 %v5107
    %v5498 = vunpack.c.h.b16 %v5107
    %v5499 = vunpack.c.l.b16 %v5108
    %v5500 = vunpack.c.h.b16 %v5108
    %v5501 = vunpack.c.l.b16 %v5109
    %v5502 = vunpack.c.h.b16 %v5109
    %v5503 = vunpack.c.l.b16 %v5110
    %v5504 = vunpack.c.h.b16 %v5110
    %v5505 = vunpack.c.l.b16 %v5111
    %v5506 = vunpack.c.h.b16 %v5111
    %v5507 = vunpack.c.l.b16 %v5112
    %v5508 = vunpack.c.h.b16 %v5112
    %v5509 = vunpack.c.l.b16 %v5113
    %v5510 = vunpack.c.h.b16 %v5113
    %v5511 = vunpack.c.l.b16 %v5114
    %v5512 = vunpack.c.h.b16 %v5114
    %v5513 = vunpack.c.l.b16 %v5115
    %v5514 = vunpack.c.h.b16 %v5115
    %v5515 = vunpack.c.l.b16 %v5116
    %v5516 = vunpack.c.h.b16 %v5116
    %v5517 = vunpack.c.l.b16 %v5117
    %v5518 = vunpack.c.h.b16 %v5117
    %v5519 = vunpack.c.l.b16 %v5118
    %v5520 = vunpack.c.h.b16 %v5118
    %v5521 = vunpack.c.l.b16 %v5119
    %v5522 = vunpack.c.h.b16 %v5119
    %v5523 = vunpack.c.l.b16 %v5120
    %v5524 = vunpack.c.h.b16 %v5120
    %v5525 = vunpack.c.l.b16 %v5121
    %v5526 = vunpack.c.h.b16 %v5121
    %v5527 = vunpack.c.l.b16 %v5122
    %v5528 = vunpack.c.h.b16 %v5122
    %v5529 = vpack.c.b16 %v5277, %v5273
    %v5530 = vpack.c.b16 %v5278, %v5274
    %v5531 = vpack.c.b16 %v5279, %v5275
    %v5532 = vpack.c.b16 %v5280, %v5276
    %v5533 = vpack.c.b16 %v5285, %v5281
    %v5534 = vpack.c.b16 %v5286, %v5282
    %v5535 = vpack.c.b16 %v5287, %v5283
    %v5536 = vpack.c.b16 %v5288, %v5284
    %v5537 = vpack.c.b16 %v5293, %v5289
    %v5538 = vpack.c.b16 %v5294, %v5290
    %v5539 = vpack.c.b16 %v5295, %v5291
    %v5540 = vpack.c.b16 %v5296, %v5292
    %v5541 = vpack.c.b16 %v5301, %v5297
    %v5542 = vpack.c.b16 %v5302, %v5298
    %v5543 = vpack.c.b16 %v5303, %v5299
    %v5544 = vpack.c.b16 %v5304, %v5300
    %v5545 = vpack.c.b16 %v5309, %v5305
    %v5546 = vpack.c.b16 %v5310, %v5306
    %v5547 = vpack.c.b16 %v5311, %v5307
    %v5548 = vpack.c.b16 %v5312, %v5308
    %v5549 = vpack.c.b16 %v5317, %v5313
    %v5550 = vpack.c.b16 %v5318, %v5314
    %v5551 = vpack.c.b16 %v5319, %v5315
    %v5552 = vpack.c.b16 %v5320, %v5316
    %v5553 = vpack.c.b16 %v5325, %v5321
    %v5554 = vpack.c.b16 %v5326, %v5322
    %v5555 = vpack.c.b16 %v5327, %v5323
    %v5556 = vpack.c.b16 %v5328, %v5324
    %v5557 = vpack.c.b16 %v5333, %v5329
    %v5558 = vpack.c.b16 %v5334, %v5330
    %v5559 = vpack.c.b16 %v5335, %v5331
    %v5560 = vpack.c.b16 %v5336, %v5332
    %v5561 = vpack.c.b16 %v5341, %v5337
    %v5562 = vpack.c.b16 %v5342, %v5338
    %v5563 = vpack.c.b16 %v5343, %v5339
    %v5564 = vpack.c.b16 %v5344, %v5340
    %v5565 = vpack.c.b16 %v5349, %v5345
    %v5566 = vpack.c.b16 %v5350, %v5346
    %v5567 = vpack.c.b16 %v5351, %v5347
    %v5568 = vpack.c.b16 %v5352, %v5348
    %v5569 = vpack.c.b16 %v5357, %v5353
    %v5570 = vpack.c.b16 %v5358, %v5354
    %v5571 = vpack.c.b16 %v5359, %v5355
    %v5572 = vpack.c.b16 %v5360, %v5356
    %v5573 = vpack.c.b16 %v5365, %v5361
    %v5574 = vpack.c.b16 %v5366, %v5362
    %v5575 = vpack.c.b16 %v5367, %v5363
    %v5576 = vpack.c.b16 %v5368, %v5364
    %v5577 = vpack.c.b16 %v5373, %v5369
    %v5578 = vpack.c.b16 %v5374, %v5370
    %v5579 = vpack.c.b16 %v5375, %v5371
    %v5580 = vpack.c.b16 %v5376, %v5372
    %v5581 = vpack.c.b16 %v5381, %v5377
    %v5582 = vpack.c.b16 %v5382, %v5378
    %v5583 = vpack.c.b16 %v5383, %v5379
    %v5584 = vpack.c.b16 %v5384, %v5380
    %v5585 = vpack.c.b16 %v5389, %v5385
    %v5586 = vpack.c.b16 %v5390, %v5386
    %v5587 = vpack.c.b16 %v5391, %v5387
    %v5588 = vpack.c.b16 %v5392, %v5388
    %v5589 = vpack.c.b16 %v5397, %v5393
    %v5590 = vpack.c.b16 %v5398, %v5394
    %v5591 = vpack.c.b16 %v5399, %v5395
    %v5592 = vpack.c.b16 %v5400, %v5396
    %v5593 = vpack.c.b16 %v5405, %v5401
    %v5594 = vpack.c.b16 %v5406, %v5402
    %v5595 = vpack.c.b16 %v5407, %v5403
    %v5596 = vpack.c.b16 %v5408, %v5404
    %v5597 = vpack.c.b16 %v5413, %v5409
    %v5598 = vpack.c.b16 %v5414, %v5410
    %v5599 = vpack.c.b16 %v5415, %v5411
    %v5600 = vpack.c.b16 %v5416, %v5412
    %v5601 = vpack.c.b16 %v5421, %v5417
    %v5602 = vpack.c.b16 %v5422, %v5418
    %v5603 = vpack.c.b16 %v5423, %v5419
    %v5604 = vpack.c.b16 %v5424, %v5420
    %v5605 = vpack.c.b16 %v5429, %v5425
    %v5606 = vpack.c.b16 %v5430, %v5426
    %v5607 = vpack.c.b16 %v5431, %v5427
    %v5608 = vpack.c.b16 %v5432, %v5428
    %v5609 = vpack.c.b16 %v5437, %v5433
    %v5610 = vpack.c.b16 %v5438, %v5434
    %v5611 = vpack.c.b16 %v5439, %v5435
    %v5612 = vpack.c.b16 %v5440, %v5436
    %v5613 = vpack.c.b16 %v5445, %v5441
    %v5614 = vpack.c.b16 %v5446, %v5442
    %v5615 = vpack.c.b16 %v5447, %v5443
    %v5616 = vpack.c.b16 %v5448, %v5444
    %v5617 = vpack.c.b16 %v5453, %v5449
    %v5618 = vpack.c.b16 %v5454, %v5450
    %v5619 = vpack.c.b16 %v5455, %v5451
    %v5620 = vpack.c.b16 %v5456, %v5452
    %v5621 = vpack.c.b16 %v5461, %v5457
    %v5622 = vpack.c.b16 %v5462, %v5458
    %v5623 = vpack.c.b16 %v5463, %v5459
    %v5624 = vpack.c.b16 %v5464, %v5460
    %v5625 = vpack.c.b16 %v5469, %v5465
    %v5626 = vpack.c.b16 %v5470, %v5466
    %v5627 = vpack.c.b16 %v5471, %v5467
    %v5628 = vpack.c.b16 %v5472, %v5468
    %v5629 = vpack.c.b16 %v5477, %v5473
    %v5630 = vpack.c.b16 %v5478, %v5474
    %v5631 = vpack.c.b16 %v5479, %v5475
    %v5632 = vpack.c.b16 %v5480, %v5476
    %v5633 = vpack.c.b16 %v5485, %v5481
    %v5634 = vpack.c.b16 %v5486, %v5482
    %v5635 = vpack.c.b16 %v5487, %v5483
    %v5636 = vpack.c.b16 %v5488, %v5484
    %v5637 = vpack.c.b16 %v5493, %v5489
    %v5638 = vpack.c.b16 %v5494, %v5490
    %v5639 = vpack.c.b16 %v5495, %v5491
    %v5640 = vpack.c.b16 %v5496, %v5492
    %v5641 = vpack.c.b16 %v5501, %v5497
    %v5642 = vpack.c.b16 %v5502, %v5498
    %v5643 = vpack.c.b16 %v5503, %v5499
    %v5644 = vpack.c.b16 %v5504, %v5500
    %v5645 = vpack.c.b16 %v5509, %v5505
    %v5646 = vpack.c.b16 %v5510, %v5506
    %v5647 = vpack.c.b16 %v5511, %v5507
    %v5648 = vpack.c.b16 %v5512, %v5508
    %v5649 = vpack.c.b16 %v5517, %v5513
    %v5650 = vpack.c.b16 %v5518, %v5514
    %v5651 = vpack.c.b16 %v5519, %v5515
    %v5652 = vpack.c.b16 %v5520, %v5516
    %v5653 = vpack.c.b16 %v5525, %v5521
    %v5654 = vpack.c.b16 %v5526, %v5522
    %v5655 = vpack.c.b16 %v5527, %v5523
    %v5656 = vpack.c.b16 %v5528, %v5524
    %5785 = vmatprep.subr.bf16.mxu0 %v5530
    %5786 = vmatpush1.bf16.msra.mxu0 %v5529
    %5787 = vmatprep.subr.bf16.mxu0 %v5534
    %5788 = vmatpush1.bf16.msra.mxu0 %v5533
    %5789 = vmatprep.subr.bf16.mxu0 %v5538
    %5790 = vmatpush1.bf16.msra.mxu0 %v5537
    %5791 = vmatprep.subr.bf16.mxu0 %v5542
    %5792 = vmatpush1.bf16.msra.mxu0 %v5541
    %5793 = vmatprep.subr.bf16.mxu0 %v5546
    %5794 = vmatpush1.bf16.msra.mxu0 %v5545
    %5795 = vmatprep.subr.bf16.mxu0 %v5550
    %5796 = vmatpush1.bf16.msra.mxu0 %v5549
    %5797 = vmatprep.subr.bf16.mxu0 %v5554
    %5798 = vmatpush1.bf16.msra.mxu0 %v5553
    %5799 = vmatprep.subr.bf16.mxu0 %v5558
    %5800 = vmatpush1.bf16.msra.mxu0 %v5557
    %5801 = vmatprep.subr.bf16.mxu0 %v5562
    %5802 = vmatpush1.bf16.msra.mxu0 %v5561
    %5803 = vmatprep.subr.bf16.mxu0 %v5566
    %5804 = vmatpush1.bf16.msra.mxu0 %v5565
    %5805 = vmatprep.subr.bf16.mxu0 %v5570
    %5806 = vmatpush1.bf16.msra.mxu0 %v5569
    %5807 = vmatprep.subr.bf16.mxu0 %v5574
    %5808 = vmatpush1.bf16.msra.mxu0 %v5573
    %5809 = vmatprep.subr.bf16.mxu0 %v5578
    %5810 = vmatpush1.bf16.msra.mxu0 %v5577
    %5811 = vmatprep.subr.bf16.mxu0 %v5582
    %5812 = vmatpush1.bf16.msra.mxu0 %v5581
    %5813 = vmatprep.subr.bf16.mxu0 %v5586
    %5814 = vmatpush1.bf16.msra.mxu0 %v5585
    %5815 = vmatprep.subr.bf16.mxu0 %v5590
    %5816 = vmatpush1.bf16.msra.mxu0 %v5589
    %5817 = vmatprep.mubr.bf16.mxu0 %v4992
    %5818 = vmatmul.mubr.bf16.gmra.mrb[0].mxu0 %v4991
    %v5819 = vpop.f32.mrb[0].mxu0
    %v5820 = vadd.f32 %v5128, %v5819
    %v5821 = vpop.f32.mrb[0].mxu0
    %v5822 = vadd.f32 %v5132, %v5821
    %v5823 = vpop.f32.mrb[0].mxu0
    %v5824 = vpop.f32.mrb[0].mxu0
    %5825 = vdwg.mxu0
    %5826 = vmatprep.subr.bf16.mxu0 %v5594
    %5827 = vmatpush1.bf16.msra.mxu0 %v5593
    %5828 = vmatprep.subr.bf16.mxu0 %v5598
    %5829 = vmatpush1.bf16.msra.mxu0 %v5597
    %5830 = vmatprep.subr.bf16.mxu0 %v5602
    %5831 = vmatpush1.bf16.msra.mxu0 %v5601
    %5832 = vmatprep.subr.bf16.mxu0 %v5606
    %5833 = vmatpush1.bf16.msra.mxu0 %v5605
    %5834 = vmatprep.subr.bf16.mxu0 %v5610
    %5835 = vmatpush1.bf16.msra.mxu0 %v5609
    %5836 = vmatprep.subr.bf16.mxu0 %v5614
    %5837 = vmatpush1.bf16.msra.mxu0 %v5613
    %5838 = vmatprep.subr.bf16.mxu0 %v5618
    %5839 = vmatpush1.bf16.msra.mxu0 %v5617
    %5840 = vmatprep.subr.bf16.mxu0 %v5622
    %5841 = vmatpush1.bf16.msra.mxu0 %v5621
    %5842 = vmatprep.subr.bf16.mxu0 %v5626
    %5843 = vmatpush1.bf16.msra.mxu0 %v5625
    %5844 = vmatprep.subr.bf16.mxu0 %v5630
    %5845 = vmatpush1.bf16.msra.mxu0 %v5629
    %5846 = vmatprep.subr.bf16.mxu0 %v5634
    %5847 = vmatpush1.bf16.msra.mxu0 %v5633
    %5848 = vmatprep.subr.bf16.mxu0 %v5638
    %5849 = vmatpush1.bf16.msra.mxu0 %v5637
    %5850 = vmatprep.subr.bf16.mxu0 %v5642
    %5851 = vmatpush1.bf16.msra.mxu0 %v5641
    %5852 = vmatprep.subr.bf16.mxu0 %v5646
    %5853 = vmatpush1.bf16.msra.mxu0 %v5645
    %5854 = vmatprep.subr.bf16.mxu0 %v5650
    %5855 = vmatpush1.bf16.msra.mxu0 %v5649
    %5856 = vmatprep.subr.bf16.mxu0 %v5654
    %5857 = vmatpush1.bf16.msra.mxu0 %v5653
    %5858 = vmatprep.mubr.bf16.mxu0 %v4994
    %5859 = vmatmul.mubr.bf16.gmra.mrb[0].mxu0 %v4993
    %v5860 = vpop.f32.mrb[0].mxu0
    %v5861 = vadd.f32 %v5820, %v5860
    %v5862 = vpop.f32.mrb[0].mxu0
    %v5863 = vadd.f32 %v5822, %v5862
    %v5864 = vpop.f32.mrb[0].mxu0
    %v5865 = vpop.f32.mrb[0].mxu0
    %5866 = vdwg.mxu0
    %5867 = vmatprep.subr.bf16.mxu0 %v5532
    %5868 = vmatpush1.bf16.msra.mxu0 %v5531
    %5869 = vmatprep.subr.bf16.mxu0 %v5536
    %5870 = vmatpush1.bf16.msra.mxu0 %v5535
    %5871 = vmatprep.subr.bf16.mxu0 %v5540
    %5872 = vmatpush1.bf16.msra.mxu0 %v5539
    %5873 = vmatprep.subr.bf16.mxu0 %v5544
    %5874 = vmatpush1.bf16.msra.mxu0 %v5543
    %5875 = vmatprep.subr.bf16.mxu0 %v5548
    %5876 = vmatpush1.bf16.msra.mxu0 %v5547
    %5877 = vmatprep.subr.bf16.mxu0 %v5552
    %5878 = vmatpush1.bf16.msra.mxu0 %v5551
    %5879 = vmatprep.subr.bf16.mxu0 %v5556
    %5880 = vmatpush1.bf16.msra.mxu0 %v5555
    %5881 = vmatprep.subr.bf16.mxu0 %v5560
    %5882 = vmatpush1.bf16.msra.mxu0 %v5559
    %5883 = vmatprep.subr.bf16.mxu0 %v5564
    %5884 = vmatpush1.bf16.msra.mxu0 %v5563
    %5885 = vmatprep.subr.bf16.mxu0 %v5568
    %5886 = vmatpush1.bf16.msra.mxu0 %v5567
    %5887 = vmatprep.subr.bf16.mxu0 %v5572
    %5888 = vmatpush1.bf16.msra.mxu0 %v5571
    %5889 = vmatprep.subr.bf16.mxu0 %v5576
    %5890 = vmatpush1.bf16.msra.mxu0 %v5575
    %5891 = vmatprep.subr.bf16.mxu0 %v5580
    %5892 = vmatpush1.bf16.msra.mxu0 %v5579
    %5893 = vmatprep.subr.bf16.mxu0 %v5584
    %5894 = vmatpush1.bf16.msra.mxu0 %v5583
    %5895 = vmatprep.subr.bf16.mxu0 %v5588
    %5896 = vmatpush1.bf16.msra.mxu0 %v5587
    %5897 = vmatprep.subr.bf16.mxu0 %v5592
    %5898 = vmatpush1.bf16.msra.mxu0 %v5591
    %5899 = vmatprep.mubr.bf16.mxu0 %v4992
    %5900 = vmatmul.mubr.bf16.gmra.mrb[0].mxu0 %v4991
    %v5901 = vpop.f32.mrb[0].mxu0
    %v5902 = vadd.f32 %v5136, %v5901
    %v5903 = vpop.f32.mrb[0].mxu0
    %v5904 = vadd.f32 %v5140, %v5903
    %v5905 = vpop.f32.mrb[0].mxu0
    %v5906 = vpop.f32.mrb[0].mxu0
    %5907 = vdwg.mxu0
    %5908 = vmatprep.subr.bf16.mxu0 %v5596
    %5909 = vmatpush1.bf16.msra.mxu0 %v5595
    %5910 = vmatprep.subr.bf16.mxu0 %v5600
    %5911 = vmatpush1.bf16.msra.mxu0 %v5599
    %5912 = vmatprep.subr.bf16.mxu0 %v5604
    %5913 = vmatpush1.bf16.msra.mxu0 %v5603
    %5914 = vmatprep.subr.bf16.mxu0 %v5608
    %5915 = vmatpush1.bf16.msra.mxu0 %v5607
    %5916 = vmatprep.subr.bf16.mxu0 %v5612
    %5917 = vmatpush1.bf16.msra.mxu0 %v5611
    %5918 = vmatprep.subr.bf16.mxu0 %v5616
    %5919 = vmatpush1.bf16.msra.mxu0 %v5615
    %5920 = vmatprep.subr.bf16.mxu0 %v5620
    %5921 = vmatpush1.bf16.msra.mxu0 %v5619
    %5922 = vmatprep.subr.bf16.mxu0 %v5624
    %5923 = vmatpush1.bf16.msra.mxu0 %v5623
    %5924 = vmatprep.subr.bf16.mxu0 %v5628
    %5925 = vmatpush1.bf16.msra.mxu0 %v5627
    %5926 = vmatprep.subr.bf16.mxu0 %v5632
    %5927 = vmatpush1.bf16.msra.mxu0 %v5631
    %5928 = vmatprep.subr.bf16.mxu0 %v5636
    %5929 = vmatpush1.bf16.msra.mxu0 %v5635
    %5930 = vmatprep.subr.bf16.mxu0 %v5640
    %5931 = vmatpush1.bf16.msra.mxu0 %v5639
    %5932 = vmatprep.subr.bf16.mxu0 %v5644
    %5933 = vmatpush1.bf16.msra.mxu0 %v5643
    %5934 = vmatprep.subr.bf16.mxu0 %v5648
    %5935 = vmatpush1.bf16.msra.mxu0 %v5647
    %5936 = vmatprep.subr.bf16.mxu0 %v5652
    %5937 = vmatpush1.bf16.msra.mxu0 %v5651
    %5938 = vmatprep.subr.bf16.mxu0 %v5656
    %5939 = vmatpush1.bf16.msra.mxu0 %v5655
    %5940 = vmatprep.mubr.bf16.mxu0 %v4994
    %5941 = vmatmul.mubr.bf16.gmra.mrb[0].mxu0 %v4993
    %v5942 = vpop.f32.mrb[0].mxu0
    %v5943 = vadd.f32 %v5902, %v5942
    %v5944 = vpop.f32.mrb[0].mxu0
    %v5945 = vadd.f32 %v5904, %v5944
    %v5946 = vpop.f32.mrb[0].mxu0
    %v5947 = vpop.f32.mrb[0].mxu0
    %5948 = vdwg.mxu0
    %5949 = vst [vmem:[#allocation13] sm:$0xff] %v5861
    %5950 = vst [vmem:[#allocation13 + $0x8] sm:$0xff] %v5863
    %5951 = vst [vmem:[#allocation13 + $0x10] sm:$0xff] %v5943
    %5952 = vst [vmem:[#allocation13 + $0x18] sm:$0xff] %v5945
    // Predicated region
    $region50: #{tpu_custom_call.1} parent=1 // pred_check
      _
    $region51: #{tpu_custom_call.1} parent=1 // pred_check_branch
      %5954 = sbr.rel (0) target = $region53
    $region52: #{tpu_custom_call.1} parent=1 // pred_region
      %s5956 = ssub.s32 512, 512
      %5957 = vsyncadd [#allocation4], %s5956
      %s5959 = sshll.u32 [#allocation13], 4
      %s5960 = int_to_ptr.vmem [resolvable:$true] %s5959
      %5962 = dma.vmem_to_hbm [thread:$0]  %s5960, 512, %s6, [#allocation4]
    $region53: #{tpu_custom_call.1} parent=1 // pred_fallthru
      _
    // Predicated region
    $region54: #{tpu_custom_call.1} parent=1 // pred_check
      _
    $region55: #{tpu_custom_call.1} parent=1 // pred_check_branch
      %5964 = sbr.rel (0) target = $region57
    $region56: #{tpu_custom_call.1} parent=1 // pred_region
      %5965 = dma.done [#allocation4], 512
    $region57: #{tpu_custom_call.1} parent=1 // pred_fallthru
      _
    %5966 = vsyncpa [#allocation3], 1
    %5967 = vsyncpa [#allocation6], 1
    %5968 = vsyncpa [#allocation9], 1
    %5969 = vsyncpa [#allocation12], 1
    %5970 = vsyncpa [#allocation4], 1

</llo_original>
